<compile_context>
chip_gen: v6e
topology: v6e:2x2x1
jax: 0.10.0
libtpu: 0.0.40
codegen_flags: <defaults>
</compile_context>

<pallas_src>
import jax
import jax.numpy as jnp
import numpy as np
from jax.experimental import pallas as pl
from jax.experimental.pallas import tpu as pltpu

_LANE = 128                       # channel padding target (TPU lane width)
_GELU_C = 0.7978845608028654      # sqrt(2/pi)


def _fused_cnn_encoder_kernel(x_ref, w_ref, scale_ref, bias_ref, o_ref,
                              buf_a, buf_b):
    """Fused 4x (same-padded Conv1d + folded BatchNorm + tanh-GELU) over one L tile.

    x_ref:     (1, 1, rows, 128) bf16  halo-overlapped input tile (rows = TL + 2*halo),
                                       channels zero-padded to 128 lanes on host
    w_ref:     (NL, K*128, 128)  bf16  per-layer im2col weights (zero-padded channels)
    scale_ref: (NL, 1, 128)      f32   gamma / sqrt(running_var + eps)       (0 on pad lanes)
    bias_ref:  (NL, 1, 128)      f32   beta + (conv_bias - mean) * scale     (0 on pad lanes)
    o_ref:     (1, 128, TL)      f32   output tile, already channel-major (NCL)
    buf_a/b:   (rows, 128)       bf16  ping-pong VMEM for intermediate activations
    """
    rows = x_ref.shape[2]
    lane = o_ref.shape[1]
    n_layers = w_ref.shape[0]
    k_taps = w_ref.shape[1] // lane
    pad = k_taps // 2

    t = pl.program_id(1)                 # L-tile index
    t_last = pl.num_programs(1) - 1

    bufs = (buf_a, buf_b)
    for layer in range(n_layers):
        # Valid region shrinks by `pad` rows per side per layer; layer-l output row i
        # sits at global position  t*TL + (layer+1)*pad - halo + i.
        n_out = rows - 2 * (layer + 1) * pad

        # im2col: K shifted bf16 slices concatenated along lanes -> one fat MXU matmul.
        if layer == 0:
            src_slices = [x_ref[0, 0, k:k + n_out, :] for k in range(k_taps)]
        else:
            src = bufs[(layer - 1) % 2]
            src_slices = [src[k:k + n_out, :] for k in range(k_taps)]
        cols = jnp.concatenate(src_slices, axis=-1)                    # (n_out, K*128) bf16
        acc = jnp.dot(cols, w_ref[layer],
                      preferred_element_type=jnp.float32)              # (n_out, 128) f32

        y = acc * scale_ref[layer] + bias_ref[layer]                   # folded BN + conv bias
        # tanh-approximate GELU (EUP tanh; a handful of VALU ops).
        y = 0.5 * y * (1.0 + jnp.tanh(_GELU_C * (y + 0.044715 * (y * y * y))))

        if layer == n_layers - 1:
            # Dropout(0.5) is identity in eval mode.  Transpose in-kernel (XLU) and
            # store channel-major -> no wrapper-side NLC->NCL transpose / HBM round trip.
            o_ref[0] = jnp.transpose(y, (1, 0)).astype(o_ref.dtype)
        else:
            dst = bufs[layer % 2]
            dst[0:n_out, :] = y.astype(dst.dtype)
            # Per-layer "same" padding at the TRUE sequence boundary: the first/last
            # tile must see zeros (not values computed from the zero-extended input)
            # for rows outside [0, L).  Only (n_layers-1-layer)*pad rows per side.
            nz = (n_layers - 1 - layer) * pad
            if nz > 0:
                zeros = jnp.zeros((nz, lane), dst.dtype)

                @pl.when(t == 0)
                def _():
                    dst[0:nz, :] = zeros

                @pl.when(t == t_last)
                def _():
                    dst[n_out - nz:n_out, :] = zeros


def _pick_tile(length):
    for tl in (1024, 512, 256, 128):
        if length % tl == 0:
            return tl
    return length        # small / irregular L: single tile per batch element


def cnn_encoder_pallas(x_ncl, packed, tile_l=None):
    """Full forward pass. x_ncl: (N, C0, L) like the PyTorch module; returns (N, 128, L)."""
    w_all, scale_all, bias_all = packed["w"], packed["scale"], packed["bias"]
    n_layers, kc, lane = w_all.shape
    k_taps = kc // lane
    pad = k_taps // 2
    halo = n_layers * pad                      # total fused receptive-field halo (12)
    N, c_in, L = x_ncl.shape

    if tile_l is None:
        tile_l = _pick_tile(L)
    if L % tile_l != 0 or (tile_l != L and tile_l % 128 != 0):
        raise ValueError(f"L={L} must be a multiple of tile_l={tile_l} (tile_l % 128 == 0)")
    n_tiles = L // tile_l
    rows = tile_l + 2 * halo

    # Host-side prep on the tiny c_in-channel input only:
    #   NCL -> NLC, cast bf16, zero-pad channels to 128 lanes (lane-dense DMA, no
    #   in-kernel lane masking), zero-pad L by the fused halo, gather overlapping tiles.
    x_nlc = jnp.transpose(x_ncl, (0, 2, 1)).astype(jnp.bfloat16)
    x_pad = jnp.pad(x_nlc, ((0, 0), (halo, halo), (0, lane - c_in)))
    idx = jnp.arange(n_tiles)[:, None] * tile_l + jnp.arange(rows)[None, :]
    x_tiles = jnp.take(x_pad, idx, axis=1)     # (N, n_tiles, rows, 128) bf16

    out = pl.pallas_call(
        _fused_cnn_encoder_kernel,
        out_shape=jax.ShapeDtypeStruct((N, lane, L), jnp.float32),     # already NCL
        grid=(N, n_tiles),
        in_specs=[
            pl.BlockSpec((1, 1, rows, lane), lambda b, t: (b, t, 0, 0)),   # input tile
            pl.BlockSpec((n_layers, kc, lane), lambda b, t: (0, 0, 0)),    # weights (resident)
            pl.BlockSpec((n_layers, 1, lane), lambda b, t: (0, 0, 0)),     # folded scale
            pl.BlockSpec((n_layers, 1, lane), lambda b, t: (0, 0, 0)),     # folded bias
        ],
        out_specs=pl.BlockSpec((1, lane, tile_l), lambda b, t: (b, 0, t)),
        scratch_shapes=[
            pltpu.VMEM((rows, lane), jnp.bfloat16),    # ping
            pltpu.VMEM((rows, lane), jnp.bfloat16),    # pong
        ],
        compiler_params=pltpu.CompilerParams(
            dimension_semantics=("parallel", "parallel"),   # batch x L-tile -> megacore/dual-TC
            vmem_limit_bytes=32 * 1024 * 1024,              # safe on v5e/v6e/v7x; tiny footprint
        ),
    )(x_tiles, w_all, scale_all, bias_all)
    return out


def init_params(key, k_list=(7, 7, 7, 7), c_list=(6, 16, 32, 64, 128)):
    """Deterministic raw parameters mirroring the PyTorch module (eval mode)."""
    layers = []
    for i in range(len(c_list) - 1):
        ci, co, k = c_list[i], c_list[i + 1], k_list[i]
        key, k1, k2, k3, k4, k5, k6 = jax.random.split(key, 7)
        layers.append(dict(
            w=jax.random.normal(k1, (co, ci, k), jnp.float32) * 0.1,   # Conv1d weight (Co,Ci,K)
            b=jax.random.normal(k2, (co,), jnp.float32) * 0.1,         # Conv1d bias
            gamma=1.0 + 0.1 * jax.random.normal(k3, (co,), jnp.float32),
            beta=0.1 * jax.random.normal(k4, (co,), jnp.float32),
            mean=0.1 * jax.random.normal(k5, (co,), jnp.float32),
            var=jnp.abs(1.0 + 0.1 * jax.random.normal(k6, (co,), jnp.float32)),
            pad=k // 2,
        ))
    return layers


def pack_params(layers, lane=_LANE, eps=1e-5):
    """Fold BN + conv bias, zero-pad channels to 128 lanes, pack im2col weights (bf16)."""
    w_all, s_all, b_all = [], [], []
    k0 = layers[0]["w"].shape[-1]
    for p in layers:
        co, ci, k = p["w"].shape
        assert k == k0 and p["pad"] == k // 2, "fused kernel assumes uniform K / same-pad"
        scale = p["gamma"] / jnp.sqrt(p["var"] + eps)
        bias = p["beta"] + (p["b"] - p["mean"]) * scale
        w_kcico = jnp.transpose(p["w"], (2, 1, 0))                      # (K, Ci, Co)
        w_pad = jnp.zeros((k, lane, lane), jnp.float32).at[:, :ci, :co].set(w_kcico)
        w_all.append(w_pad.reshape(k * lane, lane))                     # row k*128+ci -> col co
        s_all.append(jnp.zeros((lane,), jnp.float32).at[:co].set(scale))
        b_all.append(jnp.zeros((lane,), jnp.float32).at[:co].set(bias))  # pad lanes stay exactly 0
    return dict(
        w=jnp.stack(w_all).astype(jnp.bfloat16),     # (NL, K*128, 128) bf16
        scale=jnp.stack(s_all)[:, None, :],          # (NL, 1, 128) f32
        bias=jnp.stack(b_all)[:, None, :],           # (NL, 1, 128) f32
    )


def cnn_encoder_reference(x_ncl, layers, eps=1e-5):
    """Pure-JAX f32 reference mirroring PyTorch eval-mode semantics (exact erf GELU)."""
    x = x_ncl
    for p in layers:
        y = jax.lax.conv_general_dilated(
            x, p["w"], window_strides=(1,), padding=[(p["pad"], p["pad"])],
            dimension_numbers=("NCH", "OIH", "NCH"))
        y = y + p["b"][None, :, None]
        y = (y - p["mean"][None, :, None]) / jnp.sqrt(p["var"][None, :, None] + eps)
        y = y * p["gamma"][None, :, None] + p["beta"][None, :, None]
        y = jax.nn.gelu(y, approximate=False)
        x = y
    return x


if __name__ == "__main__":
    key = jax.random.PRNGKey(0)
    k_in, k_in2, k_par = jax.random.split(key, 3)

    layers = init_params(k_par)
    packed = pack_params(layers)

    # Small test (single L tile per batch element): Conv1d input (batch=2, channels=6, length=16).
    N, C0, L = 2, 6, 16
    x = jax.random.normal(k_in, (N, C0, L), jnp.float32)
    out = jax.block_until_ready(cnn_encoder_pallas(x, packed))
    ref = jax.block_until_ready(cnn_encoder_reference(x, layers))
    assert out.shape == (N, 128, L), out.shape
    # Tolerance loosened vs. the f32 reference: bf16 matmul operands + bf16 activation
    # storage across 4 layers + tanh-approximate GELU.
    np.testing.assert_allclose(np.asarray(out), np.asarray(ref), rtol=1e-1, atol=1e-1)

    # Multi-tile test: exercises the halo-overlapped L tiling (2 tiles of 128).
    L2 = 256
    x2 = jax.random.normal(k_in2, (N, C0, L2), jnp.float32)
    out2 = jax.block_until_ready(cnn_encoder_pallas(x2, packed, tile_l=128))
    ref2 = jax.block_until_ready(cnn_encoder_reference(x2, layers))
    assert out2.shape == (N, 128, L2), out2.shape
    np.testing.assert_allclose(np.asarray(out2), np.asarray(ref2), rtol=1e-1, atol=1e-1)

    print("KERNEL_OK")
</pallas_src>

<mosaic_0001>
module attributes {stable_mosaic.version = 11 : i64} {
  func.func @_fused_cnn_encoder_kernel(%arg0: i32, %arg1: i32, %arg2: memref<1x1x40x128xbf16, #tpu.memory_space<vmem>>, %arg3: memref<4x896x128xbf16, #tpu.memory_space<vmem>>, %arg4: memref<4x1x128xf32, #tpu.memory_space<vmem>>, %arg5: memref<4x1x128xf32, #tpu.memory_space<vmem>>, %arg6: memref<1x128x16xf32, #tpu.memory_space<vmem>>, %arg7: memref<40x128xbf16, #tpu.memory_space<vmem>>, %arg8: memref<40x128xbf16, #tpu.memory_space<vmem>>) attributes {dimension_semantics = [#tpu.dimension_semantics<parallel>, #tpu.dimension_semantics<parallel>], iteration_bounds = array<i64: 2, 1>, scalar_prefetch = 0 : i64, scratch_operands = 2 : i64, tpu.core_type = #tpu.core_type<tc>, window_params = [{transform_indices = @transform_0, window_bounds = array<i64: 1, 1, 40, 128>}, {pipeline_mode = #tpu.pipeline_mode<synchronous>, transform_indices = @transform_1, window_bounds = array<i64: 4, 896, 128>}, {pipeline_mode = #tpu.pipeline_mode<synchronous>, transform_indices = @transform_2, window_bounds = array<i64: 4, 1, 128>}, {pipeline_mode = #tpu.pipeline_mode<synchronous>, transform_indices = @transform_3, window_bounds = array<i64: 4, 1, 128>}, {transform_indices = @transform_4, window_bounds = array<i64: 1, 128, 16>}]} {
    %c0 = arith.constant 0 : index
    %c0_0 = arith.constant 0 : index
    %c0_1 = arith.constant 0 : index
    %c0_2 = arith.constant 0 : index
    %0 = vector.load %arg2[%c0, %c0_0, %c0_1, %c0_2] : memref<1x1x40x128xbf16, #tpu.memory_space<vmem>>, vector<1x1x34x128xbf16>
    %1 = vector.shape_cast %0 : vector<1x1x34x128xbf16> to vector<34x128xbf16>
    %c0_3 = arith.constant 0 : index
    %c0_4 = arith.constant 0 : index
    %c1 = arith.constant 1 : index
    %c0_5 = arith.constant 0 : index
    %2 = vector.load %arg2[%c0_3, %c0_4, %c1, %c0_5] : memref<1x1x40x128xbf16, #tpu.memory_space<vmem>>, vector<1x1x34x128xbf16>
    %3 = vector.shape_cast %2 : vector<1x1x34x128xbf16> to vector<34x128xbf16>
    %c0_6 = arith.constant 0 : index
    %c0_7 = arith.constant 0 : index
    %c2 = arith.constant 2 : index
    %c0_8 = arith.constant 0 : index
    %4 = vector.load %arg2[%c0_6, %c0_7, %c2, %c0_8] : memref<1x1x40x128xbf16, #tpu.memory_space<vmem>>, vector<1x1x34x128xbf16>
    %5 = vector.shape_cast %4 : vector<1x1x34x128xbf16> to vector<34x128xbf16>
    %c0_9 = arith.constant 0 : index
    %c0_10 = arith.constant 0 : index
    %c3 = arith.constant 3 : index
    %c0_11 = arith.constant 0 : index
    %6 = vector.load %arg2[%c0_9, %c0_10, %c3, %c0_11] : memref<1x1x40x128xbf16, #tpu.memory_space<vmem>>, vector<1x1x34x128xbf16>
    %7 = vector.shape_cast %6 : vector<1x1x34x128xbf16> to vector<34x128xbf16>
    %c0_12 = arith.constant 0 : index
    %c0_13 = arith.constant 0 : index
    %c4 = arith.constant 4 : index
    %c0_14 = arith.constant 0 : index
    %8 = vector.load %arg2[%c0_12, %c0_13, %c4, %c0_14] : memref<1x1x40x128xbf16, #tpu.memory_space<vmem>>, vector<1x1x34x128xbf16>
    %9 = vector.shape_cast %8 : vector<1x1x34x128xbf16> to vector<34x128xbf16>
    %c0_15 = arith.constant 0 : index
    %c0_16 = arith.constant 0 : index
    %c5 = arith.constant 5 : index
    %c0_17 = arith.constant 0 : index
    %10 = vector.load %arg2[%c0_15, %c0_16, %c5, %c0_17] : memref<1x1x40x128xbf16, #tpu.memory_space<vmem>>, vector<1x1x34x128xbf16>
    %11 = vector.shape_cast %10 : vector<1x1x34x128xbf16> to vector<34x128xbf16>
    %c0_18 = arith.constant 0 : index
    %c0_19 = arith.constant 0 : index
    %c6 = arith.constant 6 : index
    %c0_20 = arith.constant 0 : index
    %12 = vector.load %arg2[%c0_18, %c0_19, %c6, %c0_20] : memref<1x1x40x128xbf16, #tpu.memory_space<vmem>>, vector<1x1x34x128xbf16>
    %13 = vector.shape_cast %12 : vector<1x1x34x128xbf16> to vector<34x128xbf16>
    %14 = tpu.concatenate %1, %3, %5, %7, %9, %11, %13 in 1 : vector<34x128xbf16>, vector<34x128xbf16>, vector<34x128xbf16>, vector<34x128xbf16>, vector<34x128xbf16>, vector<34x128xbf16>, vector<34x128xbf16> -> vector<34x896xbf16>
    %c0_21 = arith.constant 0 : index
    %c0_22 = arith.constant 0 : index
    %c0_23 = arith.constant 0 : index
    %15 = vector.load %arg3[%c0_21, %c0_22, %c0_23] : memref<4x896x128xbf16, #tpu.memory_space<vmem>>, vector<1x896x128xbf16>
    %16 = vector.shape_cast %15 : vector<1x896x128xbf16> to vector<896x128xbf16>
    %cst = arith.constant dense<0.000000e+00> : vector<34x128xf32>
    %17 = tpu.matmul %14, %16, %cst {dimension_numbers = #tpu.dot_dimension_numbers<[1], [0], [0], [1], [0, 0, 1, 1], [], []>} : vector<34x896xbf16>, vector<896x128xbf16>, vector<34x128xf32> -> vector<34x128xf32>
    %c0_24 = arith.constant 0 : index
    %c0_25 = arith.constant 0 : index
    %c0_26 = arith.constant 0 : index
    %18 = vector.load %arg4[%c0_24, %c0_25, %c0_26] : memref<4x1x128xf32, #tpu.memory_space<vmem>>, vector<1x1x128xf32>
    %19 = vector.shape_cast %18 : vector<1x1x128xf32> to vector<1x128xf32>
    %20 = vector.broadcast %19 : vector<1x128xf32> to vector<34x128xf32>
    %21 = arith.mulf %17, %20 : vector<34x128xf32>
    %c0_27 = arith.constant 0 : index
    %c0_28 = arith.constant 0 : index
    %c0_29 = arith.constant 0 : index
    %22 = vector.load %arg5[%c0_27, %c0_28, %c0_29] : memref<4x1x128xf32, #tpu.memory_space<vmem>>, vector<1x1x128xf32>
    %23 = vector.shape_cast %22 : vector<1x1x128xf32> to vector<1x128xf32>
    %24 = vector.broadcast %23 : vector<1x128xf32> to vector<34x128xf32>
    %25 = arith.addf %21, %24 : vector<34x128xf32>
    %cst_30 = arith.constant 5.000000e-01 : f32
    %26 = vector.broadcast %cst_30 : f32 to vector<34x128xf32>
    %27 = arith.mulf %26, %25 : vector<34x128xf32>
    %28 = arith.mulf %25, %25 : vector<34x128xf32>
    %29 = arith.mulf %28, %25 : vector<34x128xf32>
    %cst_31 = arith.constant 4.471500e-02 : f32
    %30 = vector.broadcast %cst_31 : f32 to vector<34x128xf32>
    %31 = arith.mulf %30, %29 : vector<34x128xf32>
    %32 = arith.addf %25, %31 : vector<34x128xf32>
    %cst_32 = arith.constant 0.797884583 : f32
    %33 = vector.broadcast %cst_32 : f32 to vector<34x128xf32>
    %34 = arith.mulf %33, %32 : vector<34x128xf32>
    %35 = math.tanh %34 : vector<34x128xf32>
    %cst_33 = arith.constant 1.000000e+00 : f32
    %36 = vector.broadcast %cst_33 : f32 to vector<34x128xf32>
    %37 = arith.addf %36, %35 : vector<34x128xf32>
    %38 = arith.mulf %27, %37 : vector<34x128xf32>
    %39 = arith.truncf %38 : vector<34x128xf32> to vector<34x128xbf16>
    %c0_34 = arith.constant 0 : index
    %c0_35 = arith.constant 0 : index
    %40 = vector.load %arg7[%c0_34, %c0_35] : memref<40x128xbf16, #tpu.memory_space<vmem>>, vector<34x128xbf16>
    tpu.vector_store %arg7[%c0_34, %c0_35], %39 {strides = array<i32>} : memref<40x128xbf16, #tpu.memory_space<vmem>>, vector<34x128xbf16>,
    %cst_36 = arith.constant 0.000000e+00 : bf16
    %41 = vector.broadcast %cst_36 : bf16 to vector<9x128xbf16>
    %c0_i32 = arith.constant 0 : i32
    %42 = arith.cmpi eq, %arg1, %c0_i32 : i32
    %43 = arith.extui %42 : i1 to i32
    %c0_i32_37 = arith.constant 0 : i32
    %44 = arith.cmpi ne, %43, %c0_i32_37 : i32
    scf.if %44 {
      %c0_141 = arith.constant 0 : index
      %c0_142 = arith.constant 0 : index
      %166 = vector.load %arg7[%c0_141, %c0_142] : memref<40x128xbf16, #tpu.memory_space<vmem>>, vector<9x128xbf16>
      tpu.vector_store %arg7[%c0_141, %c0_142], %41 {strides = array<i32>} : memref<40x128xbf16, #tpu.memory_space<vmem>>, vector<9x128xbf16>,
    } else {
    }
    %c0_i32_38 = arith.constant 0 : i32
    %45 = arith.cmpi eq, %arg1, %c0_i32_38 : i32
    %46 = arith.extui %45 : i1 to i32
    %c0_i32_39 = arith.constant 0 : i32
    %47 = arith.cmpi ne, %46, %c0_i32_39 : i32
    scf.if %47 {
      %c25 = arith.constant 25 : index
      %c0_141 = arith.constant 0 : index
      %166 = vector.load %arg7[%c25, %c0_141] : memref<40x128xbf16, #tpu.memory_space<vmem>>, vector<9x128xbf16>
      tpu.vector_store %arg7[%c25, %c0_141], %41 {strides = array<i32>} : memref<40x128xbf16, #tpu.memory_space<vmem>>, vector<9x128xbf16>,
    } else {
    }
    %c0_40 = arith.constant 0 : index
    %c0_41 = arith.constant 0 : index
    %48 = vector.load %arg7[%c0_40, %c0_41] : memref<40x128xbf16, #tpu.memory_space<vmem>>, vector<28x128xbf16>
    %c1_42 = arith.constant 1 : index
    %c0_43 = arith.constant 0 : index
    %49 = vector.load %arg7[%c1_42, %c0_43] : memref<40x128xbf16, #tpu.memory_space<vmem>>, vector<28x128xbf16>
    %c2_44 = arith.constant 2 : index
    %c0_45 = arith.constant 0 : index
    %50 = vector.load %arg7[%c2_44, %c0_45] : memref<40x128xbf16, #tpu.memory_space<vmem>>, vector<28x128xbf16>
    %c3_46 = arith.constant 3 : index
    %c0_47 = arith.constant 0 : index
    %51 = vector.load %arg7[%c3_46, %c0_47] : memref<40x128xbf16, #tpu.memory_space<vmem>>, vector<28x128xbf16>
    %c4_48 = arith.constant 4 : index
    %c0_49 = arith.constant 0 : index
    %52 = vector.load %arg7[%c4_48, %c0_49] : memref<40x128xbf16, #tpu.memory_space<vmem>>, vector<28x128xbf16>
    %c5_50 = arith.constant 5 : index
    %c0_51 = arith.constant 0 : index
    %53 = vector.load %arg7[%c5_50, %c0_51] : memref<40x128xbf16, #tpu.memory_space<vmem>>, vector<28x128xbf16>
    %c6_52 = arith.constant 6 : index
    %c0_53 = arith.constant 0 : index
    %54 = vector.load %arg7[%c6_52, %c0_53] : memref<40x128xbf16, #tpu.memory_space<vmem>>, vector<28x128xbf16>
    %55 = tpu.concatenate %48, %49, %50, %51, %52, %53, %54 in 1 : vector<28x128xbf16>, vector<28x128xbf16>, vector<28x128xbf16>, vector<28x128xbf16>, vector<28x128xbf16>, vector<28x128xbf16>, vector<28x128xbf16> -> vector<28x896xbf16>
    %c1_54 = arith.constant 1 : index
    %c0_55 = arith.constant 0 : index
    %c0_56 = arith.constant 0 : index
    %56 = vector.load %arg3[%c1_54, %c0_55, %c0_56] : memref<4x896x128xbf16, #tpu.memory_space<vmem>>, vector<1x896x128xbf16>
    %57 = vector.shape_cast %56 : vector<1x896x128xbf16> to vector<896x128xbf16>
    %cst_57 = arith.constant dense<0.000000e+00> : vector<28x128xf32>
    %58 = tpu.matmul %55, %57, %cst_57 {dimension_numbers = #tpu.dot_dimension_numbers<[1], [0], [0], [1], [0, 0, 1, 1], [], []>} : vector<28x896xbf16>, vector<896x128xbf16>, vector<28x128xf32> -> vector<28x128xf32>
    %c1_58 = arith.constant 1 : index
    %c0_59 = arith.constant 0 : index
    %c0_60 = arith.constant 0 : index
    %59 = vector.load %arg4[%c1_58, %c0_59, %c0_60] : memref<4x1x128xf32, #tpu.memory_space<vmem>>, vector<1x1x128xf32>
    %60 = vector.shape_cast %59 : vector<1x1x128xf32> to vector<1x128xf32>
    %61 = vector.broadcast %60 : vector<1x128xf32> to vector<28x128xf32>
    %62 = arith.mulf %58, %61 : vector<28x128xf32>
    %c1_61 = arith.constant 1 : index
    %c0_62 = arith.constant 0 : index
    %c0_63 = arith.constant 0 : index
    %63 = vector.load %arg5[%c1_61, %c0_62, %c0_63] : memref<4x1x128xf32, #tpu.memory_space<vmem>>, vector<1x1x128xf32>
    %64 = vector.shape_cast %63 : vector<1x1x128xf32> to vector<1x128xf32>
    %65 = vector.broadcast %64 : vector<1x128xf32> to vector<28x128xf32>
    %66 = arith.addf %62, %65 : vector<28x128xf32>
    %cst_64 = arith.constant 5.000000e-01 : f32
    %67 = vector.broadcast %cst_64 : f32 to vector<28x128xf32>
    %68 = arith.mulf %67, %66 : vector<28x128xf32>
    %69 = arith.mulf %66, %66 : vector<28x128xf32>
    %70 = arith.mulf %69, %66 : vector<28x128xf32>
    %cst_65 = arith.constant 4.471500e-02 : f32
    %71 = vector.broadcast %cst_65 : f32 to vector<28x128xf32>
    %72 = arith.mulf %71, %70 : vector<28x128xf32>
    %73 = arith.addf %66, %72 : vector<28x128xf32>
    %cst_66 = arith.constant 0.797884583 : f32
    %74 = vector.broadcast %cst_66 : f32 to vector<28x128xf32>
    %75 = arith.mulf %74, %73 : vector<28x128xf32>
    %76 = math.tanh %75 : vector<28x128xf32>
    %cst_67 = arith.constant 1.000000e+00 : f32
    %77 = vector.broadcast %cst_67 : f32 to vector<28x128xf32>
    %78 = arith.addf %77, %76 : vector<28x128xf32>
    %79 = arith.mulf %68, %78 : vector<28x128xf32>
    %80 = arith.truncf %79 : vector<28x128xf32> to vector<28x128xbf16>
    %c0_68 = arith.constant 0 : index
    %c0_69 = arith.constant 0 : index
    %81 = vector.load %arg8[%c0_68, %c0_69] : memref<40x128xbf16, #tpu.memory_space<vmem>>, vector<28x128xbf16>
    tpu.vector_store %arg8[%c0_68, %c0_69], %80 {strides = array<i32>} : memref<40x128xbf16, #tpu.memory_space<vmem>>, vector<28x128xbf16>,
    %cst_70 = arith.constant 0.000000e+00 : bf16
    %82 = vector.broadcast %cst_70 : bf16 to vector<6x128xbf16>
    %c0_i32_71 = arith.constant 0 : i32
    %83 = arith.cmpi eq, %arg1, %c0_i32_71 : i32
    %84 = arith.extui %83 : i1 to i32
    %c0_i32_72 = arith.constant 0 : i32
    %85 = arith.cmpi ne, %84, %c0_i32_72 : i32
    scf.if %85 {
      %c0_141 = arith.constant 0 : index
      %c0_142 = arith.constant 0 : index
      %166 = vector.load %arg8[%c0_141, %c0_142] : memref<40x128xbf16, #tpu.memory_space<vmem>>, vector<6x128xbf16>
      tpu.vector_store %arg8[%c0_141, %c0_142], %82 {strides = array<i32>} : memref<40x128xbf16, #tpu.memory_space<vmem>>, vector<6x128xbf16>,
    } else {
    }
    %c0_i32_73 = arith.constant 0 : i32
    %86 = arith.cmpi eq, %arg1, %c0_i32_73 : i32
    %87 = arith.extui %86 : i1 to i32
    %c0_i32_74 = arith.constant 0 : i32
    %88 = arith.cmpi ne, %87, %c0_i32_74 : i32
    scf.if %88 {
      %c22 = arith.constant 22 : index
      %c0_141 = arith.constant 0 : index
      %166 = vector.load %arg8[%c22, %c0_141] : memref<40x128xbf16, #tpu.memory_space<vmem>>, vector<6x128xbf16>
      tpu.vector_store %arg8[%c22, %c0_141], %82 {strides = array<i32>} : memref<40x128xbf16, #tpu.memory_space<vmem>>, vector<6x128xbf16>,
    } else {
    }
    %c0_75 = arith.constant 0 : index
    %c0_76 = arith.constant 0 : index
    %89 = vector.load %arg8[%c0_75, %c0_76] : memref<40x128xbf16, #tpu.memory_space<vmem>>, vector<22x128xbf16>
    %c1_77 = arith.constant 1 : index
    %c0_78 = arith.constant 0 : index
    %90 = vector.load %arg8[%c1_77, %c0_78] : memref<40x128xbf16, #tpu.memory_space<vmem>>, vector<22x128xbf16>
    %c2_79 = arith.constant 2 : index
    %c0_80 = arith.constant 0 : index
    %91 = vector.load %arg8[%c2_79, %c0_80] : memref<40x128xbf16, #tpu.memory_space<vmem>>, vector<22x128xbf16>
    %c3_81 = arith.constant 3 : index
    %c0_82 = arith.constant 0 : index
    %92 = vector.load %arg8[%c3_81, %c0_82] : memref<40x128xbf16, #tpu.memory_space<vmem>>, vector<22x128xbf16>
    %c4_83 = arith.constant 4 : index
    %c0_84 = arith.constant 0 : index
    %93 = vector.load %arg8[%c4_83, %c0_84] : memref<40x128xbf16, #tpu.memory_space<vmem>>, vector<22x128xbf16>
    %c5_85 = arith.constant 5 : index
    %c0_86 = arith.constant 0 : index
    %94 = vector.load %arg8[%c5_85, %c0_86] : memref<40x128xbf16, #tpu.memory_space<vmem>>, vector<22x128xbf16>
    %c6_87 = arith.constant 6 : index
    %c0_88 = arith.constant 0 : index
    %95 = vector.load %arg8[%c6_87, %c0_88] : memref<40x128xbf16, #tpu.memory_space<vmem>>, vector<22x128xbf16>
    %96 = tpu.concatenate %89, %90, %91, %92, %93, %94, %95 in 1 : vector<22x128xbf16>, vector<22x128xbf16>, vector<22x128xbf16>, vector<22x128xbf16>, vector<22x128xbf16>, vector<22x128xbf16>, vector<22x128xbf16> -> vector<22x896xbf16>
    %c2_89 = arith.constant 2 : index
    %c0_90 = arith.constant 0 : index
    %c0_91 = arith.constant 0 : index
    %97 = vector.load %arg3[%c2_89, %c0_90, %c0_91] : memref<4x896x128xbf16, #tpu.memory_space<vmem>>, vector<1x896x128xbf16>
    %98 = vector.shape_cast %97 : vector<1x896x128xbf16> to vector<896x128xbf16>
    %cst_92 = arith.constant dense<0.000000e+00> : vector<22x128xf32>
    %99 = tpu.matmul %96, %98, %cst_92 {dimension_numbers = #tpu.dot_dimension_numbers<[1], [0], [0], [1], [0, 0, 1, 1], [], []>} : vector<22x896xbf16>, vector<896x128xbf16>, vector<22x128xf32> -> vector<22x128xf32>
    %c2_93 = arith.constant 2 : index
    %c0_94 = arith.constant 0 : index
    %c0_95 = arith.constant 0 : index
    %100 = vector.load %arg4[%c2_93, %c0_94, %c0_95] : memref<4x1x128xf32, #tpu.memory_space<vmem>>, vector<1x1x128xf32>
    %101 = vector.shape_cast %100 : vector<1x1x128xf32> to vector<1x128xf32>
    %102 = vector.broadcast %101 : vector<1x128xf32> to vector<22x128xf32>
    %103 = arith.mulf %99, %102 : vector<22x128xf32>
    %c2_96 = arith.constant 2 : index
    %c0_97 = arith.constant 0 : index
    %c0_98 = arith.constant 0 : index
    %104 = vector.load %arg5[%c2_96, %c0_97, %c0_98] : memref<4x1x128xf32, #tpu.memory_space<vmem>>, vector<1x1x128xf32>
    %105 = vector.shape_cast %104 : vector<1x1x128xf32> to vector<1x128xf32>
    %106 = vector.broadcast %105 : vector<1x128xf32> to vector<22x128xf32>
    %107 = arith.addf %103, %106 : vector<22x128xf32>
    %cst_99 = arith.constant 5.000000e-01 : f32
    %108 = vector.broadcast %cst_99 : f32 to vector<22x128xf32>
    %109 = arith.mulf %108, %107 : vector<22x128xf32>
    %110 = arith.mulf %107, %107 : vector<22x128xf32>
    %111 = arith.mulf %110, %107 : vector<22x128xf32>
    %cst_100 = arith.constant 4.471500e-02 : f32
    %112 = vector.broadcast %cst_100 : f32 to vector<22x128xf32>
    %113 = arith.mulf %112, %111 : vector<22x128xf32>
    %114 = arith.addf %107, %113 : vector<22x128xf32>
    %cst_101 = arith.constant 0.797884583 : f32
    %115 = vector.broadcast %cst_101 : f32 to vector<22x128xf32>
    %116 = arith.mulf %115, %114 : vector<22x128xf32>
    %117 = math.tanh %116 : vector<22x128xf32>
    %cst_102 = arith.constant 1.000000e+00 : f32
    %118 = vector.broadcast %cst_102 : f32 to vector<22x128xf32>
    %119 = arith.addf %118, %117 : vector<22x128xf32>
    %120 = arith.mulf %109, %119 : vector<22x128xf32>
    %121 = arith.truncf %120 : vector<22x128xf32> to vector<22x128xbf16>
    %c0_103 = arith.constant 0 : index
    %c0_104 = arith.constant 0 : index
    %122 = vector.load %arg7[%c0_103, %c0_104] : memref<40x128xbf16, #tpu.memory_space<vmem>>, vector<22x128xbf16>
    tpu.vector_store %arg7[%c0_103, %c0_104], %121 {strides = array<i32>} : memref<40x128xbf16, #tpu.memory_space<vmem>>, vector<22x128xbf16>,
    %cst_105 = arith.constant 0.000000e+00 : bf16
    %123 = vector.broadcast %cst_105 : bf16 to vector<3x128xbf16>
    %c0_i32_106 = arith.constant 0 : i32
    %124 = arith.cmpi eq, %arg1, %c0_i32_106 : i32
    %125 = arith.extui %124 : i1 to i32
    %c0_i32_107 = arith.constant 0 : i32
    %126 = arith.cmpi ne, %125, %c0_i32_107 : i32
    scf.if %126 {
      %c0_141 = arith.constant 0 : index
      %c0_142 = arith.constant 0 : index
      %166 = vector.load %arg7[%c0_141, %c0_142] : memref<40x128xbf16, #tpu.memory_space<vmem>>, vector<3x128xbf16>
      tpu.vector_store %arg7[%c0_141, %c0_142], %123 {strides = array<i32>} : memref<40x128xbf16, #tpu.memory_space<vmem>>, vector<3x128xbf16>,
    } else {
    }
    %c0_i32_108 = arith.constant 0 : i32
    %127 = arith.cmpi eq, %arg1, %c0_i32_108 : i32
    %128 = arith.extui %127 : i1 to i32
    %c0_i32_109 = arith.constant 0 : i32
    %129 = arith.cmpi ne, %128, %c0_i32_109 : i32
    scf.if %129 {
      %c19 = arith.constant 19 : index
      %c0_141 = arith.constant 0 : index
      %166 = vector.load %arg7[%c19, %c0_141] : memref<40x128xbf16, #tpu.memory_space<vmem>>, vector<3x128xbf16>
      tpu.vector_store %arg7[%c19, %c0_141], %123 {strides = array<i32>} : memref<40x128xbf16, #tpu.memory_space<vmem>>, vector<3x128xbf16>,
    } else {
    }
    %c0_110 = arith.constant 0 : index
    %c0_111 = arith.constant 0 : index
    %130 = vector.load %arg7[%c0_110, %c0_111] : memref<40x128xbf16, #tpu.memory_space<vmem>>, vector<16x128xbf16>
    %c1_112 = arith.constant 1 : index
    %c0_113 = arith.constant 0 : index
    %131 = vector.load %arg7[%c1_112, %c0_113] : memref<40x128xbf16, #tpu.memory_space<vmem>>, vector<16x128xbf16>
    %c2_114 = arith.constant 2 : index
    %c0_115 = arith.constant 0 : index
    %132 = vector.load %arg7[%c2_114, %c0_115] : memref<40x128xbf16, #tpu.memory_space<vmem>>, vector<16x128xbf16>
    %c3_116 = arith.constant 3 : index
    %c0_117 = arith.constant 0 : index
    %133 = vector.load %arg7[%c3_116, %c0_117] : memref<40x128xbf16, #tpu.memory_space<vmem>>, vector<16x128xbf16>
    %c4_118 = arith.constant 4 : index
    %c0_119 = arith.constant 0 : index
    %134 = vector.load %arg7[%c4_118, %c0_119] : memref<40x128xbf16, #tpu.memory_space<vmem>>, vector<16x128xbf16>
    %c5_120 = arith.constant 5 : index
    %c0_121 = arith.constant 0 : index
    %135 = vector.load %arg7[%c5_120, %c0_121] : memref<40x128xbf16, #tpu.memory_space<vmem>>, vector<16x128xbf16>
    %c6_122 = arith.constant 6 : index
    %c0_123 = arith.constant 0 : index
    %136 = vector.load %arg7[%c6_122, %c0_123] : memref<40x128xbf16, #tpu.memory_space<vmem>>, vector<16x128xbf16>
    %137 = tpu.concatenate %130, %131, %132, %133, %134, %135, %136 in 1 : vector<16x128xbf16>, vector<16x128xbf16>, vector<16x128xbf16>, vector<16x128xbf16>, vector<16x128xbf16>, vector<16x128xbf16>, vector<16x128xbf16> -> vector<16x896xbf16>
    %c3_124 = arith.constant 3 : index
    %c0_125 = arith.constant 0 : index
    %c0_126 = arith.constant 0 : index
    %138 = vector.load %arg3[%c3_124, %c0_125, %c0_126] : memref<4x896x128xbf16, #tpu.memory_space<vmem>>, vector<1x896x128xbf16>
    %139 = vector.shape_cast %138 : vector<1x896x128xbf16> to vector<896x128xbf16>
    %cst_127 = arith.constant dense<0.000000e+00> : vector<16x128xf32>
    %140 = tpu.matmul %137, %139, %cst_127 {dimension_numbers = #tpu.dot_dimension_numbers<[1], [0], [0], [1], [0, 0, 1, 1], [], []>} : vector<16x896xbf16>, vector<896x128xbf16>, vector<16x128xf32> -> vector<16x128xf32>
    %c3_128 = arith.constant 3 : index
    %c0_129 = arith.constant 0 : index
    %c0_130 = arith.constant 0 : index
    %141 = vector.load %arg4[%c3_128, %c0_129, %c0_130] : memref<4x1x128xf32, #tpu.memory_space<vmem>>, vector<1x1x128xf32>
    %142 = vector.shape_cast %141 : vector<1x1x128xf32> to vector<1x128xf32>
    %143 = vector.broadcast %142 : vector<1x128xf32> to vector<16x128xf32>
    %144 = arith.mulf %140, %143 : vector<16x128xf32>
    %c3_131 = arith.constant 3 : index
    %c0_132 = arith.constant 0 : index
    %c0_133 = arith.constant 0 : index
    %145 = vector.load %arg5[%c3_131, %c0_132, %c0_133] : memref<4x1x128xf32, #tpu.memory_space<vmem>>, vector<1x1x128xf32>
    %146 = vector.shape_cast %145 : vector<1x1x128xf32> to vector<1x128xf32>
    %147 = vector.broadcast %146 : vector<1x128xf32> to vector<16x128xf32>
    %148 = arith.addf %144, %147 : vector<16x128xf32>
    %cst_134 = arith.constant 5.000000e-01 : f32
    %149 = vector.broadcast %cst_134 : f32 to vector<16x128xf32>
    %150 = arith.mulf %149, %148 : vector<16x128xf32>
    %151 = arith.mulf %148, %148 : vector<16x128xf32>
    %152 = arith.mulf %151, %148 : vector<16x128xf32>
    %cst_135 = arith.constant 4.471500e-02 : f32
    %153 = vector.broadcast %cst_135 : f32 to vector<16x128xf32>
    %154 = arith.mulf %153, %152 : vector<16x128xf32>
    %155 = arith.addf %148, %154 : vector<16x128xf32>
    %cst_136 = arith.constant 0.797884583 : f32
    %156 = vector.broadcast %cst_136 : f32 to vector<16x128xf32>
    %157 = arith.mulf %156, %155 : vector<16x128xf32>
    %158 = math.tanh %157 : vector<16x128xf32>
    %cst_137 = arith.constant 1.000000e+00 : f32
    %159 = vector.broadcast %cst_137 : f32 to vector<16x128xf32>
    %160 = arith.addf %159, %158 : vector<16x128xf32>
    %161 = arith.mulf %150, %160 : vector<16x128xf32>
    %162 = tpu.transpose %161, [1, 0] : vector<16x128xf32> -> vector<128x16xf32>
    %c0_138 = arith.constant 0 : index
    %c0_139 = arith.constant 0 : index
    %c0_140 = arith.constant 0 : index
    %163 = vector.load %arg6[%c0_138, %c0_139, %c0_140] : memref<1x128x16xf32, #tpu.memory_space<vmem>>, vector<1x128x16xf32>
    %164 = vector.shape_cast %163 : vector<1x128x16xf32> to vector<128x16xf32>
    %165 = vector.shape_cast %162 : vector<128x16xf32> to vector<1x128x16xf32>
    tpu.vector_store %arg6[%c0_138, %c0_139, %c0_140], %165 {strides = array<i32>} : memref<1x128x16xf32, #tpu.memory_space<vmem>>, vector<1x128x16xf32>,
    return
  }
  func.func @transform_0(%arg0: i32, %arg1: i32) -> (i32, i32, i32, i32) {
    %c0_i32 = arith.constant 0 : i32
    %c0_i32_0 = arith.constant 0 : i32
    %c0_i32_1 = arith.constant 0 : i32
    return %arg0, %arg1, %c0_i32, %c0_i32_0 : i32, i32, i32, i32
  }
  func.func @transform_1(%arg0: i32, %arg1: i32) -> (i32, i32, i32) {
    %c0_i32 = arith.constant 0 : i32
    %c0_i32_0 = arith.constant 0 : i32
    %c0_i32_1 = arith.constant 0 : i32
    %c0_i32_2 = arith.constant 0 : i32
    return %c0_i32, %c0_i32_0, %c0_i32_1 : i32, i32, i32
  }
  func.func @transform_2(%arg0: i32, %arg1: i32) -> (i32, i32, i32) {
    %c0_i32 = arith.constant 0 : i32
    %c0_i32_0 = arith.constant 0 : i32
    %c0_i32_1 = arith.constant 0 : i32
    %c0_i32_2 = arith.constant 0 : i32
    return %c0_i32, %c0_i32_0, %c0_i32_1 : i32, i32, i32
  }
  func.func @transform_3(%arg0: i32, %arg1: i32) -> (i32, i32, i32) {
    %c0_i32 = arith.constant 0 : i32
    %c0_i32_0 = arith.constant 0 : i32
    %c0_i32_1 = arith.constant 0 : i32
    %c0_i32_2 = arith.constant 0 : i32
    return %c0_i32, %c0_i32_0, %c0_i32_1 : i32, i32, i32
  }
  func.func @transform_4(%arg0: i32, %arg1: i32) -> (i32, i32, i32) {
    %c0_i32 = arith.constant 0 : i32
    %c0_i32_0 = arith.constant 0 : i32
    return %arg0, %c0_i32, %arg1 : i32, i32, i32
  }
}

</mosaic_0001>

<llo_original>
// kernel: tpu_custom_call.1
$region0: #{tpu_custom_call.1}
  #allocation0 [shape = 'u32[]', space=smem, size = 0x4, offset = 0x4, fixed_abs, tag = 'smem constant byte address 0x4 - core index']
  #allocation1 [shape = 'u32[144,128]{1,0:T(1,128)}', space=vmem, size = 0x12000, scoped, tag = 'internal scratch']
  #allocation2 [shape = 'bf16[40,128]{1,0:T(8,128)(2,1)}', space=vmem, size = 0x2800, scoped, tag = 'scratch operand']
  #allocation3 [shape = 'bf16[40,128]{1,0:T(8,128)(2,1)}', space=vmem, size = 0x2800, scoped, tag = 'scratch operand']
  %s0 = inlined_call_operand.hbm [shape: bf16[2,1,40,128], index: 0, kind: input, shape index: {}]
  %s1 = inlined_call_operand.hbm [shape: bf16[4,896,128], index: 1, kind: input, shape index: {}]
  %s2 = inlined_call_operand.hbm [shape: f32[4,1,128], index: 2, kind: input, shape index: {}]
  %s3 = inlined_call_operand.vmem [shape: f32[4,1,128], index: 3, kind: input, shape index: {}]
  %s4 = inlined_call_operand.vmem [shape: f32[2,128,16], index: 4, kind: output, shape index: {}]
  %s5 = sld [smem:[#allocation0]]
  $region73: #{tpu_custom_call.1} parent=0
    _
  %s7 = ssub.s32 1, %s5
  %s8 = scalar_select 0, %s7, %s5
  $region1: #{tpu_custom_call.1} parent=0
    #allocation4 [shape = 'u8[20480]{0}', space=vmem, size = 0x5000, scoped, tag = 'input window, operand 0']
    #allocation5 [shape = 's32[2]{0}', space=sflag, size = 0x8, scoped, tag = 'scoped memory for tpu_custom_call.1']
    #allocation6 [shape = 'u8[917504]{0}', space=vmem, size = 0xe0000, scoped, tag = 'input window, operand 1, single buffered']
    #allocation7 [shape = 's32[1]{0}', space=sflag, size = 0x4, scoped, tag = 'scoped memory for tpu_custom_call.1']
    #allocation8 [shape = 'u8[2048]{0}', space=vmem, size = 0x800, scoped, tag = 'input window, operand 2, single buffered']
    %9 = vsyncpa [#allocation5], 0
    %s10 = scalar_lea.sflag [#allocation5], 1
    %11 = vsyncpa %s10, 0
    %12 = vsyncpa [#allocation7], 0
    loop: start=0, step=1, limit=4
    $region2: #{tpu_custom_call.1} parent=1 // loop_pre_header
      _
    $region3: #{tpu_custom_call.1} parent=1 // loop_header
      %s14 = sphi 0, %s18
      %p15 = scmp.ge.s32.totalorder %s14, 4
      %s21 = sphi 0, %s33
      %s22 = sphi 0, %s29
      %s23 = sphi 0, %s21
      %s24 = sphi 0, %s22
      %s25 = sphi 0, %s23
      %s26 = sphi 0, %s24
      %s38 = sphi 0, %s40
      %s41 = sphi 0, %s38
      %s42 = sphi 0, %s41
      %s58 = sphi 0, %s42
      %s62 = sphi 0, %s62
      %s64 = sphi 0, %s62
      %s65 = sphi 0, %s64
      %s79 = sphi 0, %s65
      %s83 = sphi 0, %s83
      %s85 = sphi 0, %s83
      %s86 = sphi 0, %s85
      %s100 = sphi 0, %s86
      %s104 = sphi 0, %s104
      %s106 = sphi 0, %s104
      %s107 = sphi 0, %s106
      %s121 = sphi 0, %s107
      %s129 = sphi 0, %s131
      %s132 = sphi 0, %s129
      %s133 = sphi 0, %s132
      %s149 = sphi 0, %s133
    $region4: #{tpu_custom_call.1} parent=1 // loop_header_branch
      %17 = sbr.rel (%p15) target = $region8
    $region5: #{tpu_custom_call.1} parent=1 // loop_body
      %s19 = ssub.s32 %s14, 1
      %s20 = ssub.s32 %s14, 2
      %s27 = sadd.s32 1, %s22
      %p28 = scmp.ge.s32.totalorder %s27, 1
      %s29 = scalar_select %p28, 0, %s27
      %s30 = sadd.s32 1, %s21
      %s31 = scalar_select %p28, %s30, %s21
      %p32 = scmp.ge.s32.totalorder %s31, 2
      %s33 = scalar_select %p32, 0, %s31
      %s34 = ssub.s32 %s21, %s33
      %s35 = ssub.s32 %s22, %s29
      %s36 = sor.u32 %s34, %s35
      %p37 = scmp.eq.s32.totalorder %s36, 0
      %s39 = sadd.s32 %s38, 1
      %s40 = scalar_select %p37, %s38, %s39
      %p43 = pneg %p37
      %p44 = scmp.eq.s32.totalorder %s14, 1
      %p45 = por %p43, %p44
      %p46 = scmp.ne.s32.totalorder %s38, %s41
      %p47 = scmp.eq.s32.totalorder %s14, 0
      %p48 = por %p46, %p47
      %p49 = scmp.ne.s32.totalorder %s38, %s41
      %p50 = scmp.eq.s32.totalorder %s19, 1
      %p51 = por %p49, %p50
      %p52 = scmp.ne.s32.totalorder %s41, %s42
      %p53 = scmp.eq.s32.totalorder %s19, 0
      %p54 = por %p52, %p53
      %p55 = scmp.ne.s32.totalorder %s41, %s42
      %p56 = scmp.eq.s32.totalorder %s20, 1
      %p57 = por %p55, %p56
      %p59 = scmp.ne.s32.totalorder %s42, %s58
      %p60 = scmp.eq.s32.totalorder %s20, 0
      %p61 = por %p59, %p60
      %s63 = sadd.s32 %s62, 1
      %p66 = scmp.eq.s32.totalorder %s14, 1
      %p67 = scmp.ne.s32.totalorder %s62, %s64
      %p68 = scmp.eq.s32.totalorder %s14, 0
      %p69 = por %p67, %p68
      %p70 = scmp.ne.s32.totalorder %s62, %s64
      %p71 = scmp.eq.s32.totalorder %s19, 1
      %p72 = por %p70, %p71
      %p73 = scmp.ne.s32.totalorder %s64, %s65
      %p74 = scmp.eq.s32.totalorder %s19, 0
      %p75 = por %p73, %p74
      %p76 = scmp.ne.s32.totalorder %s64, %s65
      %p77 = scmp.eq.s32.totalorder %s20, 1
      %p78 = por %p76, %p77
      %p80 = scmp.ne.s32.totalorder %s65, %s79
      %p81 = scmp.eq.s32.totalorder %s20, 0
      %p82 = por %p80, %p81
      %s84 = sadd.s32 %s83, 1
      %p87 = scmp.eq.s32.totalorder %s14, 1
      %p88 = scmp.ne.s32.totalorder %s83, %s85
      %p89 = scmp.eq.s32.totalorder %s14, 0
      %p90 = por %p88, %p89
      %p91 = scmp.ne.s32.totalorder %s83, %s85
      %p92 = scmp.eq.s32.totalorder %s19, 1
      %p93 = por %p91, %p92
      %p94 = scmp.ne.s32.totalorder %s85, %s86
      %p95 = scmp.eq.s32.totalorder %s19, 0
      %p96 = por %p94, %p95
      %p97 = scmp.ne.s32.totalorder %s85, %s86
      %p98 = scmp.eq.s32.totalorder %s20, 1
      %p99 = por %p97, %p98
      %p101 = scmp.ne.s32.totalorder %s86, %s100
      %p102 = scmp.eq.s32.totalorder %s20, 0
      %p103 = por %p101, %p102
      %s105 = sadd.s32 %s104, 1
      %p108 = scmp.eq.s32.totalorder %s14, 1
      %p109 = scmp.ne.s32.totalorder %s104, %s106
      %p110 = scmp.eq.s32.totalorder %s14, 0
      %p111 = por %p109, %p110
      %p112 = scmp.ne.s32.totalorder %s104, %s106
      %p113 = scmp.eq.s32.totalorder %s19, 1
      %p114 = por %p112, %p113
      %p115 = scmp.ne.s32.totalorder %s106, %s107
      %p116 = scmp.eq.s32.totalorder %s19, 0
      %p117 = por %p115, %p116
      %p118 = scmp.ne.s32.totalorder %s106, %s107
      %p119 = scmp.eq.s32.totalorder %s20, 1
      %p120 = por %p118, %p119
      %p122 = scmp.ne.s32.totalorder %s107, %s121
      %p123 = scmp.eq.s32.totalorder %s20, 0
      %p124 = por %p122, %p123
      %s125 = ssub.s32 %s21, %s33
      %s126 = ssub.s32 %s22, %s29
      %s127 = sor.u32 %s125, %s126
      %p128 = scmp.eq.s32.totalorder %s127, 0
      %s130 = sadd.s32 %s129, 1
      %s131 = scalar_select %p128, %s129, %s130
      %p134 = pneg %p128
      %p135 = scmp.eq.s32.totalorder %s14, 1
      %p136 = por %p134, %p135
      %p137 = scmp.ne.s32.totalorder %s129, %s132
      %p138 = scmp.eq.s32.totalorder %s14, 0
      %p139 = por %p137, %p138
      %p140 = scmp.ne.s32.totalorder %s129, %s132
      %p141 = scmp.eq.s32.totalorder %s19, 1
      %p142 = por %p140, %p141
      %p143 = scmp.ne.s32.totalorder %s132, %s133
      %p144 = scmp.eq.s32.totalorder %s19, 0
      %p145 = por %p143, %p144
      %p146 = scmp.ne.s32.totalorder %s132, %s133
      %p147 = scmp.eq.s32.totalorder %s20, 1
      %p148 = por %p146, %p147
      %p150 = scmp.ne.s32.totalorder %s133, %s149
      %p151 = scmp.eq.s32.totalorder %s20, 0
      %p152 = por %p150, %p151
      %p153 = scmp.le.s32.totalorder 1, %s14
      %p154 = scmp.lt.s32.totalorder %s14, 3
      %p155 = pnand %p153, %p154
      %p156 = pneg %p155
      // Predicated region
      $region9: #{tpu_custom_call.1} parent=5 // pred_check
        _
      $region10: #{tpu_custom_call.1} parent=5 // pred_check_branch
        %158 = sbr.rel (%p155) target = $region12
      $region11: #{tpu_custom_call.1} parent=5 // pred_region
        %s159 = ssub.s32 %s14, 1
        // Predicated region
        $region13: #{tpu_custom_call.1} parent=11 // pred_check
          %p160 = pneg %p75
        $region14: #{tpu_custom_call.1} parent=11 // pred_check_branch
          %162 = sbr.rel (%p160) target = $region16
        $region15: #{tpu_custom_call.1} parent=11 // pred_region
          %s164 = ssub.s32 28672, 28672
          %165 = vsyncadd [#allocation7], %s164
          %s166 = sshll.u32 [#allocation6], 4
          %s167 = int_to_ptr.vmem [resolvable:$true] %s166
          %172 = dma.hbm_to_vmem [thread:$0]  %s1, 28672, %s167, [#allocation7], 64, 64, 4
        $region16: #{tpu_custom_call.1} parent=11 // pred_fallthru
          _
        // Predicated region
        $region17: #{tpu_custom_call.1} parent=11 // pred_check
          %p173 = pneg %p96
        $region18: #{tpu_custom_call.1} parent=11 // pred_check_branch
          %175 = sbr.rel (%p173) target = $region20
        $region19: #{tpu_custom_call.1} parent=11 // pred_region
          %s177 = ssub.s32 64, 64
          %178 = vsyncadd [#allocation7], %s177
          %s179 = sshll.u32 [#allocation8], 4
          %s180 = int_to_ptr.vmem [resolvable:$true] %s179
          %185 = dma.hbm_to_vmem [thread:$0]  %s2, 64, %s180, [#allocation7], 16, 16, 1
        $region20: #{tpu_custom_call.1} parent=11 // pred_fallthru
          _
        // Predicated region
        $region21: #{tpu_custom_call.1} parent=11 // pred_check
          %p186 = pneg %p117
        $region22: #{tpu_custom_call.1} parent=11 // pred_check_branch
          %188 = sbr.rel (%p186) target = $region24
        $region23: #{tpu_custom_call.1} parent=11 // pred_region
          _
        $region24: #{tpu_custom_call.1} parent=11 // pred_fallthru
          _
      $region12: #{tpu_custom_call.1} parent=5 // pred_fallthru
        _
      %p189 = scmp.lt.s32.totalorder %s14, 2
      // Predicated region
      $region25: #{tpu_custom_call.1} parent=5 // pred_check
        %p190 = pneg %p189
      $region26: #{tpu_custom_call.1} parent=5 // pred_check_branch
        %192 = sbr.rel (%p190) target = $region28
      $region27: #{tpu_custom_call.1} parent=5 // pred_region
        // Predicated region
        $region29: #{tpu_custom_call.1} parent=27 // pred_check
          %p193 = pneg %p48
        $region30: #{tpu_custom_call.1} parent=27 // pred_check_branch
          %195 = sbr.rel (%p193) target = $region32
        $region31: #{tpu_custom_call.1} parent=27 // pred_region
          %s196 = sand.u32 %s38, 1
          %s197 = scalar_lea.sflag [#allocation5], %s196
          %s198 = sand.u32 %s38, 1
          %s199 = smul.addr %s198, 20
          %s200 = scalar_lea.vmem [#allocation4], %s199
          %s202 = ssub.s32 320, 320
          %203 = vsyncadd %s197, %s202
          %s204 = smul.addr %s22, 5
          %s205 = smul.addr %s21, 5
          %s206 = sadd.s32 %s204, %s205
          %s207 = smul.addr %s206, 64
          %s208 = scalar_lea.hbm %s0, %s207
          %s209 = sshll.u32 %s200, 4
          %s210 = int_to_ptr.vmem [resolvable:$true] %s209
          %215 = dma.hbm_to_vmem [thread:$0]  %s208, 320, %s210, %s197, 64, 64, 4
        $region32: #{tpu_custom_call.1} parent=27 // pred_fallthru
          _
      $region28: #{tpu_custom_call.1} parent=5 // pred_fallthru
        _
      %p216 = scmp.le.s32.totalorder 1, %s14
      %p217 = scmp.lt.s32.totalorder %s14, 3
      %p218 = pnand %p216, %p217
      %p219 = pneg %p218
      // Predicated region
      $region33: #{tpu_custom_call.1} parent=5 // pred_check
        _
      $region34: #{tpu_custom_call.1} parent=5 // pred_check_branch
        %221 = sbr.rel (%p218) target = $region36
      $region35: #{tpu_custom_call.1} parent=5 // pred_region
        %s222 = ssub.s32 %s14, 1
        %s223 = sand.u32 %s41, 1
        %s224 = scalar_lea.sflag [#allocation5], %s223
        %s225 = sand.u32 %s41, 1
        %s226 = smul.addr %s225, 20
        %s227 = scalar_lea.vmem [#allocation4], %s226
        // Predicated region
        $region37: #{tpu_custom_call.1} parent=35 // pred_check
          %p228 = pneg %p54
        $region38: #{tpu_custom_call.1} parent=35 // pred_check_branch
          %230 = sbr.rel (%p228) target = $region40
        $region39: #{tpu_custom_call.1} parent=35 // pred_region
          %231 = dma.done %s224, 320
        $region40: #{tpu_custom_call.1} parent=35 // pred_fallthru
          _
        // Predicated region
        $region41: #{tpu_custom_call.1} parent=35 // pred_check
          %p232 = pneg %p75
        $region42: #{tpu_custom_call.1} parent=35 // pred_check_branch
          %234 = sbr.rel (%p232) target = $region44
        $region43: #{tpu_custom_call.1} parent=35 // pred_region
          %235 = dma.done [#allocation7], 28672
        $region44: #{tpu_custom_call.1} parent=35 // pred_fallthru
          _
        // Predicated region
        $region45: #{tpu_custom_call.1} parent=35 // pred_check
          %p236 = pneg %p96
        $region46: #{tpu_custom_call.1} parent=35 // pred_check_branch
          %238 = sbr.rel (%p236) target = $region48
        $region47: #{tpu_custom_call.1} parent=35 // pred_region
          %239 = dma.done [#allocation7], 64
        $region48: #{tpu_custom_call.1} parent=35 // pred_fallthru
          _
        %s240 = sand.u32 %s41, 1
        %s241 = scalar_lea.sflag [#allocation5], %s240
        %s242 = sand.u32 %s41, 1
        %s243 = smul.addr %s242, 20
        %s244 = scalar_lea.vmem [#allocation4], %s243
        %p245 = pneg %p54
        %p246 = pneg %p51
        %p247 = pneg %p75
        %p248 = pneg %p72
        %p249 = pneg %p96
        %p250 = pneg %p93
        %p251 = pneg %p117
        %p252 = pneg %p114
        %p253 = pneg %p145
        %p254 = pneg %p142
        %p255 = scmp.lt.s32.totalorder %s23, 1
        %s256 = scalar_select %p255, %s23, 1
        %p257 = scmp.lt.s32.totalorder %s24, 0
        %s258 = scalar_select %p257, %s24, 0
        %s259 = smul.addr %s256, 16
        %s260 = sadd.s32 %s258, %s259
        %s261 = smul.addr %s260, 8
        %s262 = scalar_lea.vmem %s4, %s261
        %p263 = scmp.lt.s32.totalorder %s23, 1
        %s264 = scalar_select %p263, %s23, 1
        %p265 = scmp.lt.s32.totalorder %s24, 0
        %s266 = scalar_select %p265, %s24, 0
        %s267 = smul.addr %s264, 16
        %s268 = sadd.s32 %s266, %s267
        %s269 = smul.addr %s268, 8
        %s270 = scalar_lea.vmem %s4, %s269
        %v272 = vld [vmem:[%s227] sm:$0xf]
        %v273 = vld [vmem:[%s227 + $0x4] sm:$0xf]
        %v274 = vld [vmem:[%s227 + $0x8] sm:$0xf]
        %v275 = vld [vmem:[%s227 + $0xc] sm:$0xf]
        %v276 = vld [vmem:[%s227 + $0x10] sm:$0x1]
        %v277 = vld [vmem:[%s227 + $0x10] sm:$0x3]
        %v278 = vld [vmem:[%s227] sm:$0xe]
        %v279 = vld [vmem:[%s227 + $0x10] sm:$0x7]
        %v280 = vld [vmem:[%s227] sm:$0xc]
        %v281 = vld [vmem:[%s227 + $0x10] sm:$0xf]
        %v282 = vld [vmem:[%s227] sm:$0x8]
        %v288 = vunpack.c.l.b16 %v272
        %v289 = vunpack.c.l.b16 %v273
        %v290 = vunpack.c.l.b16 %v274
        %v291 = vunpack.c.l.b16 %v275
        %v292 = vunpack.c.l.b16 %v276
        %v293 = vpack.c.b16 %v289, %v288
        %v294 = vpack.c.b16 %v291, %v290
        %v295 = vpack.c.b16 %v292, %v292
        %v300 = vunpack.c.l.b16 %v277
        %v301 = vpack.c.b16 %v300, %v300
        %vm302 = vsmask.f32 7424
        %v304 = vshrl.u32 %v293, 16
        %v306 = vshll.u32 %v293, 16
        %v308 = vrot.slane %v306, 1
        %v309 = vor.u32 %v304, %v308
        %v311 = vshll.u32 %v294, 16
        %v313 = vrot.slane %v311, 1
        %v314 = vsel %vm302, %v309, %v313
        %v315 = vshrl.u32 %v294, 16
        %v317 = vor.u32 %v315, %v313
        %v319 = vshll.u32 %v301, 16
        %v321 = vrot.slane %v319, 1
        %v322 = vsel %vm302, %v317, %v321
        %v323 = vshrl.u32 %v301, 16
        %v325 = vor.u32 %v323, %v321
        %v330 = vunpack.c.l.b16 %v278
        %v331 = vpack.c.b16 %v289, %v330
        %vm332 = vcmask 1046528
        %v333 = vrot.slane %v331, 1
        %v334 = vrot.slane %v294, 1
        %v335 = vsel %vm332, %v333, %v334
        %v336 = vrot.slane %v301, 1
        %v337 = vsel %vm332, %v334, %v336
        %v342 = vunpack.c.l.b16 %v279
        %v343 = vpack.c.b16 %v342, %v342
        %vm344 = vsmask.f32 6400
        %v346 = vshrl.u32 %v331, 16
        %v348 = vrot.slane %v346, 1
        %v349 = vshll.u32 %v331, 16
        %v351 = vrot.slane %v349, 2
        %v352 = vor.u32 %v348, %v351
        %v353 = vrot.slane %v315, 1
        %v354 = vrot.slane %v311, 2
        %v355 = vor.u32 %v353, %v354
        %v356 = vsel %vm344, %v352, %v355
        %v358 = vshrl.u32 %v343, 16
        %v360 = vrot.slane %v358, 1
        %v361 = vshll.u32 %v343, 16
        %v363 = vrot.slane %v361, 2
        %v364 = vor.u32 %v360, %v363
        %v365 = vsel %vm344, %v355, %v364
        %v370 = vunpack.c.l.b16 %v280
        %v371 = vpack.c.b16 %v289, %v370
        %vm372 = vcmask 1045504
        %v373 = vrot.slane %v371, 2
        %v374 = vrot.slane %v294, 2
        %v375 = vsel %vm372, %v373, %v374
        %v376 = vrot.slane %v343, 2
        %v377 = vsel %vm372, %v374, %v376
        %v382 = vunpack.c.l.b16 %v281
        %v383 = vpack.c.b16 %v382, %v382
        %vm384 = vsmask.f32 5376
        %v386 = vshrl.u32 %v371, 16
        %v388 = vrot.slane %v386, 2
        %v389 = vshll.u32 %v371, 16
        %v391 = vrot.slane %v389, 3
        %v392 = vor.u32 %v388, %v391
        %v393 = vrot.slane %v315, 2
        %v394 = vrot.slane %v311, 3
        %v395 = vor.u32 %v393, %v394
        %v396 = vsel %vm384, %v392, %v395
        %v398 = vshrl.u32 %v383, 16
        %v400 = vrot.slane %v398, 2
        %v401 = vshll.u32 %v383, 16
        %v403 = vrot.slane %v401, 3
        %v404 = vor.u32 %v400, %v403
        %v405 = vsel %vm384, %v395, %v404
        %v410 = vunpack.c.l.b16 %v282
        %v411 = vpack.c.b16 %v289, %v410
        %vm412 = vcmask 1044480
        %v413 = vrot.slane %v411, 3
        %v414 = vrot.slane %v294, 3
        %v415 = vsel %vm412, %v413, %v414
        %v416 = vrot.slane %v383, 3
        %v417 = vsel %vm412, %v414, %v416
        %v421 = vld [vmem:[#allocation6] sm:$0xf]
        %v422 = vld [vmem:[#allocation6 + $0x4] sm:$0xf]
        %v423 = vld [vmem:[#allocation6 + $0x8] sm:$0xf]
        %v424 = vld [vmem:[#allocation6 + $0xc] sm:$0xf]
        %v425 = vld [vmem:[#allocation6 + $0x10] sm:$0xf]
        %v426 = vld [vmem:[#allocation6 + $0x14] sm:$0xf]
        %v427 = vld [vmem:[#allocation6 + $0x18] sm:$0xf]
        %v428 = vld [vmem:[#allocation6 + $0x1c] sm:$0xf]
        %v429 = vld [vmem:[#allocation6 + $0x20] sm:$0xf]
        %v430 = vld [vmem:[#allocation6 + $0x24] sm:$0xf]
        %v431 = vld [vmem:[#allocation6 + $0x28] sm:$0xf]
        %v432 = vld [vmem:[#allocation6 + $0x2c] sm:$0xf]
        %v433 = vld [vmem:[#allocation6 + $0x30] sm:$0xf]
        %v434 = vld [vmem:[#allocation6 + $0x34] sm:$0xf]
        %v435 = vld [vmem:[#allocation6 + $0x38] sm:$0xf]
        %v436 = vld [vmem:[#allocation6 + $0x3c] sm:$0xf]
        %v437 = vld [vmem:[#allocation6 + $0x40] sm:$0xf]
        %v438 = vld [vmem:[#allocation6 + $0x44] sm:$0xf]
        %v439 = vld [vmem:[#allocation6 + $0x48] sm:$0xf]
        %v440 = vld [vmem:[#allocation6 + $0x4c] sm:$0xf]
        %v441 = vld [vmem:[#allocation6 + $0x50] sm:$0xf]
        %v442 = vld [vmem:[#allocation6 + $0x54] sm:$0xf]
        %v443 = vld [vmem:[#allocation6 + $0x58] sm:$0xf]
        %v444 = vld [vmem:[#allocation6 + $0x5c] sm:$0xf]
        %v445 = vld [vmem:[#allocation6 + $0x60] sm:$0xf]
        %v446 = vld [vmem:[#allocation6 + $0x64] sm:$0xf]
        %v447 = vld [vmem:[#allocation6 + $0x68] sm:$0xf]
        %v448 = vld [vmem:[#allocation6 + $0x6c] sm:$0xf]
        %v449 = vld [vmem:[#allocation6 + $0x70] sm:$0xf]
        %v450 = vld [vmem:[#allocation6 + $0x74] sm:$0xf]
        %v451 = vld [vmem:[#allocation6 + $0x78] sm:$0xf]
        %v452 = vld [vmem:[#allocation6 + $0x7c] sm:$0xf]
        %v453 = vld [vmem:[#allocation6 + $0x80] sm:$0xf]
        %v454 = vld [vmem:[#allocation6 + $0x84] sm:$0xf]
        %v455 = vld [vmem:[#allocation6 + $0x88] sm:$0xf]
        %v456 = vld [vmem:[#allocation6 + $0x8c] sm:$0xf]
        %v457 = vld [vmem:[#allocation6 + $0x90] sm:$0xf]
        %v458 = vld [vmem:[#allocation6 + $0x94] sm:$0xf]
        %v459 = vld [vmem:[#allocation6 + $0x98] sm:$0xf]
        %v460 = vld [vmem:[#allocation6 + $0x9c] sm:$0xf]
        %v461 = vld [vmem:[#allocation6 + $0xa0] sm:$0xf]
        %v462 = vld [vmem:[#allocation6 + $0xa4] sm:$0xf]
        %v463 = vld [vmem:[#allocation6 + $0xa8] sm:$0xf]
        %v464 = vld [vmem:[#allocation6 + $0xac] sm:$0xf]
        %v465 = vld [vmem:[#allocation6 + $0xb0] sm:$0xf]
        %v466 = vld [vmem:[#allocation6 + $0xb4] sm:$0xf]
        %v467 = vld [vmem:[#allocation6 + $0xb8] sm:$0xf]
        %v468 = vld [vmem:[#allocation6 + $0xbc] sm:$0xf]
        %v469 = vld [vmem:[#allocation6 + $0xc0] sm:$0xf]
        %v470 = vld [vmem:[#allocation6 + $0xc4] sm:$0xf]
        %v471 = vld [vmem:[#allocation6 + $0xc8] sm:$0xf]
        %v472 = vld [vmem:[#allocation6 + $0xcc] sm:$0xf]
        %v473 = vld [vmem:[#allocation6 + $0xd0] sm:$0xf]
        %v474 = vld [vmem:[#allocation6 + $0xd4] sm:$0xf]
        %v475 = vld [vmem:[#allocation6 + $0xd8] sm:$0xf]
        %v476 = vld [vmem:[#allocation6 + $0xdc] sm:$0xf]
        %v477 = vld [vmem:[#allocation6 + $0xe0] sm:$0xf]
        %v478 = vld [vmem:[#allocation6 + $0xe4] sm:$0xf]
        %v479 = vld [vmem:[#allocation6 + $0xe8] sm:$0xf]
        %v480 = vld [vmem:[#allocation6 + $0xec] sm:$0xf]
        %v481 = vld [vmem:[#allocation6 + $0xf0] sm:$0xf]
        %v482 = vld [vmem:[#allocation6 + $0xf4] sm:$0xf]
        %v483 = vld [vmem:[#allocation6 + $0xf8] sm:$0xf]
        %v484 = vld [vmem:[#allocation6 + $0xfc] sm:$0xf]
        %v485 = vld [vmem:[#allocation6 + $0x100] sm:$0xf]
        %v486 = vld [vmem:[#allocation6 + $0x104] sm:$0xf]
        %v487 = vld [vmem:[#allocation6 + $0x108] sm:$0xf]
        %v488 = vld [vmem:[#allocation6 + $0x10c] sm:$0xf]
        %v489 = vld [vmem:[#allocation6 + $0x110] sm:$0xf]
        %v490 = vld [vmem:[#allocation6 + $0x114] sm:$0xf]
        %v491 = vld [vmem:[#allocation6 + $0x118] sm:$0xf]
        %v492 = vld [vmem:[#allocation6 + $0x11c] sm:$0xf]
        %v493 = vld [vmem:[#allocation6 + $0x120] sm:$0xf]
        %v494 = vld [vmem:[#allocation6 + $0x124] sm:$0xf]
        %v495 = vld [vmem:[#allocation6 + $0x128] sm:$0xf]
        %v496 = vld [vmem:[#allocation6 + $0x12c] sm:$0xf]
        %v497 = vld [vmem:[#allocation6 + $0x130] sm:$0xf]
        %v498 = vld [vmem:[#allocation6 + $0x134] sm:$0xf]
        %v499 = vld [vmem:[#allocation6 + $0x138] sm:$0xf]
        %v500 = vld [vmem:[#allocation6 + $0x13c] sm:$0xf]
        %v501 = vld [vmem:[#allocation6 + $0x140] sm:$0xf]
        %v502 = vld [vmem:[#allocation6 + $0x144] sm:$0xf]
        %v503 = vld [vmem:[#allocation6 + $0x148] sm:$0xf]
        %v504 = vld [vmem:[#allocation6 + $0x14c] sm:$0xf]
        %v505 = vld [vmem:[#allocation6 + $0x150] sm:$0xf]
        %v506 = vld [vmem:[#allocation6 + $0x154] sm:$0xf]
        %v507 = vld [vmem:[#allocation6 + $0x158] sm:$0xf]
        %v508 = vld [vmem:[#allocation6 + $0x15c] sm:$0xf]
        %v509 = vld [vmem:[#allocation6 + $0x160] sm:$0xf]
        %v510 = vld [vmem:[#allocation6 + $0x164] sm:$0xf]
        %v511 = vld [vmem:[#allocation6 + $0x168] sm:$0xf]
        %v512 = vld [vmem:[#allocation6 + $0x16c] sm:$0xf]
        %v513 = vld [vmem:[#allocation6 + $0x170] sm:$0xf]
        %v514 = vld [vmem:[#allocation6 + $0x174] sm:$0xf]
        %v515 = vld [vmem:[#allocation6 + $0x178] sm:$0xf]
        %v516 = vld [vmem:[#allocation6 + $0x17c] sm:$0xf]
        %v517 = vld [vmem:[#allocation6 + $0x180] sm:$0xf]
        %v518 = vld [vmem:[#allocation6 + $0x184] sm:$0xf]
        %v519 = vld [vmem:[#allocation6 + $0x188] sm:$0xf]
        %v520 = vld [vmem:[#allocation6 + $0x18c] sm:$0xf]
        %v521 = vld [vmem:[#allocation6 + $0x190] sm:$0xf]
        %v522 = vld [vmem:[#allocation6 + $0x194] sm:$0xf]
        %v523 = vld [vmem:[#allocation6 + $0x198] sm:$0xf]
        %v524 = vld [vmem:[#allocation6 + $0x19c] sm:$0xf]
        %v525 = vld [vmem:[#allocation6 + $0x1a0] sm:$0xf]
        %v526 = vld [vmem:[#allocation6 + $0x1a4] sm:$0xf]
        %v527 = vld [vmem:[#allocation6 + $0x1a8] sm:$0xf]
        %v528 = vld [vmem:[#allocation6 + $0x1ac] sm:$0xf]
        %v529 = vld [vmem:[#allocation6 + $0x1b0] sm:$0xf]
        %v530 = vld [vmem:[#allocation6 + $0x1b4] sm:$0xf]
        %v531 = vld [vmem:[#allocation6 + $0x1b8] sm:$0xf]
        %v532 = vld [vmem:[#allocation6 + $0x1bc] sm:$0xf]
        %v645 = vunpack.c.l.b16 %v421
        %v646 = vunpack.c.l.b16 %v422
        %v647 = vunpack.c.l.b16 %v423
        %v648 = vunpack.c.l.b16 %v424
        %v649 = vunpack.c.l.b16 %v425
        %v650 = vunpack.c.l.b16 %v426
        %v651 = vunpack.c.l.b16 %v427
        %v652 = vunpack.c.l.b16 %v428
        %v653 = vunpack.c.l.b16 %v429
        %v654 = vunpack.c.l.b16 %v430
        %v655 = vunpack.c.l.b16 %v431
        %v656 = vunpack.c.l.b16 %v432
        %v657 = vunpack.c.l.b16 %v433
        %v658 = vunpack.c.l.b16 %v434
        %v659 = vunpack.c.l.b16 %v435
        %v660 = vunpack.c.l.b16 %v436
        %v661 = vunpack.c.l.b16 %v437
        %v662 = vunpack.c.l.b16 %v438
        %v663 = vunpack.c.l.b16 %v439
        %v664 = vunpack.c.l.b16 %v440
        %v665 = vunpack.c.l.b16 %v441
        %v666 = vunpack.c.l.b16 %v442
        %v667 = vunpack.c.l.b16 %v443
        %v668 = vunpack.c.l.b16 %v444
        %v669 = vunpack.c.l.b16 %v445
        %v670 = vunpack.c.l.b16 %v446
        %v671 = vunpack.c.l.b16 %v447
        %v672 = vunpack.c.l.b16 %v448
        %v673 = vunpack.c.l.b16 %v449
        %v674 = vunpack.c.l.b16 %v450
        %v675 = vunpack.c.l.b16 %v451
        %v676 = vunpack.c.l.b16 %v452
        %v677 = vunpack.c.l.b16 %v453
        %v678 = vunpack.c.l.b16 %v454
        %v679 = vunpack.c.l.b16 %v455
        %v680 = vunpack.c.l.b16 %v456
        %v681 = vunpack.c.l.b16 %v457
        %v682 = vunpack.c.l.b16 %v458
        %v683 = vunpack.c.l.b16 %v459
        %v684 = vunpack.c.l.b16 %v460
        %v685 = vunpack.c.l.b16 %v461
        %v686 = vunpack.c.l.b16 %v462
        %v687 = vunpack.c.l.b16 %v463
        %v688 = vunpack.c.l.b16 %v464
        %v689 = vunpack.c.l.b16 %v465
        %v690 = vunpack.c.l.b16 %v466
        %v691 = vunpack.c.l.b16 %v467
        %v692 = vunpack.c.l.b16 %v468
        %v693 = vunpack.c.l.b16 %v469
        %v694 = vunpack.c.l.b16 %v470
        %v695 = vunpack.c.l.b16 %v471
        %v696 = vunpack.c.l.b16 %v472
        %v697 = vunpack.c.l.b16 %v473
        %v698 = vunpack.c.l.b16 %v474
        %v699 = vunpack.c.l.b16 %v475
        %v700 = vunpack.c.l.b16 %v476
        %v701 = vunpack.c.l.b16 %v477
        %v702 = vunpack.c.l.b16 %v478
        %v703 = vunpack.c.l.b16 %v479
        %v704 = vunpack.c.l.b16 %v480
        %v705 = vunpack.c.l.b16 %v481
        %v706 = vunpack.c.l.b16 %v482
        %v707 = vunpack.c.l.b16 %v483
        %v708 = vunpack.c.l.b16 %v484
        %v709 = vunpack.c.l.b16 %v485
        %v710 = vunpack.c.l.b16 %v486
        %v711 = vunpack.c.l.b16 %v487
        %v712 = vunpack.c.l.b16 %v488
        %v713 = vunpack.c.l.b16 %v489
        %v714 = vunpack.c.l.b16 %v490
        %v715 = vunpack.c.l.b16 %v491
        %v716 = vunpack.c.l.b16 %v492
        %v717 = vunpack.c.l.b16 %v493
        %v718 = vunpack.c.l.b16 %v494
        %v719 = vunpack.c.l.b16 %v495
        %v720 = vunpack.c.l.b16 %v496
        %v721 = vunpack.c.l.b16 %v497
        %v722 = vunpack.c.l.b16 %v498
        %v723 = vunpack.c.l.b16 %v499
        %v724 = vunpack.c.l.b16 %v500
        %v725 = vunpack.c.l.b16 %v501
        %v726 = vunpack.c.l.b16 %v502
        %v727 = vunpack.c.l.b16 %v503
        %v728 = vunpack.c.l.b16 %v504
        %v729 = vunpack.c.l.b16 %v505
        %v730 = vunpack.c.l.b16 %v506
        %v731 = vunpack.c.l.b16 %v507
        %v732 = vunpack.c.l.b16 %v508
        %v733 = vunpack.c.l.b16 %v509
        %v734 = vunpack.c.l.b16 %v510
        %v735 = vunpack.c.l.b16 %v511
        %v736 = vunpack.c.l.b16 %v512
        %v737 = vunpack.c.l.b16 %v513
        %v738 = vunpack.c.l.b16 %v514
        %v739 = vunpack.c.l.b16 %v515
        %v740 = vunpack.c.l.b16 %v516
        %v741 = vunpack.c.l.b16 %v517
        %v742 = vunpack.c.l.b16 %v518
        %v743 = vunpack.c.l.b16 %v519
        %v744 = vunpack.c.l.b16 %v520
        %v745 = vunpack.c.l.b16 %v521
        %v746 = vunpack.c.l.b16 %v522
        %v747 = vunpack.c.l.b16 %v523
        %v748 = vunpack.c.l.b16 %v524
        %v749 = vunpack.c.l.b16 %v525
        %v750 = vunpack.c.l.b16 %v526
        %v751 = vunpack.c.l.b16 %v527
        %v752 = vunpack.c.l.b16 %v528
        %v753 = vunpack.c.l.b16 %v529
        %v754 = vunpack.c.l.b16 %v530
        %v755 = vunpack.c.l.b16 %v531
        %v756 = vunpack.c.l.b16 %v532
        %v757 = vpack.c.b16 %v646, %v645
        %v758 = vpack.c.b16 %v648, %v647
        %v759 = vpack.c.b16 %v650, %v649
        %v760 = vpack.c.b16 %v652, %v651
        %v761 = vpack.c.b16 %v654, %v653
        %v762 = vpack.c.b16 %v656, %v655
        %v763 = vpack.c.b16 %v658, %v657
        %v764 = vpack.c.b16 %v660, %v659
        %v765 = vpack.c.b16 %v662, %v661
        %v766 = vpack.c.b16 %v664, %v663
        %v767 = vpack.c.b16 %v666, %v665
        %v768 = vpack.c.b16 %v668, %v667
        %v769 = vpack.c.b16 %v670, %v669
        %v770 = vpack.c.b16 %v672, %v671
        %v771 = vpack.c.b16 %v674, %v673
        %v772 = vpack.c.b16 %v676, %v675
        %v773 = vpack.c.b16 %v678, %v677
        %v774 = vpack.c.b16 %v680, %v679
        %v775 = vpack.c.b16 %v682, %v681
        %v776 = vpack.c.b16 %v684, %v683
        %v777 = vpack.c.b16 %v686, %v685
        %v778 = vpack.c.b16 %v688, %v687
        %v779 = vpack.c.b16 %v690, %v689
        %v780 = vpack.c.b16 %v692, %v691
        %v781 = vpack.c.b16 %v694, %v693
        %v782 = vpack.c.b16 %v696, %v695
        %v783 = vpack.c.b16 %v698, %v697
        %v784 = vpack.c.b16 %v700, %v699
        %v785 = vpack.c.b16 %v702, %v701
        %v786 = vpack.c.b16 %v704, %v703
        %v787 = vpack.c.b16 %v706, %v705
        %v788 = vpack.c.b16 %v708, %v707
        %v789 = vpack.c.b16 %v710, %v709
        %v790 = vpack.c.b16 %v712, %v711
        %v791 = vpack.c.b16 %v714, %v713
        %v792 = vpack.c.b16 %v716, %v715
        %v793 = vpack.c.b16 %v718, %v717
        %v794 = vpack.c.b16 %v720, %v719
        %v795 = vpack.c.b16 %v722, %v721
        %v796 = vpack.c.b16 %v724, %v723
        %v797 = vpack.c.b16 %v726, %v725
        %v798 = vpack.c.b16 %v728, %v727
        %v799 = vpack.c.b16 %v730, %v729
        %v800 = vpack.c.b16 %v732, %v731
        %v801 = vpack.c.b16 %v734, %v733
        %v802 = vpack.c.b16 %v736, %v735
        %v803 = vpack.c.b16 %v738, %v737
        %v804 = vpack.c.b16 %v740, %v739
        %v805 = vpack.c.b16 %v742, %v741
        %v806 = vpack.c.b16 %v744, %v743
        %v807 = vpack.c.b16 %v746, %v745
        %v808 = vpack.c.b16 %v748, %v747
        %v809 = vpack.c.b16 %v750, %v749
        %v810 = vpack.c.b16 %v752, %v751
        %v811 = vpack.c.b16 %v754, %v753
        %v812 = vpack.c.b16 %v756, %v755
        %869 = vmatprep.subr.bf16.mxu0 0
        %870 = vmatpush1.bf16.msra.mxu0 %v764
        %871 = vmatprep.subr.bf16.mxu0 0
        %872 = vmatpush1.bf16.msra.mxu0 %v763
        %873 = vmatprep.subr.bf16.mxu0 0
        %874 = vmatpush1.bf16.msra.mxu0 %v762
        %875 = vmatprep.subr.bf16.mxu0 0
        %876 = vmatpush1.bf16.msra.mxu0 %v761
        %877 = vmatprep.subr.bf16.mxu0 0
        %878 = vmatpush1.bf16.msra.mxu0 %v760
        %879 = vmatprep.subr.bf16.mxu0 0
        %880 = vmatpush1.bf16.msra.mxu0 %v759
        %881 = vmatprep.subr.bf16.mxu0 0
        %882 = vmatpush1.bf16.msra.mxu0 %v758
        %883 = vmatprep.subr.bf16.mxu0 0
        %884 = vmatpush1.bf16.msra.mxu0 %v757
        %885 = vmatprep.subr.bf16.mxu0 0
        %886 = vmatpush2.bf16.msra.mxu0 %v772
        %887 = vmatprep.subr.bf16.mxu0 0
        %888 = vmatpush2.bf16.msra.mxu0 %v771
        %889 = vmatprep.subr.bf16.mxu0 0
        %890 = vmatpush2.bf16.msra.mxu0 %v770
        %891 = vmatprep.subr.bf16.mxu0 0
        %892 = vmatpush2.bf16.msra.mxu0 %v769
        %893 = vmatprep.subr.bf16.mxu0 0
        %894 = vmatpush2.bf16.msra.mxu0 %v768
        %895 = vmatprep.subr.bf16.mxu0 0
        %896 = vmatpush2.bf16.msra.mxu0 %v767
        %897 = vmatprep.subr.bf16.mxu0 0
        %898 = vmatpush2.bf16.msra.mxu0 %v766
        %899 = vmatprep.subr.bf16.mxu0 0
        %900 = vmatpush2.bf16.msra.mxu0 %v765
        %901 = vmatprep.mubr.bf16.mxu0 %v314
        %902 = vmatmul.mubr.bf16.gmra.mxu0 %v293
        %v903 = vpop.f32.mrf.mxu0
        %v904 = vadd.f32 0.0, %v903
        %v905 = vpop.f32.mrf.mxu0
        %v906 = vpop.f32.mrf.mxu0
        %v907 = vadd.f32 0.0, %v906
        %v908 = vpop.f32.mrf.mxu0
        %909 = vmatprep.mubr.bf16.mxu0 %v322
        %910 = vmatmul.mubr.bf16.gmra.mxu0 %v294
        %v911 = vpop.f32.mrf.mxu0
        %v912 = vadd.f32 0.0, %v911
        %v913 = vpop.f32.mrf.mxu0
        %v914 = vpop.f32.mrf.mxu0
        %v915 = vadd.f32 0.0, %v914
        %v916 = vpop.f32.mrf.mxu0
        %917 = vmatprep.mubr.bf16.mxu0 %v325
        %918 = vmatmul.mubr.bf16.gmra.mxu0 %v295
        %v919 = vpop.f32.mrf.mxu0
        %v920 = vadd.f32 0.0, %v919
        %v921 = vpop.f32.mrf.mxu0
        %v922 = vpop.f32.mrf.mxu0
        %v923 = vpop.f32.mrf.mxu0
        %924 = vdwg.mxu0
        %925 = vmatprep.subr.bf16.mxu0 0
        %926 = vmatpush1.bf16.msra.mxu0 %v780
        %927 = vmatprep.subr.bf16.mxu0 0
        %928 = vmatpush1.bf16.msra.mxu0 %v779
        %929 = vmatprep.subr.bf16.mxu0 0
        %930 = vmatpush1.bf16.msra.mxu0 %v778
        %931 = vmatprep.subr.bf16.mxu0 0
        %932 = vmatpush1.bf16.msra.mxu0 %v777
        %933 = vmatprep.subr.bf16.mxu0 0
        %934 = vmatpush1.bf16.msra.mxu0 %v776
        %935 = vmatprep.subr.bf16.mxu0 0
        %936 = vmatpush1.bf16.msra.mxu0 %v775
        %937 = vmatprep.subr.bf16.mxu0 0
        %938 = vmatpush1.bf16.msra.mxu0 %v774
        %939 = vmatprep.subr.bf16.mxu0 0
        %940 = vmatpush1.bf16.msra.mxu0 %v773
        %941 = vmatprep.subr.bf16.mxu0 0
        %942 = vmatpush2.bf16.msra.mxu0 %v788
        %943 = vmatprep.subr.bf16.mxu0 0
        %944 = vmatpush2.bf16.msra.mxu0 %v787
        %945 = vmatprep.subr.bf16.mxu0 0
        %946 = vmatpush2.bf16.msra.mxu0 %v786
        %947 = vmatprep.subr.bf16.mxu0 0
        %948 = vmatpush2.bf16.msra.mxu0 %v785
        %949 = vmatprep.subr.bf16.mxu0 0
        %950 = vmatpush2.bf16.msra.mxu0 %v784
        %951 = vmatprep.subr.bf16.mxu0 0
        %952 = vmatpush2.bf16.msra.mxu0 %v783
        %953 = vmatprep.subr.bf16.mxu0 0
        %954 = vmatpush2.bf16.msra.mxu0 %v782
        %955 = vmatprep.subr.bf16.mxu0 0
        %956 = vmatpush2.bf16.msra.mxu0 %v781
        %957 = vmatprep.mubr.bf16.mxu0 %v356
        %958 = vmatmul.mubr.bf16.gmra.mxu0 %v335
        %v959 = vpop.f32.mrf.mxu0
        %v960 = vadd.f32 %v904, %v959
        %v961 = vpop.f32.mrf.mxu0
        %v962 = vpop.f32.mrf.mxu0
        %v963 = vadd.f32 %v907, %v962
        %v964 = vpop.f32.mrf.mxu0
        %965 = vmatprep.mubr.bf16.mxu0 %v365
        %966 = vmatmul.mubr.bf16.gmra.mxu0 %v337
        %v967 = vpop.f32.mrf.mxu0
        %v968 = vadd.f32 %v912, %v967
        %v969 = vpop.f32.mrf.mxu0
        %v970 = vpop.f32.mrf.mxu0
        %v971 = vadd.f32 %v915, %v970
        %v972 = vpop.f32.mrf.mxu0
        %973 = vmatprep.mubr.bf16.mxu0 %v364
        %974 = vmatmul.mubr.bf16.gmra.mxu0 %v336
        %v975 = vpop.f32.mrf.mxu0
        %v976 = vadd.f32 %v920, %v975
        %v977 = vpop.f32.mrf.mxu0
        %v978 = vpop.f32.mrf.mxu0
        %v979 = vpop.f32.mrf.mxu0
        %980 = vdwg.mxu0
        %981 = vmatprep.subr.bf16.mxu0 0
        %982 = vmatpush1.bf16.msra.mxu0 %v796
        %983 = vmatprep.subr.bf16.mxu0 0
        %984 = vmatpush1.bf16.msra.mxu0 %v795
        %985 = vmatprep.subr.bf16.mxu0 0
        %986 = vmatpush1.bf16.msra.mxu0 %v794
        %987 = vmatprep.subr.bf16.mxu0 0
        %988 = vmatpush1.bf16.msra.mxu0 %v793
        %989 = vmatprep.subr.bf16.mxu0 0
        %990 = vmatpush1.bf16.msra.mxu0 %v792
        %991 = vmatprep.subr.bf16.mxu0 0
        %992 = vmatpush1.bf16.msra.mxu0 %v791
        %993 = vmatprep.subr.bf16.mxu0 0
        %994 = vmatpush1.bf16.msra.mxu0 %v790
        %995 = vmatprep.subr.bf16.mxu0 0
        %996 = vmatpush1.bf16.msra.mxu0 %v789
        %997 = vmatprep.subr.bf16.mxu0 0
        %998 = vmatpush2.bf16.msra.mxu0 %v804
        %999 = vmatprep.subr.bf16.mxu0 0
        %1000 = vmatpush2.bf16.msra.mxu0 %v803
        %1001 = vmatprep.subr.bf16.mxu0 0
        %1002 = vmatpush2.bf16.msra.mxu0 %v802
        %1003 = vmatprep.subr.bf16.mxu0 0
        %1004 = vmatpush2.bf16.msra.mxu0 %v801
        %1005 = vmatprep.subr.bf16.mxu0 0
        %1006 = vmatpush2.bf16.msra.mxu0 %v800
        %1007 = vmatprep.subr.bf16.mxu0 0
        %1008 = vmatpush2.bf16.msra.mxu0 %v799
        %1009 = vmatprep.subr.bf16.mxu0 0
        %1010 = vmatpush2.bf16.msra.mxu0 %v798
        %1011 = vmatprep.subr.bf16.mxu0 0
        %1012 = vmatpush2.bf16.msra.mxu0 %v797
        %1013 = vmatprep.mubr.bf16.mxu0 %v396
        %1014 = vmatmul.mubr.bf16.gmra.mxu0 %v375
        %v1015 = vpop.f32.mrf.mxu0
        %v1016 = vadd.f32 %v960, %v1015
        %v1017 = vpop.f32.mrf.mxu0
        %v1018 = vpop.f32.mrf.mxu0
        %v1019 = vadd.f32 %v963, %v1018
        %v1020 = vpop.f32.mrf.mxu0
        %1021 = vmatprep.mubr.bf16.mxu0 %v405
        %1022 = vmatmul.mubr.bf16.gmra.mxu0 %v377
        %v1023 = vpop.f32.mrf.mxu0
        %v1024 = vadd.f32 %v968, %v1023
        %v1025 = vpop.f32.mrf.mxu0
        %v1026 = vpop.f32.mrf.mxu0
        %v1027 = vadd.f32 %v971, %v1026
        %v1028 = vpop.f32.mrf.mxu0
        %1029 = vmatprep.mubr.bf16.mxu0 %v404
        %1030 = vmatmul.mubr.bf16.gmra.mxu0 %v376
        %v1031 = vpop.f32.mrf.mxu0
        %v1032 = vadd.f32 %v976, %v1031
        %v1033 = vpop.f32.mrf.mxu0
        %v1034 = vpop.f32.mrf.mxu0
        %v1035 = vpop.f32.mrf.mxu0
        %1036 = vdwg.mxu0
        %1037 = vmatprep.subr.bf16.mxu0 0
        %1038 = vmatpush1.bf16.msra.mxu0 %v812
        %1039 = vmatprep.subr.bf16.mxu0 0
        %1040 = vmatpush1.bf16.msra.mxu0 %v811
        %1041 = vmatprep.subr.bf16.mxu0 0
        %1042 = vmatpush1.bf16.msra.mxu0 %v810
        %1043 = vmatprep.subr.bf16.mxu0 0
        %1044 = vmatpush1.bf16.msra.mxu0 %v809
        %1045 = vmatprep.subr.bf16.mxu0 0
        %1046 = vmatpush1.bf16.msra.mxu0 %v808
        %1047 = vmatprep.subr.bf16.mxu0 0
        %1048 = vmatpush1.bf16.msra.mxu0 %v807
        %1049 = vmatprep.subr.bf16.mxu0 0
        %1050 = vmatpush1.bf16.msra.mxu0 %v806
        %1051 = vmatprep.subr.bf16.mxu0 0
        %1052 = vmatpush1.bf16.msra.mxu0 %v805
        %1053 = vmatprep.subr.bf16.mxu0 0
        %1054 = vmatpush2.bf16.msra.mxu0 0
        %1055 = vmatprep.subr.bf16.mxu0 0
        %1056 = vmatpush2.bf16.msra.mxu0 0
        %1057 = vmatprep.subr.bf16.mxu0 0
        %1058 = vmatpush2.bf16.msra.mxu0 0
        %1059 = vmatprep.subr.bf16.mxu0 0
        %1060 = vmatpush2.bf16.msra.mxu0 0
        %1061 = vmatprep.subr.bf16.mxu0 0
        %1062 = vmatpush2.bf16.msra.mxu0 0
        %1063 = vmatprep.subr.bf16.mxu0 0
        %1064 = vmatpush2.bf16.msra.mxu0 0
        %1065 = vmatprep.subr.bf16.mxu0 0
        %1066 = vmatpush2.bf16.msra.mxu0 0
        %1067 = vmatprep.subr.bf16.mxu0 0
        %1068 = vmatpush2.bf16.msra.mxu0 0
        %1069 = vmatprep.mubr.bf16.mxu0 0
        %1070 = vmatmul.mubr.bf16.gmra.mxu0 %v415
        %v1071 = vpop.f32.mrf.mxu0
        %v1072 = vadd.f32 %v1016, %v1071
        %v1073 = vpop.f32.mrf.mxu0
        %v1074 = vpop.f32.mrf.mxu0
        %v1075 = vadd.f32 %v1019, %v1074
        %v1076 = vpop.f32.mrf.mxu0
        %1077 = vmatprep.mubr.bf16.mxu0 0
        %1078 = vmatmul.mubr.bf16.gmra.mxu0 %v417
        %v1079 = vpop.f32.mrf.mxu0
        %v1080 = vadd.f32 %v1024, %v1079
        %v1081 = vpop.f32.mrf.mxu0
        %v1082 = vpop.f32.mrf.mxu0
        %v1083 = vadd.f32 %v1027, %v1082
        %v1084 = vpop.f32.mrf.mxu0
        %1085 = vmatprep.mubr.bf16.mxu0 0
        %1086 = vmatmul.mubr.bf16.gmra.mxu0 %v416
        %v1087 = vpop.f32.mrf.mxu0
        %v1088 = vadd.f32 %v1032, %v1087
        %v1089 = vpop.f32.mrf.mxu0
        %v1090 = vpop.f32.mrf.mxu0
        %v1091 = vpop.f32.mrf.mxu0
        %1092 = vdwg.mxu0
        %v1093 = vld [vmem:[#allocation8] sm:$0x1]
        %v1095 = vlaneseq
        %v1096 = vshrl.u32 %v1095, 7
        %v1097 = vsub.s32 0, %v1096
        %v1098 = vrot.slane %v1093, %v1097
        %v1100 = vmul.f32 %v1072, %v1098
        %v1101 = vmul.f32 %v1075, %v1098
        %v1102 = vmul.f32 %v1080, %v1098
        %v1103 = vmul.f32 %v1083, %v1098
        %v1104 = vmul.f32 %v1088, %v1098
        %v1105 = vld [vmem:[%s3] sm:$0x1]
        %v1107 = vlaneseq
        %v1108 = vshrl.u32 %v1107, 7
        %v1109 = vsub.s32 0, %v1108
        %v1110 = vrot.slane %v1105, %v1109
        %v1112 = vadd.f32 %v1100, %v1110
        %v1113 = vadd.f32 %v1101, %v1110
        %v1114 = vadd.f32 %v1102, %v1110
        %v1115 = vadd.f32 %v1103, %v1110
        %v1116 = vadd.f32 %v1104, %v1110
        %v1117 = vmul.f32 %v1112, 0.5
        %v1118 = vmul.f32 %v1113, 0.5
        %v1119 = vmul.f32 %v1114, 0.5
        %v1120 = vmul.f32 %v1115, 0.5
        %v1121 = vmul.f32 %v1116, 0.5
        %v1122 = vmul.f32 %v1112, %v1112
        %v1123 = vmul.f32 %v1113, %v1113
        %v1124 = vmul.f32 %v1114, %v1114
        %v1125 = vmul.f32 %v1115, %v1115
        %v1126 = vmul.f32 %v1116, %v1116
        %v1127 = vmul.f32 %v1122, %v1112
        %v1128 = vmul.f32 %v1123, %v1113
        %v1129 = vmul.f32 %v1124, %v1114
        %v1130 = vmul.f32 %v1125, %v1115
        %v1131 = vmul.f32 %v1126, %v1116
        %v1132 = vmul.f32 %v1127, 0.044715
        %v1133 = vmul.f32 %v1128, 0.044715
        %v1134 = vmul.f32 %v1129, 0.044715
        %v1135 = vmul.f32 %v1130, 0.044715
        %v1136 = vmul.f32 %v1131, 0.044715
        %v1137 = vadd.f32 %v1112, %v1132
        %v1138 = vadd.f32 %v1113, %v1133
        %v1139 = vadd.f32 %v1114, %v1134
        %v1140 = vadd.f32 %v1115, %v1135
        %v1141 = vadd.f32 %v1116, %v1136
        %v1142 = vmul.f32 %v1137, 0.7978846
        %v1143 = vmul.f32 %v1138, 0.7978846
        %v1144 = vmul.f32 %v1139, 0.7978846
        %v1145 = vmul.f32 %v1140, 0.7978846
        %v1146 = vmul.f32 %v1141, 0.7978846
        %v1147 = vtanh.pop %v1142
        %v1148 = vtanh.pop %v1143
        %v1149 = vtanh.pop %v1144
        %v1150 = vtanh.pop %v1145
        %v1151 = vtanh.pop %v1146
        %v1152 = vadd.f32 %v1147, 1.0
        %v1153 = vadd.f32 %v1148, 1.0
        %v1154 = vadd.f32 %v1149, 1.0
        %v1155 = vadd.f32 %v1150, 1.0
        %v1156 = vadd.f32 %v1151, 1.0
        %v1157 = vmul.f32 %v1117, %v1152
        %v1158 = vmul.f32 %v1118, %v1153
        %v1159 = vmul.f32 %v1119, %v1154
        %v1160 = vmul.f32 %v1120, %v1155
        %v1161 = vmul.f32 %v1121, %v1156
        %v1162 = vpack.c.bf16 %v1158, %v1157
        %v1163 = vpack.c.bf16 %v1160, %v1159
        %v1164 = vpack.c.bf16 %v1161, %v1161
        %v1168 = vunpack.c.l.b16 %v1162
        %v1169 = vunpack.c.h.b16 %v1162
        %v1170 = vunpack.c.l.b16 %v1163
        %v1171 = vunpack.c.h.b16 %v1163
        %v1172 = vunpack.c.l.b16 %v1164
        %v1173 = vpack.c.b16 %v1168, %v1168
        %v1174 = vpack.c.b16 %v1169, %v1169
        %v1175 = vpack.c.b16 %v1170, %v1170
        %v1176 = vpack.c.b16 %v1171, %v1171
        %v1177 = vpack.c.b16 %v1172, %v1172
        %1183 = vst [vmem:[#allocation2] sm:$0xf] %v1173
        %1184 = vst [vmem:[#allocation2 + $0x4] sm:$0xf] %v1174
        %1185 = vst [vmem:[#allocation2 + $0x8] sm:$0xf] %v1175
        %1186 = vst [vmem:[#allocation2 + $0xc] sm:$0xf] %v1176
        %1187 = vst [vmem:[#allocation2 + $0x10] sm:$0x1] %v1177
        %p1188 = scmp.eq.s32.totalorder %s24, 0
        // Predicated region
        $region49: #{tpu_custom_call.1} parent=35 // pred_check
          %p1189 = pneg %p1188
        $region50: #{tpu_custom_call.1} parent=35 // pred_check_branch
          %1191 = sbr.rel (%p1189) target = $region52
        $region51: #{tpu_custom_call.1} parent=35 // pred_region
          %1192 = vst [vmem:[#allocation2] sm:$0xf] 0
          %vm1193 = vcmask 1040384
          %vm1194 = vsmask.f32 256
          %vm1195 = vmand %vm1193, %vm1194
          %v1196 = vld [vmem:[#allocation2 + $0x4] sm:$0x1]
          %v1197 = vsel %vm1195, 0, %v1196
          %1198 = vst [vmem:[#allocation2 + $0x4] sm:$0x1] %v1197
          %vm1199 = vcmask 1043456
          %vm1200 = vsmask.f32 7938
          %vm1201 = vmand %vm1199, %vm1200
          %v1202 = vld [vmem:[#allocation2 + $0xc] sm:$0xf]
          %v1203 = vsel %vm1201, 0, %v1202
          %1204 = vst [vmem:[#allocation2 + $0xc] sm:$0xf] %v1203
          %1205 = vst [vmem:[#allocation2 + $0x10] sm:$0x1] 0
        $region52: #{tpu_custom_call.1} parent=35 // pred_fallthru
          _
        %v1206 = vld [vmem:[#allocation2] sm:$0xf]
        %v1207 = vld [vmem:[#allocation2 + $0x4] sm:$0xf]
        %v1208 = vld [vmem:[#allocation2 + $0x8] sm:$0xf]
        %v1209 = vld [vmem:[#allocation2 + $0xc] sm:$0x3]
        %v1210 = vld [vmem:[#allocation2 + $0xc] sm:$0x7]
        %v1211 = vld [vmem:[#allocation2] sm:$0xe]
        %v1212 = vld [vmem:[#allocation2 + $0xc] sm:$0xf]
        %v1213 = vld [vmem:[#allocation2] sm:$0xc]
        %v1214 = vld [vmem:[#allocation2] sm:$0xc]
        %v1215 = vld [vmem:[#allocation2 + $0x4] sm:$0xf]
        %v1216 = vld [vmem:[#allocation2 + $0x8] sm:$0xf]
        %v1217 = vld [vmem:[#allocation2 + $0xc] sm:$0xf]
        %v1218 = vld [vmem:[#allocation2 + $0x10] sm:$0x1]
        %v1219 = vld [vmem:[#allocation2] sm:$0x8]
        %v1224 = vunpack.c.l.b16 %v1206
        %v1225 = vunpack.c.l.b16 %v1207
        %v1226 = vunpack.c.l.b16 %v1208
        %v1227 = vunpack.c.l.b16 %v1209
        %v1228 = vpack.c.b16 %v1225, %v1224
        %v1229 = vpack.c.b16 %v1227, %v1226
        %v1233 = vunpack.c.l.b16 %v1210
        %v1234 = vpack.c.b16 %v1233, %v1226
        %v1236 = vshrl.u32 %v1228, 16
        %v1238 = vshll.u32 %v1228, 16
        %v1240 = vrot.slane %v1238, 1
        %v1241 = vor.u32 %v1236, %v1240
        %v1243 = vshll.u32 %v1234, 16
        %v1245 = vrot.slane %v1243, 1
        %v1246 = vsel %vm302, %v1241, %v1245
        %v1247 = vshrl.u32 %v1234, 16
        %v1249 = vor.u32 %v1247, %v1245
        %v1253 = vunpack.c.l.b16 %v1211
        %v1254 = vpack.c.b16 %v1225, %v1253
        %v1255 = vrot.slane %v1254, 1
        %v1256 = vrot.slane %v1234, 1
        %v1257 = vsel %vm332, %v1255, %v1256
        %v1261 = vunpack.c.l.b16 %v1212
        %v1262 = vpack.c.b16 %v1261, %v1226
        %v1264 = vshrl.u32 %v1254, 16
        %v1266 = vrot.slane %v1264, 1
        %v1267 = vshll.u32 %v1254, 16
        %v1269 = vrot.slane %v1267, 2
        %v1270 = vor.u32 %v1266, %v1269
        %v1272 = vshrl.u32 %v1262, 16
        %v1274 = vrot.slane %v1272, 1
        %v1275 = vshll.u32 %v1262, 16
        %v1277 = vrot.slane %v1275, 2
        %v1278 = vor.u32 %v1274, %v1277
        %v1279 = vsel %vm344, %v1270, %v1278
        %v1283 = vunpack.c.l.b16 %v1213
        %v1284 = vpack.c.b16 %v1225, %v1283
        %v1285 = vrot.slane %v1284, 2
        %v1286 = vrot.slane %v1262, 2
        %v1287 = vsel %vm372, %v1285, %v1286
        %v1295 = vunpack.c.l.b16 %v1214
        %v1296 = vunpack.c.l.b16 %v1215
        %v1297 = vunpack.c.l.b16 %v1216
        %v1298 = vunpack.c.l.b16 %v1217
        %v1299 = vunpack.c.l.b16 %v1218
        %v1300 = vpack.c.b16 %v1296, %v1295
        %v1301 = vpack.c.b16 %v1298, %v1297
        %v1302 = vpack.c.b16 %v1299, %v1299
        %v1304 = vshrl.u32 %v1300, 16
        %v1306 = vrot.slane %v1304, 2
        %v1307 = vshll.u32 %v1300, 16
        %v1309 = vrot.slane %v1307, 3
        %v1310 = vor.u32 %v1306, %v1309
        %v1312 = vshrl.u32 %v1301, 16
        %v1314 = vrot.slane %v1312, 2
        %v1315 = vshll.u32 %v1301, 16
        %v1317 = vrot.slane %v1315, 3
        %v1318 = vor.u32 %v1314, %v1317
        %v1319 = vsel %vm384, %v1310, %v1318
        %v1321 = vshll.u32 %v1302, 16
        %v1323 = vrot.slane %v1321, 3
        %v1324 = vsel %vm384, %v1318, %v1323
        %v1328 = vunpack.c.l.b16 %v1219
        %v1329 = vpack.c.b16 %v1296, %v1328
        %v1330 = vrot.slane %v1329, 3
        %v1331 = vrot.slane %v1301, 3
        %v1332 = vsel %vm412, %v1330, %v1331
        %v1333 = vrot.slane %v1302, 3
        %v1334 = vsel %vm412, %v1331, %v1333
        %s1337 = scalar_lea.vmem [#allocation6], 448
        %v1338 = vld [vmem:[%s1337] sm:$0xf]
        %v1339 = vld [vmem:[%s1337 + $0x4] sm:$0xf]
        %v1340 = vld [vmem:[%s1337 + $0x8] sm:$0xf]
        %v1341 = vld [vmem:[%s1337 + $0xc] sm:$0xf]
        %v1342 = vld [vmem:[%s1337 + $0x10] sm:$0xf]
        %v1343 = vld [vmem:[%s1337 + $0x14] sm:$0xf]
        %v1344 = vld [vmem:[%s1337 + $0x18] sm:$0xf]
        %v1345 = vld [vmem:[%s1337 + $0x1c] sm:$0xf]
        %v1346 = vld [vmem:[%s1337 + $0x20] sm:$0xf]
        %v1347 = vld [vmem:[%s1337 + $0x24] sm:$0xf]
        %v1348 = vld [vmem:[%s1337 + $0x28] sm:$0xf]
        %v1349 = vld [vmem:[%s1337 + $0x2c] sm:$0xf]
        %v1350 = vld [vmem:[%s1337 + $0x30] sm:$0xf]
        %v1351 = vld [vmem:[%s1337 + $0x34] sm:$0xf]
        %v1352 = vld [vmem:[%s1337 + $0x38] sm:$0xf]
        %v1353 = vld [vmem:[%s1337 + $0x3c] sm:$0xf]
        %v1354 = vld [vmem:[%s1337 + $0x40] sm:$0xf]
        %v1355 = vld [vmem:[%s1337 + $0x44] sm:$0xf]
        %v1356 = vld [vmem:[%s1337 + $0x48] sm:$0xf]
        %v1357 = vld [vmem:[%s1337 + $0x4c] sm:$0xf]
        %v1358 = vld [vmem:[%s1337 + $0x50] sm:$0xf]
        %v1359 = vld [vmem:[%s1337 + $0x54] sm:$0xf]
        %v1360 = vld [vmem:[%s1337 + $0x58] sm:$0xf]
        %v1361 = vld [vmem:[%s1337 + $0x5c] sm:$0xf]
        %v1362 = vld [vmem:[%s1337 + $0x60] sm:$0xf]
        %v1363 = vld [vmem:[%s1337 + $0x64] sm:$0xf]
        %v1364 = vld [vmem:[%s1337 + $0x68] sm:$0xf]
        %v1365 = vld [vmem:[%s1337 + $0x6c] sm:$0xf]
        %v1366 = vld [vmem:[%s1337 + $0x70] sm:$0xf]
        %v1367 = vld [vmem:[%s1337 + $0x74] sm:$0xf]
        %v1368 = vld [vmem:[%s1337 + $0x78] sm:$0xf]
        %v1369 = vld [vmem:[%s1337 + $0x7c] sm:$0xf]
        %v1370 = vld [vmem:[%s1337 + $0x80] sm:$0xf]
        %v1371 = vld [vmem:[%s1337 + $0x84] sm:$0xf]
        %v1372 = vld [vmem:[%s1337 + $0x88] sm:$0xf]
        %v1373 = vld [vmem:[%s1337 + $0x8c] sm:$0xf]
        %v1374 = vld [vmem:[%s1337 + $0x90] sm:$0xf]
        %v1375 = vld [vmem:[%s1337 + $0x94] sm:$0xf]
        %v1376 = vld [vmem:[%s1337 + $0x98] sm:$0xf]
        %v1377 = vld [vmem:[%s1337 + $0x9c] sm:$0xf]
        %v1378 = vld [vmem:[%s1337 + $0xa0] sm:$0xf]
        %v1379 = vld [vmem:[%s1337 + $0xa4] sm:$0xf]
        %v1380 = vld [vmem:[%s1337 + $0xa8] sm:$0xf]
        %v1381 = vld [vmem:[%s1337 + $0xac] sm:$0xf]
        %v1382 = vld [vmem:[%s1337 + $0xb0] sm:$0xf]
        %v1383 = vld [vmem:[%s1337 + $0xb4] sm:$0xf]
        %v1384 = vld [vmem:[%s1337 + $0xb8] sm:$0xf]
        %v1385 = vld [vmem:[%s1337 + $0xbc] sm:$0xf]
        %v1386 = vld [vmem:[%s1337 + $0xc0] sm:$0xf]
        %v1387 = vld [vmem:[%s1337 + $0xc4] sm:$0xf]
        %v1388 = vld [vmem:[%s1337 + $0xc8] sm:$0xf]
        %v1389 = vld [vmem:[%s1337 + $0xcc] sm:$0xf]
        %v1390 = vld [vmem:[%s1337 + $0xd0] sm:$0xf]
        %v1391 = vld [vmem:[%s1337 + $0xd4] sm:$0xf]
        %v1392 = vld [vmem:[%s1337 + $0xd8] sm:$0xf]
        %v1393 = vld [vmem:[%s1337 + $0xdc] sm:$0xf]
        %v1394 = vld [vmem:[%s1337 + $0xe0] sm:$0xf]
        %v1395 = vld [vmem:[%s1337 + $0xe4] sm:$0xf]
        %v1396 = vld [vmem:[%s1337 + $0xe8] sm:$0xf]
        %v1397 = vld [vmem:[%s1337 + $0xec] sm:$0xf]
        %v1398 = vld [vmem:[%s1337 + $0xf0] sm:$0xf]
        %v1399 = vld [vmem:[%s1337 + $0xf4] sm:$0xf]
        %v1400 = vld [vmem:[%s1337 + $0xf8] sm:$0xf]
        %v1401 = vld [vmem:[%s1337 + $0xfc] sm:$0xf]
        %v1402 = vld [vmem:[%s1337 + $0x100] sm:$0xf]
        %v1403 = vld [vmem:[%s1337 + $0x104] sm:$0xf]
        %v1404 = vld [vmem:[%s1337 + $0x108] sm:$0xf]
        %v1405 = vld [vmem:[%s1337 + $0x10c] sm:$0xf]
        %v1406 = vld [vmem:[%s1337 + $0x110] sm:$0xf]
        %v1407 = vld [vmem:[%s1337 + $0x114] sm:$0xf]
        %v1408 = vld [vmem:[%s1337 + $0x118] sm:$0xf]
        %v1409 = vld [vmem:[%s1337 + $0x11c] sm:$0xf]
        %v1410 = vld [vmem:[%s1337 + $0x120] sm:$0xf]
        %v1411 = vld [vmem:[%s1337 + $0x124] sm:$0xf]
        %v1412 = vld [vmem:[%s1337 + $0x128] sm:$0xf]
        %v1413 = vld [vmem:[%s1337 + $0x12c] sm:$0xf]
        %v1414 = vld [vmem:[%s1337 + $0x130] sm:$0xf]
        %v1415 = vld [vmem:[%s1337 + $0x134] sm:$0xf]
        %v1416 = vld [vmem:[%s1337 + $0x138] sm:$0xf]
        %v1417 = vld [vmem:[%s1337 + $0x13c] sm:$0xf]
        %v1418 = vld [vmem:[%s1337 + $0x140] sm:$0xf]
        %v1419 = vld [vmem:[%s1337 + $0x144] sm:$0xf]
        %v1420 = vld [vmem:[%s1337 + $0x148] sm:$0xf]
        %v1421 = vld [vmem:[%s1337 + $0x14c] sm:$0xf]
        %v1422 = vld [vmem:[%s1337 + $0x150] sm:$0xf]
        %v1423 = vld [vmem:[%s1337 + $0x154] sm:$0xf]
        %v1424 = vld [vmem:[%s1337 + $0x158] sm:$0xf]
        %v1425 = vld [vmem:[%s1337 + $0x15c] sm:$0xf]
        %v1426 = vld [vmem:[%s1337 + $0x160] sm:$0xf]
        %v1427 = vld [vmem:[%s1337 + $0x164] sm:$0xf]
        %v1428 = vld [vmem:[%s1337 + $0x168] sm:$0xf]
        %v1429 = vld [vmem:[%s1337 + $0x16c] sm:$0xf]
        %v1430 = vld [vmem:[%s1337 + $0x170] sm:$0xf]
        %v1431 = vld [vmem:[%s1337 + $0x174] sm:$0xf]
        %v1432 = vld [vmem:[%s1337 + $0x178] sm:$0xf]
        %v1433 = vld [vmem:[%s1337 + $0x17c] sm:$0xf]
        %v1434 = vld [vmem:[%s1337 + $0x180] sm:$0xf]
        %v1435 = vld [vmem:[%s1337 + $0x184] sm:$0xf]
        %v1436 = vld [vmem:[%s1337 + $0x188] sm:$0xf]
        %v1437 = vld [vmem:[%s1337 + $0x18c] sm:$0xf]
        %v1438 = vld [vmem:[%s1337 + $0x190] sm:$0xf]
        %v1439 = vld [vmem:[%s1337 + $0x194] sm:$0xf]
        %v1440 = vld [vmem:[%s1337 + $0x198] sm:$0xf]
        %v1441 = vld [vmem:[%s1337 + $0x19c] sm:$0xf]
        %v1442 = vld [vmem:[%s1337 + $0x1a0] sm:$0xf]
        %v1443 = vld [vmem:[%s1337 + $0x1a4] sm:$0xf]
        %v1444 = vld [vmem:[%s1337 + $0x1a8] sm:$0xf]
        %v1445 = vld [vmem:[%s1337 + $0x1ac] sm:$0xf]
        %v1446 = vld [vmem:[%s1337 + $0x1b0] sm:$0xf]
        %v1447 = vld [vmem:[%s1337 + $0x1b4] sm:$0xf]
        %v1448 = vld [vmem:[%s1337 + $0x1b8] sm:$0xf]
        %v1449 = vld [vmem:[%s1337 + $0x1bc] sm:$0xf]
        %v1562 = vunpack.c.l.b16 %v1338
        %v1563 = vunpack.c.l.b16 %v1339
        %v1564 = vunpack.c.l.b16 %v1340
        %v1565 = vunpack.c.l.b16 %v1341
        %v1566 = vunpack.c.l.b16 %v1342
        %v1567 = vunpack.c.l.b16 %v1343
        %v1568 = vunpack.c.l.b16 %v1344
        %v1569 = vunpack.c.l.b16 %v1345
        %v1570 = vunpack.c.l.b16 %v1346
        %v1571 = vunpack.c.l.b16 %v1347
        %v1572 = vunpack.c.l.b16 %v1348
        %v1573 = vunpack.c.l.b16 %v1349
        %v1574 = vunpack.c.l.b16 %v1350
        %v1575 = vunpack.c.l.b16 %v1351
        %v1576 = vunpack.c.l.b16 %v1352
        %v1577 = vunpack.c.l.b16 %v1353
        %v1578 = vunpack.c.l.b16 %v1354
        %v1579 = vunpack.c.l.b16 %v1355
        %v1580 = vunpack.c.l.b16 %v1356
        %v1581 = vunpack.c.l.b16 %v1357
        %v1582 = vunpack.c.l.b16 %v1358
        %v1583 = vunpack.c.l.b16 %v1359
        %v1584 = vunpack.c.l.b16 %v1360
        %v1585 = vunpack.c.l.b16 %v1361
        %v1586 = vunpack.c.l.b16 %v1362
        %v1587 = vunpack.c.l.b16 %v1363
        %v1588 = vunpack.c.l.b16 %v1364
        %v1589 = vunpack.c.l.b16 %v1365
        %v1590 = vunpack.c.l.b16 %v1366
        %v1591 = vunpack.c.l.b16 %v1367
        %v1592 = vunpack.c.l.b16 %v1368
        %v1593 = vunpack.c.l.b16 %v1369
        %v1594 = vunpack.c.l.b16 %v1370
        %v1595 = vunpack.c.l.b16 %v1371
        %v1596 = vunpack.c.l.b16 %v1372
        %v1597 = vunpack.c.l.b16 %v1373
        %v1598 = vunpack.c.l.b16 %v1374
        %v1599 = vunpack.c.l.b16 %v1375
        %v1600 = vunpack.c.l.b16 %v1376
        %v1601 = vunpack.c.l.b16 %v1377
        %v1602 = vunpack.c.l.b16 %v1378
        %v1603 = vunpack.c.l.b16 %v1379
        %v1604 = vunpack.c.l.b16 %v1380
        %v1605 = vunpack.c.l.b16 %v1381
        %v1606 = vunpack.c.l.b16 %v1382
        %v1607 = vunpack.c.l.b16 %v1383
        %v1608 = vunpack.c.l.b16 %v1384
        %v1609 = vunpack.c.l.b16 %v1385
        %v1610 = vunpack.c.l.b16 %v1386
        %v1611 = vunpack.c.l.b16 %v1387
        %v1612 = vunpack.c.l.b16 %v1388
        %v1613 = vunpack.c.l.b16 %v1389
        %v1614 = vunpack.c.l.b16 %v1390
        %v1615 = vunpack.c.l.b16 %v1391
        %v1616 = vunpack.c.l.b16 %v1392
        %v1617 = vunpack.c.l.b16 %v1393
        %v1618 = vunpack.c.l.b16 %v1394
        %v1619 = vunpack.c.l.b16 %v1395
        %v1620 = vunpack.c.l.b16 %v1396
        %v1621 = vunpack.c.l.b16 %v1397
        %v1622 = vunpack.c.l.b16 %v1398
        %v1623 = vunpack.c.l.b16 %v1399
        %v1624 = vunpack.c.l.b16 %v1400
        %v1625 = vunpack.c.l.b16 %v1401
        %v1626 = vunpack.c.l.b16 %v1402
        %v1627 = vunpack.c.l.b16 %v1403
        %v1628 = vunpack.c.l.b16 %v1404
        %v1629 = vunpack.c.l.b16 %v1405
        %v1630 = vunpack.c.l.b16 %v1406
        %v1631 = vunpack.c.l.b16 %v1407
        %v1632 = vunpack.c.l.b16 %v1408
        %v1633 = vunpack.c.l.b16 %v1409
        %v1634 = vunpack.c.l.b16 %v1410
        %v1635 = vunpack.c.l.b16 %v1411
        %v1636 = vunpack.c.l.b16 %v1412
        %v1637 = vunpack.c.l.b16 %v1413
        %v1638 = vunpack.c.l.b16 %v1414
        %v1639 = vunpack.c.l.b16 %v1415
        %v1640 = vunpack.c.l.b16 %v1416
        %v1641 = vunpack.c.l.b16 %v1417
        %v1642 = vunpack.c.l.b16 %v1418
        %v1643 = vunpack.c.l.b16 %v1419
        %v1644 = vunpack.c.l.b16 %v1420
        %v1645 = vunpack.c.l.b16 %v1421
        %v1646 = vunpack.c.l.b16 %v1422
        %v1647 = vunpack.c.l.b16 %v1423
        %v1648 = vunpack.c.l.b16 %v1424
        %v1649 = vunpack.c.l.b16 %v1425
        %v1650 = vunpack.c.l.b16 %v1426
        %v1651 = vunpack.c.l.b16 %v1427
        %v1652 = vunpack.c.l.b16 %v1428
        %v1653 = vunpack.c.l.b16 %v1429
        %v1654 = vunpack.c.l.b16 %v1430
        %v1655 = vunpack.c.l.b16 %v1431
        %v1656 = vunpack.c.l.b16 %v1432
        %v1657 = vunpack.c.l.b16 %v1433
        %v1658 = vunpack.c.l.b16 %v1434
        %v1659 = vunpack.c.l.b16 %v1435
        %v1660 = vunpack.c.l.b16 %v1436
        %v1661 = vunpack.c.l.b16 %v1437
        %v1662 = vunpack.c.l.b16 %v1438
        %v1663 = vunpack.c.l.b16 %v1439
        %v1664 = vunpack.c.l.b16 %v1440
        %v1665 = vunpack.c.l.b16 %v1441
        %v1666 = vunpack.c.l.b16 %v1442
        %v1667 = vunpack.c.l.b16 %v1443
        %v1668 = vunpack.c.l.b16 %v1444
        %v1669 = vunpack.c.l.b16 %v1445
        %v1670 = vunpack.c.l.b16 %v1446
        %v1671 = vunpack.c.l.b16 %v1447
        %v1672 = vunpack.c.l.b16 %v1448
        %v1673 = vunpack.c.l.b16 %v1449
        %v1674 = vpack.c.b16 %v1563, %v1562
        %v1675 = vpack.c.b16 %v1565, %v1564
        %v1676 = vpack.c.b16 %v1567, %v1566
        %v1677 = vpack.c.b16 %v1569, %v1568
        %v1678 = vpack.c.b16 %v1571, %v1570
        %v1679 = vpack.c.b16 %v1573, %v1572
        %v1680 = vpack.c.b16 %v1575, %v1574
        %v1681 = vpack.c.b16 %v1577, %v1576
        %v1682 = vpack.c.b16 %v1579, %v1578
        %v1683 = vpack.c.b16 %v1581, %v1580
        %v1684 = vpack.c.b16 %v1583, %v1582
        %v1685 = vpack.c.b16 %v1585, %v1584
        %v1686 = vpack.c.b16 %v1587, %v1586
        %v1687 = vpack.c.b16 %v1589, %v1588
        %v1688 = vpack.c.b16 %v1591, %v1590
        %v1689 = vpack.c.b16 %v1593, %v1592
        %v1690 = vpack.c.b16 %v1595, %v1594
        %v1691 = vpack.c.b16 %v1597, %v1596
        %v1692 = vpack.c.b16 %v1599, %v1598
        %v1693 = vpack.c.b16 %v1601, %v1600
        %v1694 = vpack.c.b16 %v1603, %v1602
        %v1695 = vpack.c.b16 %v1605, %v1604
        %v1696 = vpack.c.b16 %v1607, %v1606
        %v1697 = vpack.c.b16 %v1609, %v1608
        %v1698 = vpack.c.b16 %v1611, %v1610
        %v1699 = vpack.c.b16 %v1613, %v1612
        %v1700 = vpack.c.b16 %v1615, %v1614
        %v1701 = vpack.c.b16 %v1617, %v1616
        %v1702 = vpack.c.b16 %v1619, %v1618
        %v1703 = vpack.c.b16 %v1621, %v1620
        %v1704 = vpack.c.b16 %v1623, %v1622
        %v1705 = vpack.c.b16 %v1625, %v1624
        %v1706 = vpack.c.b16 %v1627, %v1626
        %v1707 = vpack.c.b16 %v1629, %v1628
        %v1708 = vpack.c.b16 %v1631, %v1630
        %v1709 = vpack.c.b16 %v1633, %v1632
        %v1710 = vpack.c.b16 %v1635, %v1634
        %v1711 = vpack.c.b16 %v1637, %v1636
        %v1712 = vpack.c.b16 %v1639, %v1638
        %v1713 = vpack.c.b16 %v1641, %v1640
        %v1714 = vpack.c.b16 %v1643, %v1642
        %v1715 = vpack.c.b16 %v1645, %v1644
        %v1716 = vpack.c.b16 %v1647, %v1646
        %v1717 = vpack.c.b16 %v1649, %v1648
        %v1718 = vpack.c.b16 %v1651, %v1650
        %v1719 = vpack.c.b16 %v1653, %v1652
        %v1720 = vpack.c.b16 %v1655, %v1654
        %v1721 = vpack.c.b16 %v1657, %v1656
        %v1722 = vpack.c.b16 %v1659, %v1658
        %v1723 = vpack.c.b16 %v1661, %v1660
        %v1724 = vpack.c.b16 %v1663, %v1662
        %v1725 = vpack.c.b16 %v1665, %v1664
        %v1726 = vpack.c.b16 %v1667, %v1666
        %v1727 = vpack.c.b16 %v1669, %v1668
        %v1728 = vpack.c.b16 %v1671, %v1670
        %v1729 = vpack.c.b16 %v1673, %v1672
        %1786 = vmatprep.subr.bf16.mxu0 0
        %1787 = vmatpush1.bf16.msra.mxu0 %v1681
        %1788 = vmatprep.subr.bf16.mxu0 0
        %1789 = vmatpush1.bf16.msra.mxu0 %v1680
        %1790 = vmatprep.subr.bf16.mxu0 0
        %1791 = vmatpush1.bf16.msra.mxu0 %v1679
        %1792 = vmatprep.subr.bf16.mxu0 0
        %1793 = vmatpush1.bf16.msra.mxu0 %v1678
        %1794 = vmatprep.subr.bf16.mxu0 0
        %1795 = vmatpush1.bf16.msra.mxu0 %v1677
        %1796 = vmatprep.subr.bf16.mxu0 0
        %1797 = vmatpush1.bf16.msra.mxu0 %v1676
        %1798 = vmatprep.subr.bf16.mxu0 0
        %1799 = vmatpush1.bf16.msra.mxu0 %v1675
        %1800 = vmatprep.subr.bf16.mxu0 0
        %1801 = vmatpush1.bf16.msra.mxu0 %v1674
        %1802 = vmatprep.subr.bf16.mxu0 0
        %1803 = vmatpush2.bf16.msra.mxu0 %v1689
        %1804 = vmatprep.subr.bf16.mxu0 0
        %1805 = vmatpush2.bf16.msra.mxu0 %v1688
        %1806 = vmatprep.subr.bf16.mxu0 0
        %1807 = vmatpush2.bf16.msra.mxu0 %v1687
        %1808 = vmatprep.subr.bf16.mxu0 0
        %1809 = vmatpush2.bf16.msra.mxu0 %v1686
        %1810 = vmatprep.subr.bf16.mxu0 0
        %1811 = vmatpush2.bf16.msra.mxu0 %v1685
        %1812 = vmatprep.subr.bf16.mxu0 0
        %1813 = vmatpush2.bf16.msra.mxu0 %v1684
        %1814 = vmatprep.subr.bf16.mxu0 0
        %1815 = vmatpush2.bf16.msra.mxu0 %v1683
        %1816 = vmatprep.subr.bf16.mxu0 0
        %1817 = vmatpush2.bf16.msra.mxu0 %v1682
        %1818 = vmatprep.mubr.bf16.mxu0 %v1246
        %1819 = vmatmul.mubr.bf16.gmra.mxu0 %v1228
        %v1820 = vpop.f32.mrf.mxu0
        %v1821 = vadd.f32 0.0, %v1820
        %v1822 = vpop.f32.mrf.mxu0
        %v1823 = vpop.f32.mrf.mxu0
        %v1824 = vadd.f32 0.0, %v1823
        %v1825 = vpop.f32.mrf.mxu0
        %1826 = vmatprep.mubr.bf16.mxu0 %v1249
        %1827 = vmatmul.mubr.bf16.gmra.mxu0 %v1229
        %v1828 = vpop.f32.mrf.mxu0
        %v1829 = vadd.f32 0.0, %v1828
        %v1830 = vpop.f32.mrf.mxu0
        %v1831 = vpop.f32.mrf.mxu0
        %v1832 = vadd.f32 0.0, %v1831
        %v1833 = vpop.f32.mrf.mxu0
        %1834 = vdwg.mxu0
        %1835 = vmatprep.subr.bf16.mxu0 0
        %1836 = vmatpush1.bf16.msra.mxu0 %v1697
        %1837 = vmatprep.subr.bf16.mxu0 0
        %1838 = vmatpush1.bf16.msra.mxu0 %v1696
        %1839 = vmatprep.subr.bf16.mxu0 0
        %1840 = vmatpush1.bf16.msra.mxu0 %v1695
        %1841 = vmatprep.subr.bf16.mxu0 0
        %1842 = vmatpush1.bf16.msra.mxu0 %v1694
        %1843 = vmatprep.subr.bf16.mxu0 0
        %1844 = vmatpush1.bf16.msra.mxu0 %v1693
        %1845 = vmatprep.subr.bf16.mxu0 0
        %1846 = vmatpush1.bf16.msra.mxu0 %v1692
        %1847 = vmatprep.subr.bf16.mxu0 0
        %1848 = vmatpush1.bf16.msra.mxu0 %v1691
        %1849 = vmatprep.subr.bf16.mxu0 0
        %1850 = vmatpush1.bf16.msra.mxu0 %v1690
        %1851 = vmatprep.subr.bf16.mxu0 0
        %1852 = vmatpush2.bf16.msra.mxu0 %v1705
        %1853 = vmatprep.subr.bf16.mxu0 0
        %1854 = vmatpush2.bf16.msra.mxu0 %v1704
        %1855 = vmatprep.subr.bf16.mxu0 0
        %1856 = vmatpush2.bf16.msra.mxu0 %v1703
        %1857 = vmatprep.subr.bf16.mxu0 0
        %1858 = vmatpush2.bf16.msra.mxu0 %v1702
        %1859 = vmatprep.subr.bf16.mxu0 0
        %1860 = vmatpush2.bf16.msra.mxu0 %v1701
        %1861 = vmatprep.subr.bf16.mxu0 0
        %1862 = vmatpush2.bf16.msra.mxu0 %v1700
        %1863 = vmatprep.subr.bf16.mxu0 0
        %1864 = vmatpush2.bf16.msra.mxu0 %v1699
        %1865 = vmatprep.subr.bf16.mxu0 0
        %1866 = vmatpush2.bf16.msra.mxu0 %v1698
        %1867 = vmatprep.mubr.bf16.mxu0 %v1279
        %1868 = vmatmul.mubr.bf16.gmra.mxu0 %v1257
        %v1869 = vpop.f32.mrf.mxu0
        %v1870 = vadd.f32 %v1821, %v1869
        %v1871 = vpop.f32.mrf.mxu0
        %v1872 = vpop.f32.mrf.mxu0
        %v1873 = vadd.f32 %v1824, %v1872
        %v1874 = vpop.f32.mrf.mxu0
        %1875 = vmatprep.mubr.bf16.mxu0 %v1278
        %1876 = vmatmul.mubr.bf16.gmra.mxu0 %v1256
        %v1877 = vpop.f32.mrf.mxu0
        %v1878 = vadd.f32 %v1829, %v1877
        %v1879 = vpop.f32.mrf.mxu0
        %v1880 = vpop.f32.mrf.mxu0
        %v1881 = vadd.f32 %v1832, %v1880
        %v1882 = vpop.f32.mrf.mxu0
        %1883 = vdwg.mxu0
        %1884 = vmatprep.subr.bf16.mxu0 0
        %1885 = vmatpush1.bf16.msra.mxu0 %v1713
        %1886 = vmatprep.subr.bf16.mxu0 0
        %1887 = vmatpush1.bf16.msra.mxu0 %v1712
        %1888 = vmatprep.subr.bf16.mxu0 0
        %1889 = vmatpush1.bf16.msra.mxu0 %v1711
        %1890 = vmatprep.subr.bf16.mxu0 0
        %1891 = vmatpush1.bf16.msra.mxu0 %v1710
        %1892 = vmatprep.subr.bf16.mxu0 0
        %1893 = vmatpush1.bf16.msra.mxu0 %v1709
        %1894 = vmatprep.subr.bf16.mxu0 0
        %1895 = vmatpush1.bf16.msra.mxu0 %v1708
        %1896 = vmatprep.subr.bf16.mxu0 0
        %1897 = vmatpush1.bf16.msra.mxu0 %v1707
        %1898 = vmatprep.subr.bf16.mxu0 0
        %1899 = vmatpush1.bf16.msra.mxu0 %v1706
        %1900 = vmatprep.subr.bf16.mxu0 0
        %1901 = vmatpush2.bf16.msra.mxu0 %v1721
        %1902 = vmatprep.subr.bf16.mxu0 0
        %1903 = vmatpush2.bf16.msra.mxu0 %v1720
        %1904 = vmatprep.subr.bf16.mxu0 0
        %1905 = vmatpush2.bf16.msra.mxu0 %v1719
        %1906 = vmatprep.subr.bf16.mxu0 0
        %1907 = vmatpush2.bf16.msra.mxu0 %v1718
        %1908 = vmatprep.subr.bf16.mxu0 0
        %1909 = vmatpush2.bf16.msra.mxu0 %v1717
        %1910 = vmatprep.subr.bf16.mxu0 0
        %1911 = vmatpush2.bf16.msra.mxu0 %v1716
        %1912 = vmatprep.subr.bf16.mxu0 0
        %1913 = vmatpush2.bf16.msra.mxu0 %v1715
        %1914 = vmatprep.subr.bf16.mxu0 0
        %1915 = vmatpush2.bf16.msra.mxu0 %v1714
        %1916 = vmatprep.mubr.bf16.mxu0 %v1319
        %1917 = vmatmul.mubr.bf16.gmra.mxu0 %v1287
        %v1918 = vpop.f32.mrf.mxu0
        %v1919 = vadd.f32 %v1870, %v1918
        %v1920 = vpop.f32.mrf.mxu0
        %v1921 = vpop.f32.mrf.mxu0
        %v1922 = vadd.f32 %v1873, %v1921
        %v1923 = vpop.f32.mrf.mxu0
        %1924 = vmatprep.mubr.bf16.mxu0 %v1324
        %1925 = vmatmul.mubr.bf16.gmra.mxu0 %v1286
        %v1926 = vpop.f32.mrf.mxu0
        %v1927 = vadd.f32 %v1878, %v1926
        %v1928 = vpop.f32.mrf.mxu0
        %v1929 = vpop.f32.mrf.mxu0
        %v1930 = vadd.f32 %v1881, %v1929
        %v1931 = vpop.f32.mrf.mxu0
        %1932 = vdwg.mxu0
        %1933 = vmatprep.subr.bf16.mxu0 0
        %1934 = vmatpush1.bf16.msra.mxu0 %v1729
        %1935 = vmatprep.subr.bf16.mxu0 0
        %1936 = vmatpush1.bf16.msra.mxu0 %v1728
        %1937 = vmatprep.subr.bf16.mxu0 0
        %1938 = vmatpush1.bf16.msra.mxu0 %v1727
        %1939 = vmatprep.subr.bf16.mxu0 0
        %1940 = vmatpush1.bf16.msra.mxu0 %v1726
        %1941 = vmatprep.subr.bf16.mxu0 0
        %1942 = vmatpush1.bf16.msra.mxu0 %v1725
        %1943 = vmatprep.subr.bf16.mxu0 0
        %1944 = vmatpush1.bf16.msra.mxu0 %v1724
        %1945 = vmatprep.subr.bf16.mxu0 0
        %1946 = vmatpush1.bf16.msra.mxu0 %v1723
        %1947 = vmatprep.subr.bf16.mxu0 0
        %1948 = vmatpush1.bf16.msra.mxu0 %v1722
        %1949 = vmatprep.subr.bf16.mxu0 0
        %1950 = vmatpush2.bf16.msra.mxu0 0
        %1951 = vmatprep.subr.bf16.mxu0 0
        %1952 = vmatpush2.bf16.msra.mxu0 0
        %1953 = vmatprep.subr.bf16.mxu0 0
        %1954 = vmatpush2.bf16.msra.mxu0 0
        %1955 = vmatprep.subr.bf16.mxu0 0
        %1956 = vmatpush2.bf16.msra.mxu0 0
        %1957 = vmatprep.subr.bf16.mxu0 0
        %1958 = vmatpush2.bf16.msra.mxu0 0
        %1959 = vmatprep.subr.bf16.mxu0 0
        %1960 = vmatpush2.bf16.msra.mxu0 0
        %1961 = vmatprep.subr.bf16.mxu0 0
        %1962 = vmatpush2.bf16.msra.mxu0 0
        %1963 = vmatprep.subr.bf16.mxu0 0
        %1964 = vmatpush2.bf16.msra.mxu0 0
        %1965 = vmatprep.mubr.bf16.mxu0 0
        %1966 = vmatmul.mubr.bf16.gmra.mxu0 %v1332
        %v1967 = vpop.f32.mrf.mxu0
        %v1968 = vadd.f32 %v1919, %v1967
        %v1969 = vpop.f32.mrf.mxu0
        %v1970 = vpop.f32.mrf.mxu0
        %v1971 = vadd.f32 %v1922, %v1970
        %v1972 = vpop.f32.mrf.mxu0
        %1973 = vmatprep.mubr.bf16.mxu0 0
        %1974 = vmatmul.mubr.bf16.gmra.mxu0 %v1334
        %v1975 = vpop.f32.mrf.mxu0
        %v1976 = vadd.f32 %v1927, %v1975
        %v1977 = vpop.f32.mrf.mxu0
        %v1978 = vpop.f32.mrf.mxu0
        %v1979 = vadd.f32 %v1930, %v1978
        %v1980 = vpop.f32.mrf.mxu0
        %1981 = vdwg.mxu0
        %s1982 = scalar_lea.vmem [#allocation8], 1
        %v1983 = vld [vmem:[%s1982] sm:$0x1]
        %v1985 = vlaneseq
        %v1986 = vshrl.u32 %v1985, 7
        %v1987 = vsub.s32 0, %v1986
        %v1988 = vrot.slane %v1983, %v1987
        %v1990 = vmul.f32 %v1968, %v1988
        %v1991 = vmul.f32 %v1971, %v1988
        %v1992 = vmul.f32 %v1976, %v1988
        %v1993 = vmul.f32 %v1979, %v1988
        %s1994 = scalar_lea.vmem %s3, 1
        %v1995 = vld [vmem:[%s1994] sm:$0x1]
        %v1997 = vlaneseq
        %v1998 = vshrl.u32 %v1997, 7
        %v1999 = vsub.s32 0, %v1998
        %v2000 = vrot.slane %v1995, %v1999
        %v2002 = vadd.f32 %v1990, %v2000
        %v2003 = vadd.f32 %v1991, %v2000
        %v2004 = vadd.f32 %v1992, %v2000
        %v2005 = vadd.f32 %v1993, %v2000
        %v2006 = vmul.f32 %v2002, 0.5
        %v2007 = vmul.f32 %v2003, 0.5
        %v2008 = vmul.f32 %v2004, 0.5
        %v2009 = vmul.f32 %v2005, 0.5
        %v2010 = vmul.f32 %v2002, %v2002
        %v2011 = vmul.f32 %v2003, %v2003
        %v2012 = vmul.f32 %v2004, %v2004
        %v2013 = vmul.f32 %v2005, %v2005
        %v2014 = vmul.f32 %v2010, %v2002
        %v2015 = vmul.f32 %v2011, %v2003
        %v2016 = vmul.f32 %v2012, %v2004
        %v2017 = vmul.f32 %v2013, %v2005
        %v2018 = vmul.f32 %v2014, 0.044715
        %v2019 = vmul.f32 %v2015, 0.044715
        %v2020 = vmul.f32 %v2016, 0.044715
        %v2021 = vmul.f32 %v2017, 0.044715
        %v2022 = vadd.f32 %v2002, %v2018
        %v2023 = vadd.f32 %v2003, %v2019
        %v2024 = vadd.f32 %v2004, %v2020
        %v2025 = vadd.f32 %v2005, %v2021
        %v2026 = vmul.f32 %v2022, 0.7978846
        %v2027 = vmul.f32 %v2023, 0.7978846
        %v2028 = vmul.f32 %v2024, 0.7978846
        %v2029 = vmul.f32 %v2025, 0.7978846
        %v2030 = vtanh.pop %v2026
        %v2031 = vtanh.pop %v2027
        %v2032 = vtanh.pop %v2028
        %v2033 = vtanh.pop %v2029
        %v2034 = vadd.f32 %v2030, 1.0
        %v2035 = vadd.f32 %v2031, 1.0
        %v2036 = vadd.f32 %v2032, 1.0
        %v2037 = vadd.f32 %v2033, 1.0
        %v2038 = vmul.f32 %v2006, %v2034
        %v2039 = vmul.f32 %v2007, %v2035
        %v2040 = vmul.f32 %v2008, %v2036
        %v2041 = vmul.f32 %v2009, %v2037
        %v2042 = vpack.c.bf16 %v2039, %v2038
        %v2043 = vpack.c.bf16 %v2041, %v2040
        %v2046 = vunpack.c.l.b16 %v2042
        %v2047 = vunpack.c.h.b16 %v2042
        %v2048 = vunpack.c.l.b16 %v2043
        %v2049 = vunpack.c.h.b16 %v2043
        %v2050 = vpack.c.b16 %v2046, %v2046
        %v2051 = vpack.c.b16 %v2047, %v2047
        %v2052 = vpack.c.b16 %v2048, %v2048
        %v2053 = vpack.c.b16 %v2049, %v2049
        %2058 = vst [vmem:[#allocation3] sm:$0xf] %v2050
        %2059 = vst [vmem:[#allocation3 + $0x4] sm:$0xf] %v2051
        %2060 = vst [vmem:[#allocation3 + $0x8] sm:$0xf] %v2052
        %2061 = vst [vmem:[#allocation3 + $0xc] sm:$0x3] %v2053
        // Predicated region
        $region53: #{tpu_custom_call.1} parent=35 // pred_check
          %p2062 = pneg %p1188
        $region54: #{tpu_custom_call.1} parent=35 // pred_check_branch
          %2064 = sbr.rel (%p2062) target = $region56
        $region55: #{tpu_custom_call.1} parent=35 // pred_region
          %2065 = vst [vmem:[#allocation3] sm:$0x7] 0
          %2066 = vst [vmem:[#allocation3 + $0x8] sm:$0x8] 0
          %2067 = vst [vmem:[#allocation3 + $0xc] sm:$0x3] 0
        $region56: #{tpu_custom_call.1} parent=35 // pred_fallthru
          _
        %v2068 = vld [vmem:[#allocation3] sm:$0xf]
        %v2069 = vld [vmem:[#allocation3 + $0x4] sm:$0xf]
        %v2070 = vld [vmem:[#allocation3 + $0x8] sm:$0x7]
        %v2071 = vld [vmem:[#allocation3 + $0x8] sm:$0xf]
        %v2072 = vld [vmem:[#allocation3] sm:$0xe]
        %v2073 = vld [vmem:[#allocation3 + $0xc] sm:$0x1]
        %v2074 = vld [vmem:[#allocation3] sm:$0xc]
        %v2075 = vld [vmem:[#allocation3 + $0xc] sm:$0x3]
        %v2076 = vld [vmem:[#allocation3] sm:$0x8]
        %v2080 = vunpack.c.l.b16 %v2068
        %v2081 = vunpack.c.l.b16 %v2069
        %v2082 = vunpack.c.l.b16 %v2070
        %v2083 = vpack.c.b16 %v2081, %v2080
        %v2084 = vpack.c.b16 %v2082, %v2082
        %v2088 = vunpack.c.l.b16 %v2071
        %v2089 = vpack.c.b16 %v2088, %v2088
        %v2091 = vshrl.u32 %v2083, 16
        %v2093 = vshll.u32 %v2083, 16
        %v2095 = vrot.slane %v2093, 1
        %v2096 = vor.u32 %v2091, %v2095
        %v2098 = vshll.u32 %v2089, 16
        %v2100 = vrot.slane %v2098, 1
        %v2101 = vsel %vm302, %v2096, %v2100
        %v2102 = vshrl.u32 %v2089, 16
        %v2104 = vor.u32 %v2102, %v2100
        %v2108 = vunpack.c.l.b16 %v2072
        %v2109 = vpack.c.b16 %v2081, %v2108
        %v2110 = vrot.slane %v2109, 1
        %v2111 = vrot.slane %v2089, 1
        %v2112 = vsel %vm332, %v2110, %v2111
        %v2116 = vunpack.c.l.b16 %v2073
        %v2117 = vpack.c.b16 %v2116, %v2088
        %v2119 = vshrl.u32 %v2109, 16
        %v2121 = vrot.slane %v2119, 1
        %v2122 = vshll.u32 %v2109, 16
        %v2124 = vrot.slane %v2122, 2
        %v2125 = vor.u32 %v2121, %v2124
        %v2127 = vshrl.u32 %v2117, 16
        %v2129 = vrot.slane %v2127, 1
        %v2130 = vshll.u32 %v2117, 16
        %v2132 = vrot.slane %v2130, 2
        %v2133 = vor.u32 %v2129, %v2132
        %v2134 = vsel %vm344, %v2125, %v2133
        %v2138 = vunpack.c.l.b16 %v2074
        %v2139 = vpack.c.b16 %v2081, %v2138
        %v2140 = vrot.slane %v2139, 2
        %v2141 = vrot.slane %v2117, 2
        %v2142 = vsel %vm372, %v2140, %v2141
        %v2146 = vunpack.c.l.b16 %v2075
        %v2147 = vpack.c.b16 %v2146, %v2088
        %v2149 = vshrl.u32 %v2139, 16
        %v2151 = vrot.slane %v2149, 2
        %v2152 = vshll.u32 %v2139, 16
        %v2154 = vrot.slane %v2152, 3
        %v2155 = vor.u32 %v2151, %v2154
        %v2157 = vshrl.u32 %v2147, 16
        %v2159 = vrot.slane %v2157, 2
        %v2160 = vshll.u32 %v2147, 16
        %v2162 = vrot.slane %v2160, 3
        %v2163 = vor.u32 %v2159, %v2162
        %v2164 = vsel %vm384, %v2155, %v2163
        %v2168 = vunpack.c.l.b16 %v2076
        %v2169 = vpack.c.b16 %v2081, %v2168
        %v2170 = vrot.slane %v2169, 3
        %v2171 = vrot.slane %v2147, 3
        %v2172 = vsel %vm412, %v2170, %v2171
        %s2175 = scalar_lea.vmem [#allocation6], 896
        %v2176 = vld [vmem:[%s2175] sm:$0xf]
        %v2177 = vld [vmem:[%s2175 + $0x4] sm:$0xf]
        %v2178 = vld [vmem:[%s2175 + $0x8] sm:$0xf]
        %v2179 = vld [vmem:[%s2175 + $0xc] sm:$0xf]
        %v2180 = vld [vmem:[%s2175 + $0x10] sm:$0xf]
        %v2181 = vld [vmem:[%s2175 + $0x14] sm:$0xf]
        %v2182 = vld [vmem:[%s2175 + $0x18] sm:$0xf]
        %v2183 = vld [vmem:[%s2175 + $0x1c] sm:$0xf]
        %v2184 = vld [vmem:[%s2175 + $0x20] sm:$0xf]
        %v2185 = vld [vmem:[%s2175 + $0x24] sm:$0xf]
        %v2186 = vld [vmem:[%s2175 + $0x28] sm:$0xf]
        %v2187 = vld [vmem:[%s2175 + $0x2c] sm:$0xf]
        %v2188 = vld [vmem:[%s2175 + $0x30] sm:$0xf]
        %v2189 = vld [vmem:[%s2175 + $0x34] sm:$0xf]
        %v2190 = vld [vmem:[%s2175 + $0x38] sm:$0xf]
        %v2191 = vld [vmem:[%s2175 + $0x3c] sm:$0xf]
        %v2192 = vld [vmem:[%s2175 + $0x40] sm:$0xf]
        %v2193 = vld [vmem:[%s2175 + $0x44] sm:$0xf]
        %v2194 = vld [vmem:[%s2175 + $0x48] sm:$0xf]
        %v2195 = vld [vmem:[%s2175 + $0x4c] sm:$0xf]
        %v2196 = vld [vmem:[%s2175 + $0x50] sm:$0xf]
        %v2197 = vld [vmem:[%s2175 + $0x54] sm:$0xf]
        %v2198 = vld [vmem:[%s2175 + $0x58] sm:$0xf]
        %v2199 = vld [vmem:[%s2175 + $0x5c] sm:$0xf]
        %v2200 = vld [vmem:[%s2175 + $0x60] sm:$0xf]
        %v2201 = vld [vmem:[%s2175 + $0x64] sm:$0xf]
        %v2202 = vld [vmem:[%s2175 + $0x68] sm:$0xf]
        %v2203 = vld [vmem:[%s2175 + $0x6c] sm:$0xf]
        %v2204 = vld [vmem:[%s2175 + $0x70] sm:$0xf]
        %v2205 = vld [vmem:[%s2175 + $0x74] sm:$0xf]
        %v2206 = vld [vmem:[%s2175 + $0x78] sm:$0xf]
        %v2207 = vld [vmem:[%s2175 + $0x7c] sm:$0xf]
        %v2208 = vld [vmem:[%s2175 + $0x80] sm:$0xf]
        %v2209 = vld [vmem:[%s2175 + $0x84] sm:$0xf]
        %v2210 = vld [vmem:[%s2175 + $0x88] sm:$0xf]
        %v2211 = vld [vmem:[%s2175 + $0x8c] sm:$0xf]
        %v2212 = vld [vmem:[%s2175 + $0x90] sm:$0xf]
        %v2213 = vld [vmem:[%s2175 + $0x94] sm:$0xf]
        %v2214 = vld [vmem:[%s2175 + $0x98] sm:$0xf]
        %v2215 = vld [vmem:[%s2175 + $0x9c] sm:$0xf]
        %v2216 = vld [vmem:[%s2175 + $0xa0] sm:$0xf]
        %v2217 = vld [vmem:[%s2175 + $0xa4] sm:$0xf]
        %v2218 = vld [vmem:[%s2175 + $0xa8] sm:$0xf]
        %v2219 = vld [vmem:[%s2175 + $0xac] sm:$0xf]
        %v2220 = vld [vmem:[%s2175 + $0xb0] sm:$0xf]
        %v2221 = vld [vmem:[%s2175 + $0xb4] sm:$0xf]
        %v2222 = vld [vmem:[%s2175 + $0xb8] sm:$0xf]
        %v2223 = vld [vmem:[%s2175 + $0xbc] sm:$0xf]
        %v2224 = vld [vmem:[%s2175 + $0xc0] sm:$0xf]
        %v2225 = vld [vmem:[%s2175 + $0xc4] sm:$0xf]
        %v2226 = vld [vmem:[%s2175 + $0xc8] sm:$0xf]
        %v2227 = vld [vmem:[%s2175 + $0xcc] sm:$0xf]
        %v2228 = vld [vmem:[%s2175 + $0xd0] sm:$0xf]
        %v2229 = vld [vmem:[%s2175 + $0xd4] sm:$0xf]
        %v2230 = vld [vmem:[%s2175 + $0xd8] sm:$0xf]
        %v2231 = vld [vmem:[%s2175 + $0xdc] sm:$0xf]
        %v2232 = vld [vmem:[%s2175 + $0xe0] sm:$0xf]
        %v2233 = vld [vmem:[%s2175 + $0xe4] sm:$0xf]
        %v2234 = vld [vmem:[%s2175 + $0xe8] sm:$0xf]
        %v2235 = vld [vmem:[%s2175 + $0xec] sm:$0xf]
        %v2236 = vld [vmem:[%s2175 + $0xf0] sm:$0xf]
        %v2237 = vld [vmem:[%s2175 + $0xf4] sm:$0xf]
        %v2238 = vld [vmem:[%s2175 + $0xf8] sm:$0xf]
        %v2239 = vld [vmem:[%s2175 + $0xfc] sm:$0xf]
        %v2240 = vld [vmem:[%s2175 + $0x100] sm:$0xf]
        %v2241 = vld [vmem:[%s2175 + $0x104] sm:$0xf]
        %v2242 = vld [vmem:[%s2175 + $0x108] sm:$0xf]
        %v2243 = vld [vmem:[%s2175 + $0x10c] sm:$0xf]
        %v2244 = vld [vmem:[%s2175 + $0x110] sm:$0xf]
        %v2245 = vld [vmem:[%s2175 + $0x114] sm:$0xf]
        %v2246 = vld [vmem:[%s2175 + $0x118] sm:$0xf]
        %v2247 = vld [vmem:[%s2175 + $0x11c] sm:$0xf]
        %v2248 = vld [vmem:[%s2175 + $0x120] sm:$0xf]
        %v2249 = vld [vmem:[%s2175 + $0x124] sm:$0xf]
        %v2250 = vld [vmem:[%s2175 + $0x128] sm:$0xf]
        %v2251 = vld [vmem:[%s2175 + $0x12c] sm:$0xf]
        %v2252 = vld [vmem:[%s2175 + $0x130] sm:$0xf]
        %v2253 = vld [vmem:[%s2175 + $0x134] sm:$0xf]
        %v2254 = vld [vmem:[%s2175 + $0x138] sm:$0xf]
        %v2255 = vld [vmem:[%s2175 + $0x13c] sm:$0xf]
        %v2256 = vld [vmem:[%s2175 + $0x140] sm:$0xf]
        %v2257 = vld [vmem:[%s2175 + $0x144] sm:$0xf]
        %v2258 = vld [vmem:[%s2175 + $0x148] sm:$0xf]
        %v2259 = vld [vmem:[%s2175 + $0x14c] sm:$0xf]
        %v2260 = vld [vmem:[%s2175 + $0x150] sm:$0xf]
        %v2261 = vld [vmem:[%s2175 + $0x154] sm:$0xf]
        %v2262 = vld [vmem:[%s2175 + $0x158] sm:$0xf]
        %v2263 = vld [vmem:[%s2175 + $0x15c] sm:$0xf]
        %v2264 = vld [vmem:[%s2175 + $0x160] sm:$0xf]
        %v2265 = vld [vmem:[%s2175 + $0x164] sm:$0xf]
        %v2266 = vld [vmem:[%s2175 + $0x168] sm:$0xf]
        %v2267 = vld [vmem:[%s2175 + $0x16c] sm:$0xf]
        %v2268 = vld [vmem:[%s2175 + $0x170] sm:$0xf]
        %v2269 = vld [vmem:[%s2175 + $0x174] sm:$0xf]
        %v2270 = vld [vmem:[%s2175 + $0x178] sm:$0xf]
        %v2271 = vld [vmem:[%s2175 + $0x17c] sm:$0xf]
        %v2272 = vld [vmem:[%s2175 + $0x180] sm:$0xf]
        %v2273 = vld [vmem:[%s2175 + $0x184] sm:$0xf]
        %v2274 = vld [vmem:[%s2175 + $0x188] sm:$0xf]
        %v2275 = vld [vmem:[%s2175 + $0x18c] sm:$0xf]
        %v2276 = vld [vmem:[%s2175 + $0x190] sm:$0xf]
        %v2277 = vld [vmem:[%s2175 + $0x194] sm:$0xf]
        %v2278 = vld [vmem:[%s2175 + $0x198] sm:$0xf]
        %v2279 = vld [vmem:[%s2175 + $0x19c] sm:$0xf]
        %v2280 = vld [vmem:[%s2175 + $0x1a0] sm:$0xf]
        %v2281 = vld [vmem:[%s2175 + $0x1a4] sm:$0xf]
        %v2282 = vld [vmem:[%s2175 + $0x1a8] sm:$0xf]
        %v2283 = vld [vmem:[%s2175 + $0x1ac] sm:$0xf]
        %v2284 = vld [vmem:[%s2175 + $0x1b0] sm:$0xf]
        %v2285 = vld [vmem:[%s2175 + $0x1b4] sm:$0xf]
        %v2286 = vld [vmem:[%s2175 + $0x1b8] sm:$0xf]
        %v2287 = vld [vmem:[%s2175 + $0x1bc] sm:$0xf]
        %v2400 = vunpack.c.l.b16 %v2176
        %v2401 = vunpack.c.l.b16 %v2177
        %v2402 = vunpack.c.l.b16 %v2178
        %v2403 = vunpack.c.l.b16 %v2179
        %v2404 = vunpack.c.l.b16 %v2180
        %v2405 = vunpack.c.l.b16 %v2181
        %v2406 = vunpack.c.l.b16 %v2182
        %v2407 = vunpack.c.l.b16 %v2183
        %v2408 = vunpack.c.l.b16 %v2184
        %v2409 = vunpack.c.l.b16 %v2185
        %v2410 = vunpack.c.l.b16 %v2186
        %v2411 = vunpack.c.l.b16 %v2187
        %v2412 = vunpack.c.l.b16 %v2188
        %v2413 = vunpack.c.l.b16 %v2189
        %v2414 = vunpack.c.l.b16 %v2190
        %v2415 = vunpack.c.l.b16 %v2191
        %v2416 = vunpack.c.l.b16 %v2192
        %v2417 = vunpack.c.l.b16 %v2193
        %v2418 = vunpack.c.l.b16 %v2194
        %v2419 = vunpack.c.l.b16 %v2195
        %v2420 = vunpack.c.l.b16 %v2196
        %v2421 = vunpack.c.l.b16 %v2197
        %v2422 = vunpack.c.l.b16 %v2198
        %v2423 = vunpack.c.l.b16 %v2199
        %v2424 = vunpack.c.l.b16 %v2200
        %v2425 = vunpack.c.l.b16 %v2201
        %v2426 = vunpack.c.l.b16 %v2202
        %v2427 = vunpack.c.l.b16 %v2203
        %v2428 = vunpack.c.l.b16 %v2204
        %v2429 = vunpack.c.l.b16 %v2205
        %v2430 = vunpack.c.l.b16 %v2206
        %v2431 = vunpack.c.l.b16 %v2207
        %v2432 = vunpack.c.l.b16 %v2208
        %v2433 = vunpack.c.l.b16 %v2209
        %v2434 = vunpack.c.l.b16 %v2210
        %v2435 = vunpack.c.l.b16 %v2211
        %v2436 = vunpack.c.l.b16 %v2212
        %v2437 = vunpack.c.l.b16 %v2213
        %v2438 = vunpack.c.l.b16 %v2214
        %v2439 = vunpack.c.l.b16 %v2215
        %v2440 = vunpack.c.l.b16 %v2216
        %v2441 = vunpack.c.l.b16 %v2217
        %v2442 = vunpack.c.l.b16 %v2218
        %v2443 = vunpack.c.l.b16 %v2219
        %v2444 = vunpack.c.l.b16 %v2220
        %v2445 = vunpack.c.l.b16 %v2221
        %v2446 = vunpack.c.l.b16 %v2222
        %v2447 = vunpack.c.l.b16 %v2223
        %v2448 = vunpack.c.l.b16 %v2224
        %v2449 = vunpack.c.l.b16 %v2225
        %v2450 = vunpack.c.l.b16 %v2226
        %v2451 = vunpack.c.l.b16 %v2227
        %v2452 = vunpack.c.l.b16 %v2228
        %v2453 = vunpack.c.l.b16 %v2229
        %v2454 = vunpack.c.l.b16 %v2230
        %v2455 = vunpack.c.l.b16 %v2231
        %v2456 = vunpack.c.l.b16 %v2232
        %v2457 = vunpack.c.l.b16 %v2233
        %v2458 = vunpack.c.l.b16 %v2234
        %v2459 = vunpack.c.l.b16 %v2235
        %v2460 = vunpack.c.l.b16 %v2236
        %v2461 = vunpack.c.l.b16 %v2237
        %v2462 = vunpack.c.l.b16 %v2238
        %v2463 = vunpack.c.l.b16 %v2239
        %v2464 = vunpack.c.l.b16 %v2240
        %v2465 = vunpack.c.l.b16 %v2241
        %v2466 = vunpack.c.l.b16 %v2242
        %v2467 = vunpack.c.l.b16 %v2243
        %v2468 = vunpack.c.l.b16 %v2244
        %v2469 = vunpack.c.l.b16 %v2245
        %v2470 = vunpack.c.l.b16 %v2246
        %v2471 = vunpack.c.l.b16 %v2247
        %v2472 = vunpack.c.l.b16 %v2248
        %v2473 = vunpack.c.l.b16 %v2249
        %v2474 = vunpack.c.l.b16 %v2250
        %v2475 = vunpack.c.l.b16 %v2251
        %v2476 = vunpack.c.l.b16 %v2252
        %v2477 = vunpack.c.l.b16 %v2253
        %v2478 = vunpack.c.l.b16 %v2254
        %v2479 = vunpack.c.l.b16 %v2255
        %v2480 = vunpack.c.l.b16 %v2256
        %v2481 = vunpack.c.l.b16 %v2257
        %v2482 = vunpack.c.l.b16 %v2258
        %v2483 = vunpack.c.l.b16 %v2259
        %v2484 = vunpack.c.l.b16 %v2260
        %v2485 = vunpack.c.l.b16 %v2261
        %v2486 = vunpack.c.l.b16 %v2262
        %v2487 = vunpack.c.l.b16 %v2263
        %v2488 = vunpack.c.l.b16 %v2264
        %v2489 = vunpack.c.l.b16 %v2265
        %v2490 = vunpack.c.l.b16 %v2266
        %v2491 = vunpack.c.l.b16 %v2267
        %v2492 = vunpack.c.l.b16 %v2268
        %v2493 = vunpack.c.l.b16 %v2269
        %v2494 = vunpack.c.l.b16 %v2270
        %v2495 = vunpack.c.l.b16 %v2271
        %v2496 = vunpack.c.l.b16 %v2272
        %v2497 = vunpack.c.l.b16 %v2273
        %v2498 = vunpack.c.l.b16 %v2274
        %v2499 = vunpack.c.l.b16 %v2275
        %v2500 = vunpack.c.l.b16 %v2276
        %v2501 = vunpack.c.l.b16 %v2277
        %v2502 = vunpack.c.l.b16 %v2278
        %v2503 = vunpack.c.l.b16 %v2279
        %v2504 = vunpack.c.l.b16 %v2280
        %v2505 = vunpack.c.l.b16 %v2281
        %v2506 = vunpack.c.l.b16 %v2282
        %v2507 = vunpack.c.l.b16 %v2283
        %v2508 = vunpack.c.l.b16 %v2284
        %v2509 = vunpack.c.l.b16 %v2285
        %v2510 = vunpack.c.l.b16 %v2286
        %v2511 = vunpack.c.l.b16 %v2287
        %v2512 = vpack.c.b16 %v2401, %v2400
        %v2513 = vpack.c.b16 %v2403, %v2402
        %v2514 = vpack.c.b16 %v2405, %v2404
        %v2515 = vpack.c.b16 %v2407, %v2406
        %v2516 = vpack.c.b16 %v2409, %v2408
        %v2517 = vpack.c.b16 %v2411, %v2410
        %v2518 = vpack.c.b16 %v2413, %v2412
        %v2519 = vpack.c.b16 %v2415, %v2414
        %v2520 = vpack.c.b16 %v2417, %v2416
        %v2521 = vpack.c.b16 %v2419, %v2418
        %v2522 = vpack.c.b16 %v2421, %v2420
        %v2523 = vpack.c.b16 %v2423, %v2422
        %v2524 = vpack.c.b16 %v2425, %v2424
        %v2525 = vpack.c.b16 %v2427, %v2426
        %v2526 = vpack.c.b16 %v2429, %v2428
        %v2527 = vpack.c.b16 %v2431, %v2430
        %v2528 = vpack.c.b16 %v2433, %v2432
        %v2529 = vpack.c.b16 %v2435, %v2434
        %v2530 = vpack.c.b16 %v2437, %v2436
        %v2531 = vpack.c.b16 %v2439, %v2438
        %v2532 = vpack.c.b16 %v2441, %v2440
        %v2533 = vpack.c.b16 %v2443, %v2442
        %v2534 = vpack.c.b16 %v2445, %v2444
        %v2535 = vpack.c.b16 %v2447, %v2446
        %v2536 = vpack.c.b16 %v2449, %v2448
        %v2537 = vpack.c.b16 %v2451, %v2450
        %v2538 = vpack.c.b16 %v2453, %v2452
        %v2539 = vpack.c.b16 %v2455, %v2454
        %v2540 = vpack.c.b16 %v2457, %v2456
        %v2541 = vpack.c.b16 %v2459, %v2458
        %v2542 = vpack.c.b16 %v2461, %v2460
        %v2543 = vpack.c.b16 %v2463, %v2462
        %v2544 = vpack.c.b16 %v2465, %v2464
        %v2545 = vpack.c.b16 %v2467, %v2466
        %v2546 = vpack.c.b16 %v2469, %v2468
        %v2547 = vpack.c.b16 %v2471, %v2470
        %v2548 = vpack.c.b16 %v2473, %v2472
        %v2549 = vpack.c.b16 %v2475, %v2474
        %v2550 = vpack.c.b16 %v2477, %v2476
        %v2551 = vpack.c.b16 %v2479, %v2478
        %v2552 = vpack.c.b16 %v2481, %v2480
        %v2553 = vpack.c.b16 %v2483, %v2482
        %v2554 = vpack.c.b16 %v2485, %v2484
        %v2555 = vpack.c.b16 %v2487, %v2486
        %v2556 = vpack.c.b16 %v2489, %v2488
        %v2557 = vpack.c.b16 %v2491, %v2490
        %v2558 = vpack.c.b16 %v2493, %v2492
        %v2559 = vpack.c.b16 %v2495, %v2494
        %v2560 = vpack.c.b16 %v2497, %v2496
        %v2561 = vpack.c.b16 %v2499, %v2498
        %v2562 = vpack.c.b16 %v2501, %v2500
        %v2563 = vpack.c.b16 %v2503, %v2502
        %v2564 = vpack.c.b16 %v2505, %v2504
        %v2565 = vpack.c.b16 %v2507, %v2506
        %v2566 = vpack.c.b16 %v2509, %v2508
        %v2567 = vpack.c.b16 %v2511, %v2510
        %2624 = vmatprep.subr.bf16.mxu0 0
        %2625 = vmatpush1.bf16.msra.mxu0 %v2519
        %2626 = vmatprep.subr.bf16.mxu0 0
        %2627 = vmatpush1.bf16.msra.mxu0 %v2518
        %2628 = vmatprep.subr.bf16.mxu0 0
        %2629 = vmatpush1.bf16.msra.mxu0 %v2517
        %2630 = vmatprep.subr.bf16.mxu0 0
        %2631 = vmatpush1.bf16.msra.mxu0 %v2516
        %2632 = vmatprep.subr.bf16.mxu0 0
        %2633 = vmatpush1.bf16.msra.mxu0 %v2515
        %2634 = vmatprep.subr.bf16.mxu0 0
        %2635 = vmatpush1.bf16.msra.mxu0 %v2514
        %2636 = vmatprep.subr.bf16.mxu0 0
        %2637 = vmatpush1.bf16.msra.mxu0 %v2513
        %2638 = vmatprep.subr.bf16.mxu0 0
        %2639 = vmatpush1.bf16.msra.mxu0 %v2512
        %2640 = vmatprep.subr.bf16.mxu0 0
        %2641 = vmatpush2.bf16.msra.mxu0 %v2527
        %2642 = vmatprep.subr.bf16.mxu0 0
        %2643 = vmatpush2.bf16.msra.mxu0 %v2526
        %2644 = vmatprep.subr.bf16.mxu0 0
        %2645 = vmatpush2.bf16.msra.mxu0 %v2525
        %2646 = vmatprep.subr.bf16.mxu0 0
        %2647 = vmatpush2.bf16.msra.mxu0 %v2524
        %2648 = vmatprep.subr.bf16.mxu0 0
        %2649 = vmatpush2.bf16.msra.mxu0 %v2523
        %2650 = vmatprep.subr.bf16.mxu0 0
        %2651 = vmatpush2.bf16.msra.mxu0 %v2522
        %2652 = vmatprep.subr.bf16.mxu0 0
        %2653 = vmatpush2.bf16.msra.mxu0 %v2521
        %2654 = vmatprep.subr.bf16.mxu0 0
        %2655 = vmatpush2.bf16.msra.mxu0 %v2520
        %2656 = vmatprep.mubr.bf16.mxu0 %v2101
        %2657 = vmatmul.mubr.bf16.gmra.mxu0 %v2083
        %v2658 = vpop.f32.mrf.mxu0
        %v2659 = vadd.f32 0.0, %v2658
        %v2660 = vpop.f32.mrf.mxu0
        %v2661 = vpop.f32.mrf.mxu0
        %v2662 = vadd.f32 0.0, %v2661
        %v2663 = vpop.f32.mrf.mxu0
        %2664 = vmatprep.mubr.bf16.mxu0 %v2104
        %2665 = vmatmul.mubr.bf16.gmra.mxu0 %v2084
        %v2666 = vpop.f32.mrf.mxu0
        %v2667 = vadd.f32 0.0, %v2666
        %v2668 = vpop.f32.mrf.mxu0
        %v2669 = vpop.f32.mrf.mxu0
        %v2670 = vpop.f32.mrf.mxu0
        %2671 = vdwg.mxu0
        %2672 = vmatprep.subr.bf16.mxu0 0
        %2673 = vmatpush1.bf16.msra.mxu0 %v2535
        %2674 = vmatprep.subr.bf16.mxu0 0
        %2675 = vmatpush1.bf16.msra.mxu0 %v2534
        %2676 = vmatprep.subr.bf16.mxu0 0
        %2677 = vmatpush1.bf16.msra.mxu0 %v2533
        %2678 = vmatprep.subr.bf16.mxu0 0
        %2679 = vmatpush1.bf16.msra.mxu0 %v2532
        %2680 = vmatprep.subr.bf16.mxu0 0
        %2681 = vmatpush1.bf16.msra.mxu0 %v2531
        %2682 = vmatprep.subr.bf16.mxu0 0
        %2683 = vmatpush1.bf16.msra.mxu0 %v2530
        %2684 = vmatprep.subr.bf16.mxu0 0
        %2685 = vmatpush1.bf16.msra.mxu0 %v2529
        %2686 = vmatprep.subr.bf16.mxu0 0
        %2687 = vmatpush1.bf16.msra.mxu0 %v2528
        %2688 = vmatprep.subr.bf16.mxu0 0
        %2689 = vmatpush2.bf16.msra.mxu0 %v2543
        %2690 = vmatprep.subr.bf16.mxu0 0
        %2691 = vmatpush2.bf16.msra.mxu0 %v2542
        %2692 = vmatprep.subr.bf16.mxu0 0
        %2693 = vmatpush2.bf16.msra.mxu0 %v2541
        %2694 = vmatprep.subr.bf16.mxu0 0
        %2695 = vmatpush2.bf16.msra.mxu0 %v2540
        %2696 = vmatprep.subr.bf16.mxu0 0
        %2697 = vmatpush2.bf16.msra.mxu0 %v2539
        %2698 = vmatprep.subr.bf16.mxu0 0
        %2699 = vmatpush2.bf16.msra.mxu0 %v2538
        %2700 = vmatprep.subr.bf16.mxu0 0
        %2701 = vmatpush2.bf16.msra.mxu0 %v2537
        %2702 = vmatprep.subr.bf16.mxu0 0
        %2703 = vmatpush2.bf16.msra.mxu0 %v2536
        %2704 = vmatprep.mubr.bf16.mxu0 %v2134
        %2705 = vmatmul.mubr.bf16.gmra.mxu0 %v2112
        %v2706 = vpop.f32.mrf.mxu0
        %v2707 = vadd.f32 %v2659, %v2706
        %v2708 = vpop.f32.mrf.mxu0
        %v2709 = vpop.f32.mrf.mxu0
        %v2710 = vadd.f32 %v2662, %v2709
        %v2711 = vpop.f32.mrf.mxu0
        %2712 = vmatprep.mubr.bf16.mxu0 %v2133
        %2713 = vmatmul.mubr.bf16.gmra.mxu0 %v2111
        %v2714 = vpop.f32.mrf.mxu0
        %v2715 = vadd.f32 %v2667, %v2714
        %v2716 = vpop.f32.mrf.mxu0
        %v2717 = vpop.f32.mrf.mxu0
        %v2718 = vpop.f32.mrf.mxu0
        %2719 = vdwg.mxu0
        %2720 = vmatprep.subr.bf16.mxu0 0
        %2721 = vmatpush1.bf16.msra.mxu0 %v2551
        %2722 = vmatprep.subr.bf16.mxu0 0
        %2723 = vmatpush1.bf16.msra.mxu0 %v2550
        %2724 = vmatprep.subr.bf16.mxu0 0
        %2725 = vmatpush1.bf16.msra.mxu0 %v2549
        %2726 = vmatprep.subr.bf16.mxu0 0
        %2727 = vmatpush1.bf16.msra.mxu0 %v2548
        %2728 = vmatprep.subr.bf16.mxu0 0
        %2729 = vmatpush1.bf16.msra.mxu0 %v2547
        %2730 = vmatprep.subr.bf16.mxu0 0
        %2731 = vmatpush1.bf16.msra.mxu0 %v2546
        %2732 = vmatprep.subr.bf16.mxu0 0
        %2733 = vmatpush1.bf16.msra.mxu0 %v2545
        %2734 = vmatprep.subr.bf16.mxu0 0
        %2735 = vmatpush1.bf16.msra.mxu0 %v2544
        %2736 = vmatprep.subr.bf16.mxu0 0
        %2737 = vmatpush2.bf16.msra.mxu0 %v2559
        %2738 = vmatprep.subr.bf16.mxu0 0
        %2739 = vmatpush2.bf16.msra.mxu0 %v2558
        %2740 = vmatprep.subr.bf16.mxu0 0
        %2741 = vmatpush2.bf16.msra.mxu0 %v2557
        %2742 = vmatprep.subr.bf16.mxu0 0
        %2743 = vmatpush2.bf16.msra.mxu0 %v2556
        %2744 = vmatprep.subr.bf16.mxu0 0
        %2745 = vmatpush2.bf16.msra.mxu0 %v2555
        %2746 = vmatprep.subr.bf16.mxu0 0
        %2747 = vmatpush2.bf16.msra.mxu0 %v2554
        %2748 = vmatprep.subr.bf16.mxu0 0
        %2749 = vmatpush2.bf16.msra.mxu0 %v2553
        %2750 = vmatprep.subr.bf16.mxu0 0
        %2751 = vmatpush2.bf16.msra.mxu0 %v2552
        %2752 = vmatprep.mubr.bf16.mxu0 %v2164
        %2753 = vmatmul.mubr.bf16.gmra.mxu0 %v2142
        %v2754 = vpop.f32.mrf.mxu0
        %v2755 = vadd.f32 %v2707, %v2754
        %v2756 = vpop.f32.mrf.mxu0
        %v2757 = vpop.f32.mrf.mxu0
        %v2758 = vadd.f32 %v2710, %v2757
        %v2759 = vpop.f32.mrf.mxu0
        %2760 = vmatprep.mubr.bf16.mxu0 %v2163
        %2761 = vmatmul.mubr.bf16.gmra.mxu0 %v2141
        %v2762 = vpop.f32.mrf.mxu0
        %v2763 = vadd.f32 %v2715, %v2762
        %v2764 = vpop.f32.mrf.mxu0
        %v2765 = vpop.f32.mrf.mxu0
        %v2766 = vpop.f32.mrf.mxu0
        %2767 = vdwg.mxu0
        %2768 = vmatprep.subr.bf16.mxu0 0
        %2769 = vmatpush1.bf16.msra.mxu0 %v2567
        %2770 = vmatprep.subr.bf16.mxu0 0
        %2771 = vmatpush1.bf16.msra.mxu0 %v2566
        %2772 = vmatprep.subr.bf16.mxu0 0
        %2773 = vmatpush1.bf16.msra.mxu0 %v2565
        %2774 = vmatprep.subr.bf16.mxu0 0
        %2775 = vmatpush1.bf16.msra.mxu0 %v2564
        %2776 = vmatprep.subr.bf16.mxu0 0
        %2777 = vmatpush1.bf16.msra.mxu0 %v2563
        %2778 = vmatprep.subr.bf16.mxu0 0
        %2779 = vmatpush1.bf16.msra.mxu0 %v2562
        %2780 = vmatprep.subr.bf16.mxu0 0
        %2781 = vmatpush1.bf16.msra.mxu0 %v2561
        %2782 = vmatprep.subr.bf16.mxu0 0
        %2783 = vmatpush1.bf16.msra.mxu0 %v2560
        %2784 = vmatprep.subr.bf16.mxu0 0
        %2785 = vmatpush2.bf16.msra.mxu0 0
        %2786 = vmatprep.subr.bf16.mxu0 0
        %2787 = vmatpush2.bf16.msra.mxu0 0
        %2788 = vmatprep.subr.bf16.mxu0 0
        %2789 = vmatpush2.bf16.msra.mxu0 0
        %2790 = vmatprep.subr.bf16.mxu0 0
        %2791 = vmatpush2.bf16.msra.mxu0 0
        %2792 = vmatprep.subr.bf16.mxu0 0
        %2793 = vmatpush2.bf16.msra.mxu0 0
        %2794 = vmatprep.subr.bf16.mxu0 0
        %2795 = vmatpush2.bf16.msra.mxu0 0
        %2796 = vmatprep.subr.bf16.mxu0 0
        %2797 = vmatpush2.bf16.msra.mxu0 0
        %2798 = vmatprep.subr.bf16.mxu0 0
        %2799 = vmatpush2.bf16.msra.mxu0 0
        %2800 = vmatprep.mubr.bf16.mxu0 0
        %2801 = vmatmul.mubr.bf16.gmra.mxu0 %v2172
        %v2802 = vpop.f32.mrf.mxu0
        %v2803 = vadd.f32 %v2755, %v2802
        %v2804 = vpop.f32.mrf.mxu0
        %v2805 = vpop.f32.mrf.mxu0
        %v2806 = vadd.f32 %v2758, %v2805
        %v2807 = vpop.f32.mrf.mxu0
        %2808 = vmatprep.mubr.bf16.mxu0 0
        %2809 = vmatmul.mubr.bf16.gmra.mxu0 %v2171
        %v2810 = vpop.f32.mrf.mxu0
        %v2811 = vadd.f32 %v2763, %v2810
        %v2812 = vpop.f32.mrf.mxu0
        %v2813 = vpop.f32.mrf.mxu0
        %v2814 = vpop.f32.mrf.mxu0
        %2815 = vdwg.mxu0
        %s2816 = scalar_lea.vmem [#allocation8], 2
        %v2817 = vld [vmem:[%s2816] sm:$0x1]
        %v2819 = vlaneseq
        %v2820 = vshrl.u32 %v2819, 7
        %v2821 = vsub.s32 0, %v2820
        %v2822 = vrot.slane %v2817, %v2821
        %v2824 = vmul.f32 %v2803, %v2822
        %v2825 = vmul.f32 %v2806, %v2822
        %v2826 = vmul.f32 %v2811, %v2822
        %s2827 = scalar_lea.vmem %s3, 2
        %v2828 = vld [vmem:[%s2827] sm:$0x1]
        %v2830 = vlaneseq
        %v2831 = vshrl.u32 %v2830, 7
        %v2832 = vsub.s32 0, %v2831
        %v2833 = vrot.slane %v2828, %v2832
        %v2835 = vadd.f32 %v2824, %v2833
        %v2836 = vadd.f32 %v2825, %v2833
        %v2837 = vadd.f32 %v2826, %v2833
        %v2838 = vmul.f32 %v2835, 0.5
        %v2839 = vmul.f32 %v2836, 0.5
        %v2840 = vmul.f32 %v2837, 0.5
        %v2841 = vmul.f32 %v2835, %v2835
        %v2842 = vmul.f32 %v2836, %v2836
        %v2843 = vmul.f32 %v2837, %v2837
        %v2844 = vmul.f32 %v2841, %v2835
        %v2845 = vmul.f32 %v2842, %v2836
        %v2846 = vmul.f32 %v2843, %v2837
        %v2847 = vmul.f32 %v2844, 0.044715
        %v2848 = vmul.f32 %v2845, 0.044715
        %v2849 = vmul.f32 %v2846, 0.044715
        %v2850 = vadd.f32 %v2835, %v2847
        %v2851 = vadd.f32 %v2836, %v2848
        %v2852 = vadd.f32 %v2837, %v2849
        %v2853 = vmul.f32 %v2850, 0.7978846
        %v2854 = vmul.f32 %v2851, 0.7978846
        %v2855 = vmul.f32 %v2852, 0.7978846
        %v2856 = vtanh.pop %v2853
        %v2857 = vtanh.pop %v2854
        %v2858 = vtanh.pop %v2855
        %v2859 = vadd.f32 %v2856, 1.0
        %v2860 = vadd.f32 %v2857, 1.0
        %v2861 = vadd.f32 %v2858, 1.0
        %v2862 = vmul.f32 %v2838, %v2859
        %v2863 = vmul.f32 %v2839, %v2860
        %v2864 = vmul.f32 %v2840, %v2861
        %v2865 = vpack.c.bf16 %v2863, %v2862
        %v2866 = vpack.c.bf16 %v2864, %v2864
        %v2869 = vunpack.c.l.b16 %v2865
        %v2870 = vunpack.c.h.b16 %v2865
        %v2871 = vunpack.c.l.b16 %v2866
        %v2872 = vpack.c.b16 %v2869, %v2869
        %v2873 = vpack.c.b16 %v2870, %v2870
        %v2874 = vpack.c.b16 %v2871, %v2871
        %2878 = vst [vmem:[#allocation2] sm:$0xf] %v2872
        %2879 = vst [vmem:[#allocation2 + $0x4] sm:$0xf] %v2873
        %2880 = vst [vmem:[#allocation2 + $0x8] sm:$0x7] %v2874
        // Predicated region
        $region57: #{tpu_custom_call.1} parent=35 // pred_check
          %p2881 = pneg %p1188
        $region58: #{tpu_custom_call.1} parent=35 // pred_check_branch
          %2883 = sbr.rel (%p2881) target = $region60
        $region59: #{tpu_custom_call.1} parent=35 // pred_region
          %vm2884 = vcmask 1041408
          %vm2885 = vsmask.f32 1280
          %vm2886 = vmand %vm2884, %vm2885
          %v2887 = vld [vmem:[#allocation2] sm:$0x3]
          %v2888 = vsel %vm2886, 0, %v2887
          %2889 = vst [vmem:[#allocation2] sm:$0x3] %v2888
          %vm2890 = vcmask 1042433
          %vm2891 = vsmask.f32 7942
          %vm2892 = vmand %vm2890, %vm2891
          %v2893 = vld [vmem:[#allocation2 + $0x8] sm:$0x6]
          %v2894 = vsel %vm2892, 0, %v2893
          %2895 = vst [vmem:[#allocation2 + $0x8] sm:$0x6] %v2894
        $region60: #{tpu_custom_call.1} parent=35 // pred_fallthru
          _
        %v2896 = vld [vmem:[#allocation2] sm:$0xf]
        %v2897 = vld [vmem:[#allocation2 + $0x4] sm:$0xf]
        %v2898 = vld [vmem:[#allocation2 + $0x8] sm:$0x1]
        %v2899 = vld [vmem:[#allocation2] sm:$0xe]
        %v2900 = vld [vmem:[#allocation2 + $0x8] sm:$0x3]
        %v2901 = vld [vmem:[#allocation2] sm:$0xc]
        %v2902 = vld [vmem:[#allocation2 + $0x8] sm:$0x7]
        %v2903 = vld [vmem:[#allocation2] sm:$0x8]
        %v2906 = vunpack.c.l.b16 %v2896
        %v2907 = vunpack.c.l.b16 %v2897
        %v2908 = vpack.c.b16 %v2907, %v2906
        %v2911 = vunpack.c.l.b16 %v2898
        %v2912 = vpack.c.b16 %v2911, %v2911
        %v2914 = vshrl.u32 %v2908, 16
        %v2916 = vshll.u32 %v2908, 16
        %v2918 = vrot.slane %v2916, 1
        %v2919 = vor.u32 %v2914, %v2918
        %v2921 = vshll.u32 %v2912, 16
        %v2923 = vrot.slane %v2921, 1
        %v2924 = vsel %vm302, %v2919, %v2923
        %v2927 = vunpack.c.l.b16 %v2899
        %v2928 = vpack.c.b16 %v2907, %v2927
        %v2929 = vrot.slane %v2928, 1
        %v2930 = vrot.slane %v2912, 1
        %v2931 = vsel %vm332, %v2929, %v2930
        %v2934 = vunpack.c.l.b16 %v2900
        %v2935 = vpack.c.b16 %v2934, %v2934
        %v2937 = vshrl.u32 %v2928, 16
        %v2939 = vrot.slane %v2937, 1
        %v2940 = vshll.u32 %v2928, 16
        %v2942 = vrot.slane %v2940, 2
        %v2943 = vor.u32 %v2939, %v2942
        %v2945 = vshrl.u32 %v2935, 16
        %v2947 = vrot.slane %v2945, 1
        %v2948 = vshll.u32 %v2935, 16
        %v2950 = vrot.slane %v2948, 2
        %v2951 = vor.u32 %v2947, %v2950
        %v2952 = vsel %vm344, %v2943, %v2951
        %v2955 = vunpack.c.l.b16 %v2901
        %v2956 = vpack.c.b16 %v2907, %v2955
        %v2957 = vrot.slane %v2956, 2
        %v2958 = vrot.slane %v2935, 2
        %v2959 = vsel %vm372, %v2957, %v2958
        %v2962 = vunpack.c.l.b16 %v2902
        %v2963 = vpack.c.b16 %v2962, %v2962
        %v2965 = vshrl.u32 %v2956, 16
        %v2967 = vrot.slane %v2965, 2
        %v2968 = vshll.u32 %v2956, 16
        %v2970 = vrot.slane %v2968, 3
        %v2971 = vor.u32 %v2967, %v2970
        %v2973 = vshrl.u32 %v2963, 16
        %v2975 = vrot.slane %v2973, 2
        %v2976 = vshll.u32 %v2963, 16
        %v2978 = vrot.slane %v2976, 3
        %v2979 = vor.u32 %v2975, %v2978
        %v2980 = vsel %vm384, %v2971, %v2979
        %v2983 = vunpack.c.l.b16 %v2903
        %v2984 = vpack.c.b16 %v2907, %v2983
        %v2985 = vrot.slane %v2984, 3
        %v2986 = vrot.slane %v2963, 3
        %v2987 = vsel %vm412, %v2985, %v2986
        %s2989 = scalar_lea.vmem [#allocation6], 1344
        %v2990 = vld [vmem:[%s2989] sm:$0xf]
        %v2991 = vld [vmem:[%s2989 + $0x4] sm:$0xf]
        %v2992 = vld [vmem:[%s2989 + $0x8] sm:$0xf]
        %v2993 = vld [vmem:[%s2989 + $0xc] sm:$0xf]
        %v2994 = vld [vmem:[%s2989 + $0x10] sm:$0xf]
        %v2995 = vld [vmem:[%s2989 + $0x14] sm:$0xf]
        %v2996 = vld [vmem:[%s2989 + $0x18] sm:$0xf]
        %v2997 = vld [vmem:[%s2989 + $0x1c] sm:$0xf]
        %v2998 = vld [vmem:[%s2989 + $0x20] sm:$0xf]
        %v2999 = vld [vmem:[%s2989 + $0x24] sm:$0xf]
        %v3000 = vld [vmem:[%s2989 + $0x28] sm:$0xf]
        %v3001 = vld [vmem:[%s2989 + $0x2c] sm:$0xf]
        %v3002 = vld [vmem:[%s2989 + $0x30] sm:$0xf]
        %v3003 = vld [vmem:[%s2989 + $0x34] sm:$0xf]
        %v3004 = vld [vmem:[%s2989 + $0x38] sm:$0xf]
        %v3005 = vld [vmem:[%s2989 + $0x3c] sm:$0xf]
        %v3006 = vld [vmem:[%s2989 + $0x40] sm:$0xf]
        %v3007 = vld [vmem:[%s2989 + $0x44] sm:$0xf]
        %v3008 = vld [vmem:[%s2989 + $0x48] sm:$0xf]
        %v3009 = vld [vmem:[%s2989 + $0x4c] sm:$0xf]
        %v3010 = vld [vmem:[%s2989 + $0x50] sm:$0xf]
        %v3011 = vld [vmem:[%s2989 + $0x54] sm:$0xf]
        %v3012 = vld [vmem:[%s2989 + $0x58] sm:$0xf]
        %v3013 = vld [vmem:[%s2989 + $0x5c] sm:$0xf]
        %v3014 = vld [vmem:[%s2989 + $0x60] sm:$0xf]
        %v3015 = vld [vmem:[%s2989 + $0x64] sm:$0xf]
        %v3016 = vld [vmem:[%s2989 + $0x68] sm:$0xf]
        %v3017 = vld [vmem:[%s2989 + $0x6c] sm:$0xf]
        %v3018 = vld [vmem:[%s2989 + $0x70] sm:$0xf]
        %v3019 = vld [vmem:[%s2989 + $0x74] sm:$0xf]
        %v3020 = vld [vmem:[%s2989 + $0x78] sm:$0xf]
        %v3021 = vld [vmem:[%s2989 + $0x7c] sm:$0xf]
        %v3022 = vld [vmem:[%s2989 + $0x80] sm:$0xf]
        %v3023 = vld [vmem:[%s2989 + $0x84] sm:$0xf]
        %v3024 = vld [vmem:[%s2989 + $0x88] sm:$0xf]
        %v3025 = vld [vmem:[%s2989 + $0x8c] sm:$0xf]
        %v3026 = vld [vmem:[%s2989 + $0x90] sm:$0xf]
        %v3027 = vld [vmem:[%s2989 + $0x94] sm:$0xf]
        %v3028 = vld [vmem:[%s2989 + $0x98] sm:$0xf]
        %v3029 = vld [vmem:[%s2989 + $0x9c] sm:$0xf]
        %v3030 = vld [vmem:[%s2989 + $0xa0] sm:$0xf]
        %v3031 = vld [vmem:[%s2989 + $0xa4] sm:$0xf]
        %v3032 = vld [vmem:[%s2989 + $0xa8] sm:$0xf]
        %v3033 = vld [vmem:[%s2989 + $0xac] sm:$0xf]
        %v3034 = vld [vmem:[%s2989 + $0xb0] sm:$0xf]
        %v3035 = vld [vmem:[%s2989 + $0xb4] sm:$0xf]
        %v3036 = vld [vmem:[%s2989 + $0xb8] sm:$0xf]
        %v3037 = vld [vmem:[%s2989 + $0xbc] sm:$0xf]
        %v3038 = vld [vmem:[%s2989 + $0xc0] sm:$0xf]
        %v3039 = vld [vmem:[%s2989 + $0xc4] sm:$0xf]
        %v3040 = vld [vmem:[%s2989 + $0xc8] sm:$0xf]
        %v3041 = vld [vmem:[%s2989 + $0xcc] sm:$0xf]
        %v3042 = vld [vmem:[%s2989 + $0xd0] sm:$0xf]
        %v3043 = vld [vmem:[%s2989 + $0xd4] sm:$0xf]
        %v3044 = vld [vmem:[%s2989 + $0xd8] sm:$0xf]
        %v3045 = vld [vmem:[%s2989 + $0xdc] sm:$0xf]
        %v3046 = vld [vmem:[%s2989 + $0xe0] sm:$0xf]
        %v3047 = vld [vmem:[%s2989 + $0xe4] sm:$0xf]
        %v3048 = vld [vmem:[%s2989 + $0xe8] sm:$0xf]
        %v3049 = vld [vmem:[%s2989 + $0xec] sm:$0xf]
        %v3050 = vld [vmem:[%s2989 + $0xf0] sm:$0xf]
        %v3051 = vld [vmem:[%s2989 + $0xf4] sm:$0xf]
        %v3052 = vld [vmem:[%s2989 + $0xf8] sm:$0xf]
        %v3053 = vld [vmem:[%s2989 + $0xfc] sm:$0xf]
        %v3054 = vld [vmem:[%s2989 + $0x100] sm:$0xf]
        %v3055 = vld [vmem:[%s2989 + $0x104] sm:$0xf]
        %v3056 = vld [vmem:[%s2989 + $0x108] sm:$0xf]
        %v3057 = vld [vmem:[%s2989 + $0x10c] sm:$0xf]
        %v3058 = vld [vmem:[%s2989 + $0x110] sm:$0xf]
        %v3059 = vld [vmem:[%s2989 + $0x114] sm:$0xf]
        %v3060 = vld [vmem:[%s2989 + $0x118] sm:$0xf]
        %v3061 = vld [vmem:[%s2989 + $0x11c] sm:$0xf]
        %v3062 = vld [vmem:[%s2989 + $0x120] sm:$0xf]
        %v3063 = vld [vmem:[%s2989 + $0x124] sm:$0xf]
        %v3064 = vld [vmem:[%s2989 + $0x128] sm:$0xf]
        %v3065 = vld [vmem:[%s2989 + $0x12c] sm:$0xf]
        %v3066 = vld [vmem:[%s2989 + $0x130] sm:$0xf]
        %v3067 = vld [vmem:[%s2989 + $0x134] sm:$0xf]
        %v3068 = vld [vmem:[%s2989 + $0x138] sm:$0xf]
        %v3069 = vld [vmem:[%s2989 + $0x13c] sm:$0xf]
        %v3070 = vld [vmem:[%s2989 + $0x140] sm:$0xf]
        %v3071 = vld [vmem:[%s2989 + $0x144] sm:$0xf]
        %v3072 = vld [vmem:[%s2989 + $0x148] sm:$0xf]
        %v3073 = vld [vmem:[%s2989 + $0x14c] sm:$0xf]
        %v3074 = vld [vmem:[%s2989 + $0x150] sm:$0xf]
        %v3075 = vld [vmem:[%s2989 + $0x154] sm:$0xf]
        %v3076 = vld [vmem:[%s2989 + $0x158] sm:$0xf]
        %v3077 = vld [vmem:[%s2989 + $0x15c] sm:$0xf]
        %v3078 = vld [vmem:[%s2989 + $0x160] sm:$0xf]
        %v3079 = vld [vmem:[%s2989 + $0x164] sm:$0xf]
        %v3080 = vld [vmem:[%s2989 + $0x168] sm:$0xf]
        %v3081 = vld [vmem:[%s2989 + $0x16c] sm:$0xf]
        %v3082 = vld [vmem:[%s2989 + $0x170] sm:$0xf]
        %v3083 = vld [vmem:[%s2989 + $0x174] sm:$0xf]
        %v3084 = vld [vmem:[%s2989 + $0x178] sm:$0xf]
        %v3085 = vld [vmem:[%s2989 + $0x17c] sm:$0xf]
        %v3086 = vld [vmem:[%s2989 + $0x180] sm:$0xf]
        %v3087 = vld [vmem:[%s2989 + $0x184] sm:$0xf]
        %v3088 = vld [vmem:[%s2989 + $0x188] sm:$0xf]
        %v3089 = vld [vmem:[%s2989 + $0x18c] sm:$0xf]
        %v3090 = vld [vmem:[%s2989 + $0x190] sm:$0xf]
        %v3091 = vld [vmem:[%s2989 + $0x194] sm:$0xf]
        %v3092 = vld [vmem:[%s2989 + $0x198] sm:$0xf]
        %v3093 = vld [vmem:[%s2989 + $0x19c] sm:$0xf]
        %v3094 = vld [vmem:[%s2989 + $0x1a0] sm:$0xf]
        %v3095 = vld [vmem:[%s2989 + $0x1a4] sm:$0xf]
        %v3096 = vld [vmem:[%s2989 + $0x1a8] sm:$0xf]
        %v3097 = vld [vmem:[%s2989 + $0x1ac] sm:$0xf]
        %v3098 = vld [vmem:[%s2989 + $0x1b0] sm:$0xf]
        %v3099 = vld [vmem:[%s2989 + $0x1b4] sm:$0xf]
        %v3100 = vld [vmem:[%s2989 + $0x1b8] sm:$0xf]
        %v3101 = vld [vmem:[%s2989 + $0x1bc] sm:$0xf]
        %v3214 = vunpack.c.l.b16 %v2990
        %v3215 = vunpack.c.l.b16 %v2991
        %v3216 = vunpack.c.l.b16 %v2992
        %v3217 = vunpack.c.l.b16 %v2993
        %v3218 = vunpack.c.l.b16 %v2994
        %v3219 = vunpack.c.l.b16 %v2995
        %v3220 = vunpack.c.l.b16 %v2996
        %v3221 = vunpack.c.l.b16 %v2997
        %v3222 = vunpack.c.l.b16 %v2998
        %v3223 = vunpack.c.l.b16 %v2999
        %v3224 = vunpack.c.l.b16 %v3000
        %v3225 = vunpack.c.l.b16 %v3001
        %v3226 = vunpack.c.l.b16 %v3002
        %v3227 = vunpack.c.l.b16 %v3003
        %v3228 = vunpack.c.l.b16 %v3004
        %v3229 = vunpack.c.l.b16 %v3005
        %v3230 = vunpack.c.l.b16 %v3006
        %v3231 = vunpack.c.l.b16 %v3007
        %v3232 = vunpack.c.l.b16 %v3008
        %v3233 = vunpack.c.l.b16 %v3009
        %v3234 = vunpack.c.l.b16 %v3010
        %v3235 = vunpack.c.l.b16 %v3011
        %v3236 = vunpack.c.l.b16 %v3012
        %v3237 = vunpack.c.l.b16 %v3013
        %v3238 = vunpack.c.l.b16 %v3014
        %v3239 = vunpack.c.l.b16 %v3015
        %v3240 = vunpack.c.l.b16 %v3016
        %v3241 = vunpack.c.l.b16 %v3017
        %v3242 = vunpack.c.l.b16 %v3018
        %v3243 = vunpack.c.l.b16 %v3019
        %v3244 = vunpack.c.l.b16 %v3020
        %v3245 = vunpack.c.l.b16 %v3021
        %v3246 = vunpack.c.l.b16 %v3022
        %v3247 = vunpack.c.l.b16 %v3023
        %v3248 = vunpack.c.l.b16 %v3024
        %v3249 = vunpack.c.l.b16 %v3025
        %v3250 = vunpack.c.l.b16 %v3026
        %v3251 = vunpack.c.l.b16 %v3027
        %v3252 = vunpack.c.l.b16 %v3028
        %v3253 = vunpack.c.l.b16 %v3029
        %v3254 = vunpack.c.l.b16 %v3030
        %v3255 = vunpack.c.l.b16 %v3031
        %v3256 = vunpack.c.l.b16 %v3032
        %v3257 = vunpack.c.l.b16 %v3033
        %v3258 = vunpack.c.l.b16 %v3034
        %v3259 = vunpack.c.l.b16 %v3035
        %v3260 = vunpack.c.l.b16 %v3036
        %v3261 = vunpack.c.l.b16 %v3037
        %v3262 = vunpack.c.l.b16 %v3038
        %v3263 = vunpack.c.l.b16 %v3039
        %v3264 = vunpack.c.l.b16 %v3040
        %v3265 = vunpack.c.l.b16 %v3041
        %v3266 = vunpack.c.l.b16 %v3042
        %v3267 = vunpack.c.l.b16 %v3043
        %v3268 = vunpack.c.l.b16 %v3044
        %v3269 = vunpack.c.l.b16 %v3045
        %v3270 = vunpack.c.l.b16 %v3046
        %v3271 = vunpack.c.l.b16 %v3047
        %v3272 = vunpack.c.l.b16 %v3048
        %v3273 = vunpack.c.l.b16 %v3049
        %v3274 = vunpack.c.l.b16 %v3050
        %v3275 = vunpack.c.l.b16 %v3051
        %v3276 = vunpack.c.l.b16 %v3052
        %v3277 = vunpack.c.l.b16 %v3053
        %v3278 = vunpack.c.l.b16 %v3054
        %v3279 = vunpack.c.l.b16 %v3055
        %v3280 = vunpack.c.l.b16 %v3056
        %v3281 = vunpack.c.l.b16 %v3057
        %v3282 = vunpack.c.l.b16 %v3058
        %v3283 = vunpack.c.l.b16 %v3059
        %v3284 = vunpack.c.l.b16 %v3060
        %v3285 = vunpack.c.l.b16 %v3061
        %v3286 = vunpack.c.l.b16 %v3062
        %v3287 = vunpack.c.l.b16 %v3063
        %v3288 = vunpack.c.l.b16 %v3064
        %v3289 = vunpack.c.l.b16 %v3065
        %v3290 = vunpack.c.l.b16 %v3066
        %v3291 = vunpack.c.l.b16 %v3067
        %v3292 = vunpack.c.l.b16 %v3068
        %v3293 = vunpack.c.l.b16 %v3069
        %v3294 = vunpack.c.l.b16 %v3070
        %v3295 = vunpack.c.l.b16 %v3071
        %v3296 = vunpack.c.l.b16 %v3072
        %v3297 = vunpack.c.l.b16 %v3073
        %v3298 = vunpack.c.l.b16 %v3074
        %v3299 = vunpack.c.l.b16 %v3075
        %v3300 = vunpack.c.l.b16 %v3076
        %v3301 = vunpack.c.l.b16 %v3077
        %v3302 = vunpack.c.l.b16 %v3078
        %v3303 = vunpack.c.l.b16 %v3079
        %v3304 = vunpack.c.l.b16 %v3080
        %v3305 = vunpack.c.l.b16 %v3081
        %v3306 = vunpack.c.l.b16 %v3082
        %v3307 = vunpack.c.l.b16 %v3083
        %v3308 = vunpack.c.l.b16 %v3084
        %v3309 = vunpack.c.l.b16 %v3085
        %v3310 = vunpack.c.l.b16 %v3086
        %v3311 = vunpack.c.l.b16 %v3087
        %v3312 = vunpack.c.l.b16 %v3088
        %v3313 = vunpack.c.l.b16 %v3089
        %v3314 = vunpack.c.l.b16 %v3090
        %v3315 = vunpack.c.l.b16 %v3091
        %v3316 = vunpack.c.l.b16 %v3092
        %v3317 = vunpack.c.l.b16 %v3093
        %v3318 = vunpack.c.l.b16 %v3094
        %v3319 = vunpack.c.l.b16 %v3095
        %v3320 = vunpack.c.l.b16 %v3096
        %v3321 = vunpack.c.l.b16 %v3097
        %v3322 = vunpack.c.l.b16 %v3098
        %v3323 = vunpack.c.l.b16 %v3099
        %v3324 = vunpack.c.l.b16 %v3100
        %v3325 = vunpack.c.l.b16 %v3101
        %v3326 = vpack.c.b16 %v3215, %v3214
        %v3327 = vpack.c.b16 %v3217, %v3216
        %v3328 = vpack.c.b16 %v3219, %v3218
        %v3329 = vpack.c.b16 %v3221, %v3220
        %v3330 = vpack.c.b16 %v3223, %v3222
        %v3331 = vpack.c.b16 %v3225, %v3224
        %v3332 = vpack.c.b16 %v3227, %v3226
        %v3333 = vpack.c.b16 %v3229, %v3228
        %v3334 = vpack.c.b16 %v3231, %v3230
        %v3335 = vpack.c.b16 %v3233, %v3232
        %v3336 = vpack.c.b16 %v3235, %v3234
        %v3337 = vpack.c.b16 %v3237, %v3236
        %v3338 = vpack.c.b16 %v3239, %v3238
        %v3339 = vpack.c.b16 %v3241, %v3240
        %v3340 = vpack.c.b16 %v3243, %v3242
        %v3341 = vpack.c.b16 %v3245, %v3244
        %v3342 = vpack.c.b16 %v3247, %v3246
        %v3343 = vpack.c.b16 %v3249, %v3248
        %v3344 = vpack.c.b16 %v3251, %v3250
        %v3345 = vpack.c.b16 %v3253, %v3252
        %v3346 = vpack.c.b16 %v3255, %v3254
        %v3347 = vpack.c.b16 %v3257, %v3256
        %v3348 = vpack.c.b16 %v3259, %v3258
        %v3349 = vpack.c.b16 %v3261, %v3260
        %v3350 = vpack.c.b16 %v3263, %v3262
        %v3351 = vpack.c.b16 %v3265, %v3264
        %v3352 = vpack.c.b16 %v3267, %v3266
        %v3353 = vpack.c.b16 %v3269, %v3268
        %v3354 = vpack.c.b16 %v3271, %v3270
        %v3355 = vpack.c.b16 %v3273, %v3272
        %v3356 = vpack.c.b16 %v3275, %v3274
        %v3357 = vpack.c.b16 %v3277, %v3276
        %v3358 = vpack.c.b16 %v3279, %v3278
        %v3359 = vpack.c.b16 %v3281, %v3280
        %v3360 = vpack.c.b16 %v3283, %v3282
        %v3361 = vpack.c.b16 %v3285, %v3284
        %v3362 = vpack.c.b16 %v3287, %v3286
        %v3363 = vpack.c.b16 %v3289, %v3288
        %v3364 = vpack.c.b16 %v3291, %v3290
        %v3365 = vpack.c.b16 %v3293, %v3292
        %v3366 = vpack.c.b16 %v3295, %v3294
        %v3367 = vpack.c.b16 %v3297, %v3296
        %v3368 = vpack.c.b16 %v3299, %v3298
        %v3369 = vpack.c.b16 %v3301, %v3300
        %v3370 = vpack.c.b16 %v3303, %v3302
        %v3371 = vpack.c.b16 %v3305, %v3304
        %v3372 = vpack.c.b16 %v3307, %v3306
        %v3373 = vpack.c.b16 %v3309, %v3308
        %v3374 = vpack.c.b16 %v3311, %v3310
        %v3375 = vpack.c.b16 %v3313, %v3312
        %v3376 = vpack.c.b16 %v3315, %v3314
        %v3377 = vpack.c.b16 %v3317, %v3316
        %v3378 = vpack.c.b16 %v3319, %v3318
        %v3379 = vpack.c.b16 %v3321, %v3320
        %v3380 = vpack.c.b16 %v3323, %v3322
        %v3381 = vpack.c.b16 %v3325, %v3324
        %3438 = vmatprep.subr.bf16.mxu0 0
        %3439 = vmatpush1.bf16.msra.mxu0 %v3333
        %3440 = vmatprep.subr.bf16.mxu0 0
        %3441 = vmatpush1.bf16.msra.mxu0 %v3332
        %3442 = vmatprep.subr.bf16.mxu0 0
        %3443 = vmatpush1.bf16.msra.mxu0 %v3331
        %3444 = vmatprep.subr.bf16.mxu0 0
        %3445 = vmatpush1.bf16.msra.mxu0 %v3330
        %3446 = vmatprep.subr.bf16.mxu0 0
        %3447 = vmatpush1.bf16.msra.mxu0 %v3329
        %3448 = vmatprep.subr.bf16.mxu0 0
        %3449 = vmatpush1.bf16.msra.mxu0 %v3328
        %3450 = vmatprep.subr.bf16.mxu0 0
        %3451 = vmatpush1.bf16.msra.mxu0 %v3327
        %3452 = vmatprep.subr.bf16.mxu0 0
        %3453 = vmatpush1.bf16.msra.mxu0 %v3326
        %3454 = vmatprep.subr.bf16.mxu0 0
        %3455 = vmatpush2.bf16.msra.mxu0 %v3341
        %3456 = vmatprep.subr.bf16.mxu0 0
        %3457 = vmatpush2.bf16.msra.mxu0 %v3340
        %3458 = vmatprep.subr.bf16.mxu0 0
        %3459 = vmatpush2.bf16.msra.mxu0 %v3339
        %3460 = vmatprep.subr.bf16.mxu0 0
        %3461 = vmatpush2.bf16.msra.mxu0 %v3338
        %3462 = vmatprep.subr.bf16.mxu0 0
        %3463 = vmatpush2.bf16.msra.mxu0 %v3337
        %3464 = vmatprep.subr.bf16.mxu0 0
        %3465 = vmatpush2.bf16.msra.mxu0 %v3336
        %3466 = vmatprep.subr.bf16.mxu0 0
        %3467 = vmatpush2.bf16.msra.mxu0 %v3335
        %3468 = vmatprep.subr.bf16.mxu0 0
        %3469 = vmatpush2.bf16.msra.mxu0 %v3334
        %3470 = vmatprep.mubr.bf16.mxu0 %v2924
        %3471 = vmatmul.mubr.bf16.gmra.mxu0 %v2908
        %v3472 = vpop.f32.mrf.mxu0
        %v3473 = vadd.f32 0.0, %v3472
        %v3474 = vpop.f32.mrf.mxu0
        %v3475 = vpop.f32.mrf.mxu0
        %v3476 = vadd.f32 0.0, %v3475
        %v3477 = vpop.f32.mrf.mxu0
        %3478 = vdwg.mxu0
        %3479 = vmatprep.subr.bf16.mxu0 0
        %3480 = vmatpush1.bf16.msra.mxu0 %v3349
        %3481 = vmatprep.subr.bf16.mxu0 0
        %3482 = vmatpush1.bf16.msra.mxu0 %v3348
        %3483 = vmatprep.subr.bf16.mxu0 0
        %3484 = vmatpush1.bf16.msra.mxu0 %v3347
        %3485 = vmatprep.subr.bf16.mxu0 0
        %3486 = vmatpush1.bf16.msra.mxu0 %v3346
        %3487 = vmatprep.subr.bf16.mxu0 0
        %3488 = vmatpush1.bf16.msra.mxu0 %v3345
        %3489 = vmatprep.subr.bf16.mxu0 0
        %3490 = vmatpush1.bf16.msra.mxu0 %v3344
        %3491 = vmatprep.subr.bf16.mxu0 0
        %3492 = vmatpush1.bf16.msra.mxu0 %v3343
        %3493 = vmatprep.subr.bf16.mxu0 0
        %3494 = vmatpush1.bf16.msra.mxu0 %v3342
        %3495 = vmatprep.subr.bf16.mxu0 0
        %3496 = vmatpush2.bf16.msra.mxu0 %v3357
        %3497 = vmatprep.subr.bf16.mxu0 0
        %3498 = vmatpush2.bf16.msra.mxu0 %v3356
        %3499 = vmatprep.subr.bf16.mxu0 0
        %3500 = vmatpush2.bf16.msra.mxu0 %v3355
        %3501 = vmatprep.subr.bf16.mxu0 0
        %3502 = vmatpush2.bf16.msra.mxu0 %v3354
        %3503 = vmatprep.subr.bf16.mxu0 0
        %3504 = vmatpush2.bf16.msra.mxu0 %v3353
        %3505 = vmatprep.subr.bf16.mxu0 0
        %3506 = vmatpush2.bf16.msra.mxu0 %v3352
        %3507 = vmatprep.subr.bf16.mxu0 0
        %3508 = vmatpush2.bf16.msra.mxu0 %v3351
        %3509 = vmatprep.subr.bf16.mxu0 0
        %3510 = vmatpush2.bf16.msra.mxu0 %v3350
        %3511 = vmatprep.mubr.bf16.mxu0 %v2952
        %3512 = vmatmul.mubr.bf16.gmra.mxu0 %v2931
        %v3513 = vpop.f32.mrf.mxu0
        %v3514 = vadd.f32 %v3473, %v3513
        %v3515 = vpop.f32.mrf.mxu0
        %v3516 = vpop.f32.mrf.mxu0
        %v3517 = vadd.f32 %v3476, %v3516
        %v3518 = vpop.f32.mrf.mxu0
        %3519 = vdwg.mxu0
        %3520 = vmatprep.subr.bf16.mxu0 0
        %3521 = vmatpush1.bf16.msra.mxu0 %v3365
        %3522 = vmatprep.subr.bf16.mxu0 0
        %3523 = vmatpush1.bf16.msra.mxu0 %v3364
        %3524 = vmatprep.subr.bf16.mxu0 0
        %3525 = vmatpush1.bf16.msra.mxu0 %v3363
        %3526 = vmatprep.subr.bf16.mxu0 0
        %3527 = vmatpush1.bf16.msra.mxu0 %v3362
        %3528 = vmatprep.subr.bf16.mxu0 0
        %3529 = vmatpush1.bf16.msra.mxu0 %v3361
        %3530 = vmatprep.subr.bf16.mxu0 0
        %3531 = vmatpush1.bf16.msra.mxu0 %v3360
        %3532 = vmatprep.subr.bf16.mxu0 0
        %3533 = vmatpush1.bf16.msra.mxu0 %v3359
        %3534 = vmatprep.subr.bf16.mxu0 0
        %3535 = vmatpush1.bf16.msra.mxu0 %v3358
        %3536 = vmatprep.subr.bf16.mxu0 0
        %3537 = vmatpush2.bf16.msra.mxu0 %v3373
        %3538 = vmatprep.subr.bf16.mxu0 0
        %3539 = vmatpush2.bf16.msra.mxu0 %v3372
        %3540 = vmatprep.subr.bf16.mxu0 0
        %3541 = vmatpush2.bf16.msra.mxu0 %v3371
        %3542 = vmatprep.subr.bf16.mxu0 0
        %3543 = vmatpush2.bf16.msra.mxu0 %v3370
        %3544 = vmatprep.subr.bf16.mxu0 0
        %3545 = vmatpush2.bf16.msra.mxu0 %v3369
        %3546 = vmatprep.subr.bf16.mxu0 0
        %3547 = vmatpush2.bf16.msra.mxu0 %v3368
        %3548 = vmatprep.subr.bf16.mxu0 0
        %3549 = vmatpush2.bf16.msra.mxu0 %v3367
        %3550 = vmatprep.subr.bf16.mxu0 0
        %3551 = vmatpush2.bf16.msra.mxu0 %v3366
        %3552 = vmatprep.mubr.bf16.mxu0 %v2980
        %3553 = vmatmul.mubr.bf16.gmra.mxu0 %v2959
        %v3554 = vpop.f32.mrf.mxu0
        %v3555 = vadd.f32 %v3514, %v3554
        %v3556 = vpop.f32.mrf.mxu0
        %v3557 = vpop.f32.mrf.mxu0
        %v3558 = vadd.f32 %v3517, %v3557
        %v3559 = vpop.f32.mrf.mxu0
        %3560 = vdwg.mxu0
        %3561 = vmatprep.subr.bf16.mxu0 0
        %3562 = vmatpush1.bf16.msra.mxu0 %v3381
        %3563 = vmatprep.subr.bf16.mxu0 0
        %3564 = vmatpush1.bf16.msra.mxu0 %v3380
        %3565 = vmatprep.subr.bf16.mxu0 0
        %3566 = vmatpush1.bf16.msra.mxu0 %v3379
        %3567 = vmatprep.subr.bf16.mxu0 0
        %3568 = vmatpush1.bf16.msra.mxu0 %v3378
        %3569 = vmatprep.subr.bf16.mxu0 0
        %3570 = vmatpush1.bf16.msra.mxu0 %v3377
        %3571 = vmatprep.subr.bf16.mxu0 0
        %3572 = vmatpush1.bf16.msra.mxu0 %v3376
        %3573 = vmatprep.subr.bf16.mxu0 0
        %3574 = vmatpush1.bf16.msra.mxu0 %v3375
        %3575 = vmatprep.subr.bf16.mxu0 0
        %3576 = vmatpush1.bf16.msra.mxu0 %v3374
        %3577 = vmatprep.subr.bf16.mxu0 0
        %3578 = vmatpush2.bf16.msra.mxu0 0
        %3579 = vmatprep.subr.bf16.mxu0 0
        %3580 = vmatpush2.bf16.msra.mxu0 0
        %3581 = vmatprep.subr.bf16.mxu0 0
        %3582 = vmatpush2.bf16.msra.mxu0 0
        %3583 = vmatprep.subr.bf16.mxu0 0
        %3584 = vmatpush2.bf16.msra.mxu0 0
        %3585 = vmatprep.subr.bf16.mxu0 0
        %3586 = vmatpush2.bf16.msra.mxu0 0
        %3587 = vmatprep.subr.bf16.mxu0 0
        %3588 = vmatpush2.bf16.msra.mxu0 0
        %3589 = vmatprep.subr.bf16.mxu0 0
        %3590 = vmatpush2.bf16.msra.mxu0 0
        %3591 = vmatprep.subr.bf16.mxu0 0
        %3592 = vmatpush2.bf16.msra.mxu0 0
        %3593 = vmatprep.mubr.bf16.mxu0 0
        %3594 = vmatmul.mubr.bf16.gmra.mxu0 %v2987
        %v3595 = vpop.f32.mrf.mxu0
        %v3596 = vadd.f32 %v3555, %v3595
        %v3597 = vpop.f32.mrf.mxu0
        %v3598 = vpop.f32.mrf.mxu0
        %v3599 = vadd.f32 %v3558, %v3598
        %v3600 = vpop.f32.mrf.mxu0
        %3601 = vdwg.mxu0
        %s3602 = scalar_lea.vmem [#allocation8], 3
        %v3603 = vld [vmem:[%s3602] sm:$0x1]
        %v3605 = vlaneseq
        %v3606 = vshrl.u32 %v3605, 7
        %v3607 = vsub.s32 0, %v3606
        %v3608 = vrot.slane %v3603, %v3607
        %v3610 = vmul.f32 %v3596, %v3608
        %v3611 = vmul.f32 %v3599, %v3608
        %s3612 = scalar_lea.vmem %s3, 3
        %v3613 = vld [vmem:[%s3612] sm:$0x1]
        %v3615 = vlaneseq
        %v3616 = vshrl.u32 %v3615, 7
        %v3617 = vsub.s32 0, %v3616
        %v3618 = vrot.slane %v3613, %v3617
        %v3620 = vadd.f32 %v3610, %v3618
        %v3621 = vadd.f32 %v3611, %v3618
        %v3622 = vmul.f32 %v3620, 0.5
        %v3623 = vmul.f32 %v3621, 0.5
        %v3624 = vmul.f32 %v3620, %v3620
        %v3625 = vmul.f32 %v3621, %v3621
        %v3626 = vmul.f32 %v3624, %v3620
        %v3627 = vmul.f32 %v3625, %v3621
        %v3628 = vmul.f32 %v3626, 0.044715
        %v3629 = vmul.f32 %v3627, 0.044715
        %v3630 = vadd.f32 %v3620, %v3628
        %v3631 = vadd.f32 %v3621, %v3629
        %v3632 = vmul.f32 %v3630, 0.7978846
        %v3633 = vmul.f32 %v3631, 0.7978846
        %v3634 = vtanh.pop %v3632
        %v3635 = vtanh.pop %v3633
        %v3636 = vadd.f32 %v3634, 1.0
        %v3637 = vadd.f32 %v3635, 1.0
        %v3638 = vmul.f32 %v3622, %v3636
        %v3639 = vmul.f32 %v3623, %v3637
        %3640 = vxpose.xlu0.b32.start [1/16] %v3638, 128
        %3641 = vxpose.xlu0.b32.cont [2/16] %v3639, 128
        %3642 = vxpose.xlu0.b32.cont [3/16] 0.0, 128
        %3643 = vxpose.xlu0.b32.cont [4/16] 0.0, 128
        %3644 = vxpose.xlu0.b32.cont [5/16] 0.0, 128
        %3645 = vxpose.xlu0.b32.cont [6/16] 0.0, 128
        %3646 = vxpose.xlu0.b32.cont [7/16] 0.0, 128
        %3647 = vxpose.xlu0.b32.cont [8/16] 0.0, 128
        %3648 = vxpose.xlu0.b32.cont [9/16] 0.0, 128
        %3649 = vxpose.xlu0.b32.cont [10/16] 0.0, 128
        %3650 = vxpose.xlu0.b32.cont [11/16] 0.0, 128
        %3651 = vxpose.xlu0.b32.cont [12/16] 0.0, 128
        %3652 = vxpose.xlu0.b32.cont [13/16] 0.0, 128
        %3653 = vxpose.xlu0.b32.cont [14/16] 0.0, 128
        %3654 = vxpose.xlu0.b32.cont [15/16] 0.0, 128
        %3655 = vxpose.xlu0.b32.end [16/16] 0.0, 128
        %v3656 = vpop.trf.xlu0
        %v3657 = vpop.trf.xlu0
        %v3658 = vpop.trf.xlu0
        %v3659 = vpop.trf.xlu0
        %v3660 = vpop.trf.xlu0
        %v3661 = vpop.trf.xlu0
        %v3662 = vpop.trf.xlu0
        %v3663 = vpop.trf.xlu0
        %v3664 = vpop.trf.xlu0
        %v3665 = vpop.trf.xlu0
        %v3666 = vpop.trf.xlu0
        %v3667 = vpop.trf.xlu0
        %v3668 = vpop.trf.xlu0
        %v3669 = vpop.trf.xlu0
        %v3670 = vpop.trf.xlu0
        %v3671 = vpop.trf.xlu0
        %vm3672 = vcmask 130048
        %3673 = vst.msk [vmem:[%s270] sm:$0xff] %vm3672, %v3656
        %3674 = vst.msk [vmem:[%s270 + $0x8] sm:$0xff] %vm3672, %v3657
        %3675 = vst.msk [vmem:[%s270 + $0x10] sm:$0xff] %vm3672, %v3658
        %3676 = vst.msk [vmem:[%s270 + $0x18] sm:$0xff] %vm3672, %v3659
        %3677 = vst.msk [vmem:[%s270 + $0x20] sm:$0xff] %vm3672, %v3660
        %3678 = vst.msk [vmem:[%s270 + $0x28] sm:$0xff] %vm3672, %v3661
        %3679 = vst.msk [vmem:[%s270 + $0x30] sm:$0xff] %vm3672, %v3662
        %3680 = vst.msk [vmem:[%s270 + $0x38] sm:$0xff] %vm3672, %v3663
        %3681 = vst.msk [vmem:[%s270 + $0x40] sm:$0xff] %vm3672, %v3664
        %3682 = vst.msk [vmem:[%s270 + $0x48] sm:$0xff] %vm3672, %v3665
        %3683 = vst.msk [vmem:[%s270 + $0x50] sm:$0xff] %vm3672, %v3666
        %3684 = vst.msk [vmem:[%s270 + $0x58] sm:$0xff] %vm3672, %v3667
        %3685 = vst.msk [vmem:[%s270 + $0x60] sm:$0xff] %vm3672, %v3668
        %3686 = vst.msk [vmem:[%s270 + $0x68] sm:$0xff] %vm3672, %v3669
        %3687 = vst.msk [vmem:[%s270 + $0x70] sm:$0xff] %vm3672, %v3670
        %3688 = vst.msk [vmem:[%s270 + $0x78] sm:$0xff] %vm3672, %v3671
        %p3689 = scmp.lt.s32.totalorder %s23, 1
        %s3690 = scalar_select %p3689, %s23, 1
        %p3691 = scmp.lt.s32.totalorder %s24, 0
        %s3692 = scalar_select %p3691, %s24, 0
        %s3693 = smul.addr %s3690, 16
        %s3694 = sadd.s32 %s3692, %s3693
        %s3695 = smul.addr %s3694, 8
        %s3696 = scalar_lea.vmem %s4, %s3695
        // Predicated region
        $region61: #{tpu_custom_call.1} parent=35 // pred_check
          %p3697 = pneg %p142
        $region62: #{tpu_custom_call.1} parent=35 // pred_check_branch
          %3699 = sbr.rel (%p3697) target = $region64
        $region63: #{tpu_custom_call.1} parent=35 // pred_region
          _
        $region64: #{tpu_custom_call.1} parent=35 // pred_fallthru
          _
      $region36: #{tpu_custom_call.1} parent=5 // pred_fallthru
        _
      %p3700 = scmp.le.s32.totalorder 2, %s14
      // Predicated region
      $region65: #{tpu_custom_call.1} parent=5 // pred_check
        %p3701 = pneg %p3700
      $region66: #{tpu_custom_call.1} parent=5 // pred_check_branch
        %3703 = sbr.rel (%p3701) target = $region68
      $region67: #{tpu_custom_call.1} parent=5 // pred_region
        %s3704 = ssub.s32 %s14, 2
        // Predicated region
        $region69: #{tpu_custom_call.1} parent=67 // pred_check
          %p3705 = pneg %p148
        $region70: #{tpu_custom_call.1} parent=67 // pred_check_branch
          %3707 = sbr.rel (%p3705) target = $region72
        $region71: #{tpu_custom_call.1} parent=67 // pred_region
          %p3708 = scmp.lt.s32.totalorder %s25, 1
          %s3709 = scalar_select %p3708, %s25, 1
          %p3710 = scmp.lt.s32.totalorder %s26, 0
          %s3711 = scalar_select %p3710, %s26, 0
          %s3712 = smul.addr %s3709, 16
          %s3713 = sadd.s32 %s3711, %s3712
          %s3714 = smul.addr %s3713, 8
          %s3715 = scalar_lea.vmem %s4, %s3714
        $region72: #{tpu_custom_call.1} parent=67 // pred_fallthru
          _
      $region68: #{tpu_custom_call.1} parent=5 // pred_fallthru
        _
    $region6: #{tpu_custom_call.1} parent=1 // loop_footer
      %s18 = sadd.s32 1, %s14
    $region7: #{tpu_custom_call.1} parent=1 // loop_footer_branch
      %13 = sbr.rel target = $region3
    $region8: #{tpu_custom_call.1} parent=1 // loop_exit
      _
    %3716 = vsyncpa [#allocation5], 1
    %s3717 = scalar_lea.sflag [#allocation5], 1
    %3718 = vsyncpa %s3717, 1
    %3719 = vsyncpa [#allocation7], 1

</llo_original>
